<compile_context>
chip_gen: v6e
topology: v6e:2x2x1
jax: 0.10.0
libtpu: 0.0.40
codegen_flags: <defaults>
</compile_context>

<pallas_src>
import functools

import jax
import jax.numpy as jnp
import numpy as np
from jax.experimental import pallas as pl
from jax.experimental.pallas import tpu as pltpu

LANE = 128


def _round_up(x, m):
    return (x + m - 1) // m * m


def _vmem_limit_bytes():
    """Generation-aware VMEM cap: ~3/4 of physical, never above 100 MiB."""
    try:
        phys = pltpu.get_tpu_info().vmem_capacity_bytes
    except Exception:
        phys = 64 * 1024 * 1024          # conservative (v7x-sized) fallback
    return min(int(phys * 3 // 4), 100 * 1024 * 1024)


# ----------------------------------------------------------------------------
# Kernel
# ----------------------------------------------------------------------------
def _conv_kernel(x_ref, w_ref, b_ref, o_ref, *, k, pad, th, wid, cdt):
    """One (batch, row-tile) step of a same-padded k x k conv.

    x_ref: (1, H+2p, W+2p, Cin_p)  full zero-padded image for this batch
    w_ref: (k*k, Cin_p, Cout_p)    packed weights, kernel-position major
    b_ref: (1, Cout_p)             f32 bias (zeros if the module has no bias)
    o_ref: (1, th*W, Cout_p)       lane-dense flattened output row tile
    """
    row0 = pl.multiple_of(pl.program_id(1) * th, th)
    cout_p = w_ref.shape[-1]

    # Slice the halo'd row tile straight off the resident padded image block
    # (leading-dim dynamic offset -> no duplicated HBM traffic, no stacking).
    x_rows = x_ref[0, pl.ds(row0, th + 2 * pad), :, :]      # (th+2p, W+2p, Cin_p)
    x_rows = x_rows.astype(cdt)

    acc = jnp.zeros((th * wid, cout_p), jnp.float32)
    for dw in range(k):                                     # k sublane-crossing slices
        xw = x_rows[:, dw:dw + wid, :]                      # (th+2p, W, Cin_p)
        for dh in range(k):                                  # cheap leading-dim offsets
            xs = xw[dh:dh + th].reshape(th * wid, -1)
            acc = acc + jnp.dot(xs, w_ref[dh * k + dw],
                                preferred_element_type=jnp.float32)
    o_ref[0] = (acc + b_ref[...]).astype(o_ref.dtype)


# ----------------------------------------------------------------------------
# Tile selection (VMEM-budget aware)
# ----------------------------------------------------------------------------
def _pick_row_tile(*, n, hgt, wid, pad, k, cin_p, cout_p, act_item, out_item,
                   vmem_limit, single_w_buf=True):
    hp, wp = hgt + 2 * pad, wid + 2 * pad
    sub = 16 if act_item == 2 else 8                         # bf16 packs 16 rows/vreg

    fixed = (hp * wp * cin_p * act_item * 2                  # padded image, 2 buffers
             + k * k * cin_p * cout_p * act_item * (1 if single_w_buf else 2)
             + cout_p * 4 * 2)                               # bias

    def per_tile(th):
        return (th * wid * cout_p * out_item * 2             # output block, 2 buffers
                + th * wid * cout_p * 4                      # f32 accumulator
                + (th + 2 * pad) * wp * cin_p * act_item     # row-slice temp
                + 2 * (th + 2 * pad) * wid * cin_p * act_item  # dw-shift copies
                + th * wid * cin_p * act_item)               # reshaped MXU operand

    budget = int(vmem_limit * 0.8)
    divs = [d for d in range(1, hgt + 1)
            if hgt % d == 0 and ((d * wid) % sub == 0 or d == hgt)]
    fits = [d for d in divs if fixed + per_tile(d) <= budget]
    if not fits:
        # TODO(synk): fall back to a manual-DMA halo pipeline (memory_space=pl.ANY
        # + pltpu.make_async_copy) when even the smallest row tile does not fit.
        raise NotImplementedError("activation too large for the single-block path")
    # Prefer >= 4 grid steps (pipelining + v7x megacore), then >= 2, else any.
    pref = ([d for d in fits if n * (hgt // d) >= 4]
            or [d for d in fits if n * (hgt // d) >= 2]
            or fits)
    return max(pref)


# ----------------------------------------------------------------------------
# pallas_call construction
# ----------------------------------------------------------------------------
def _build_call(*, n, n_h, th, hgt, wid, pad, k, cin_p, cout_p, out_dtype, cdt,
                vmem_limit, single_buffer_consts):
    hp, wp = hgt + 2 * pad, wid + 2 * pad
    const_kw = {"pipeline_mode": pl.Buffered(1)} if single_buffer_consts else {}
    kernel = functools.partial(_conv_kernel, k=k, pad=pad, th=th, wid=wid, cdt=cdt)
    return pl.pallas_call(
        kernel,
        out_shape=jax.ShapeDtypeStruct((n, hgt * wid, cout_p), out_dtype),
        grid=(n, n_h),
        in_specs=[
            # Full padded image per batch; resident across the row-tile axis.
            pl.BlockSpec((1, hp, wp, cin_p), lambda b, i: (b, 0, 0, 0)),
            pl.BlockSpec((k * k, cin_p, cout_p), lambda b, i: (0, 0, 0), **const_kw),
            pl.BlockSpec((1, cout_p), lambda b, i: (0, 0), **const_kw),
        ],
        out_specs=pl.BlockSpec((1, th * wid, cout_p), lambda b, i: (b, i, 0)),
        compiler_params=pltpu.CompilerParams(
            dimension_semantics=("parallel", "parallel"),
            vmem_limit_bytes=vmem_limit),
    )


# ----------------------------------------------------------------------------
# Conv2d forward (standard path: same-padded conv + bias)
# ----------------------------------------------------------------------------
def conv2d_forward(x_nchw, weight, bias=None, *, compute_dtype=jnp.bfloat16):
    if weight is None:
        # kernel == 0 in the module: no conv, no bias -> passthrough.
        return x_nchw

    cout, cin, k, kw = weight.shape
    assert k == kw and k % 2 == 1, "only odd square kernels (1x1 / 3x3 / ...)"
    pad = k // 2
    n, cin_x, hgt, wid = x_nchw.shape
    assert cin_x == cin

    cin_p, cout_p = _round_up(cin, LANE), _round_up(cout, LANE)
    cdt = compute_dtype

    # Pack weights once: (Cout, Cin, k, k) -> (k*k, Cin_p, Cout_p), compute dtype.
    w9 = jnp.transpose(weight, (2, 3, 1, 0)).reshape(k * k, cin, cout)
    w9 = jnp.pad(w9, ((0, 0), (0, cin_p - cin), (0, cout_p - cout))).astype(cdt)
    if bias is None:
        b_p = jnp.zeros((1, cout_p), jnp.float32)
    else:
        b_p = jnp.pad(bias.astype(jnp.float32), (0, cout_p - cout)).reshape(1, cout_p)

    # Layout glue (single copy): NCHW -> NHWC, lane-pad channels, zero-pad
    # spatially, and store in compute dtype so the kernel streams cdt bytes.
    xt = jnp.transpose(x_nchw, (0, 2, 3, 1))
    xt = jnp.pad(xt, ((0, 0), (pad, pad), (pad, pad), (0, cin_p - cin))).astype(cdt)

    vmem_limit = _vmem_limit_bytes()
    act_item = jnp.dtype(cdt).itemsize
    out_item = jnp.dtype(x_nchw.dtype).itemsize
    th = _pick_row_tile(n=n, hgt=hgt, wid=wid, pad=pad, k=k, cin_p=cin_p,
                        cout_p=cout_p, act_item=act_item, out_item=out_item,
                        vmem_limit=vmem_limit)
    n_h = hgt // th

    common = dict(n=n, n_h=n_h, th=th, hgt=hgt, wid=wid, pad=pad, k=k,
                  cin_p=cin_p, cout_p=cout_p, out_dtype=x_nchw.dtype, cdt=cdt,
                  vmem_limit=vmem_limit)
    try:
        out = _build_call(single_buffer_consts=True, **common)(xt, w9, b_p)
        out = jax.block_until_ready(out)
    except Exception:
        # pl.Buffered(1) not supported on this jax version -> default buffering.
        out = _build_call(single_buffer_consts=False, **common)(xt, w9, b_p)

    out = out.reshape(n, hgt, wid, cout_p)[..., :cout]
    return jnp.transpose(out, (0, 3, 1, 2))


# ----------------------------------------------------------------------------
# Pure-XLA reference (for validation)
# ----------------------------------------------------------------------------
def ref_conv2d(x, w, b):
    pad = w.shape[-1] // 2
    out = jax.lax.conv_general_dilated(
        x, w, window_strides=(1, 1), padding=((pad, pad), (pad, pad)),
        dimension_numbers=("NCHW", "OIHW", "NCHW"),
        precision=jax.lax.Precision.HIGHEST)
    if b is not None:
        out = out + b[None, :, None, None]
    return out


# ----------------------------------------------------------------------------
if __name__ == "__main__":
    N, CIN, COUT, H, W, K = 2, 4, 8, 16, 16, 3

    key = jax.random.PRNGKey(0)
    k1, k2, k3, k4 = jax.random.split(key, 4)
    f32 = jnp.float32
    fan_in = CIN * K * K
    w3 = np.sqrt(1.0 / fan_in) * jax.random.normal(k1, (COUT, CIN, K, K), f32)
    b3 = 0.1 * jax.random.normal(k2, (COUT,), f32)
    x = jax.random.normal(k3, (N, CIN, H, W), f32)

    # 3x3 same-padded conv + bias -------------------------------------------
    ref3 = ref_conv2d(x, w3, b3)

    out32 = conv2d_forward(x, w3, b3, compute_dtype=jnp.float32)
    out32 = jax.block_until_ready(out32)
    assert out32.shape == (N, COUT, H, W), out32.shape
    np.testing.assert_allclose(np.asarray(out32), np.asarray(ref3),
                               rtol=1e-3, atol=1e-3)

    outbf = conv2d_forward(x, w3, b3, compute_dtype=jnp.bfloat16)
    outbf = jax.block_until_ready(outbf)
    np.testing.assert_allclose(np.asarray(outbf), np.asarray(ref3),
                               rtol=5e-2, atol=5e-2)

    # 1x1 conv, no bias (shortcut-style Conv2d) ------------------------------
    w1 = np.sqrt(1.0 / CIN) * jax.random.normal(k4, (COUT, CIN, 1, 1), f32)
    ref1 = ref_conv2d(x, w1, None)
    out1 = conv2d_forward(x, w1, None, compute_dtype=jnp.float32)
    out1 = jax.block_until_ready(out1)
    np.testing.assert_allclose(np.asarray(out1), np.asarray(ref1),
                               rtol=1e-3, atol=1e-3)

    print("KERNEL_OK")
</pallas_src>

<mosaic_0001>
module attributes {stable_mosaic.version = 11 : i64} {
  func.func @_conv_kernel(%arg0: i32, %arg1: i32, %arg2: memref<1x18x18x128xf32, #tpu.memory_space<vmem>>, %arg3: memref<9x128x128xf32, #tpu.memory_space<vmem>>, %arg4: memref<1x128xf32, #tpu.memory_space<vmem>>, %arg5: memref<1x128x128xf32, #tpu.memory_space<vmem>>) attributes {dimension_semantics = [#tpu.dimension_semantics<parallel>, #tpu.dimension_semantics<parallel>], iteration_bounds = array<i64: 2, 2>, scalar_prefetch = 0 : i64, scratch_operands = 0 : i64, tpu.core_type = #tpu.core_type<tc>, window_params = [{transform_indices = @transform_0, window_bounds = array<i64: 1, 18, 18, 128>}, {pipeline_mode = #tpu.pipeline_mode<synchronous>, transform_indices = @transform_1, window_bounds = array<i64: 9, 128, 128>}, {pipeline_mode = #tpu.pipeline_mode<synchronous>, transform_indices = @transform_2, window_bounds = array<i64: 1, 128>}, {transform_indices = @transform_3, window_bounds = array<i64: 1, 128, 128>}]} {
    %c8_i32 = arith.constant 8 : i32
    %0 = arith.muli %arg1, %c8_i32 : i32
    %1 = tpu.assume_multiple %0, 8 : i32
    %c0 = arith.constant 0 : index
    %2 = arith.index_cast %1 : i32 to index
    %c0_0 = arith.constant 0 : index
    %c0_1 = arith.constant 0 : index
    %3 = vector.load %arg2[%c0, %2, %c0_0, %c0_1] : memref<1x18x18x128xf32, #tpu.memory_space<vmem>>, vector<1x10x18x128xf32>
    %4 = vector.shape_cast %3 : vector<1x10x18x128xf32> to vector<10x18x128xf32>
    %cst = arith.constant 0.000000e+00 : f32
    %5 = vector.broadcast %cst : f32 to vector<128x128xf32>
    %6 = vector.extract_strided_slice %4 {offsets = [0, 0, 0], sizes = [10, 16, 128], strides = [1, 1, 1]} : vector<10x18x128xf32> to vector<10x16x128xf32>
    %7 = vector.extract_strided_slice %6 {offsets = [0, 0, 0], sizes = [8, 16, 128], strides = [1, 1, 1]} : vector<10x16x128xf32> to vector<8x16x128xf32>
    %8 = vector.shape_cast %7 : vector<8x16x128xf32> to vector<128x128xf32>
    %c0_2 = arith.constant 0 : index
    %c0_3 = arith.constant 0 : index
    %c0_4 = arith.constant 0 : index
    %9 = vector.load %arg3[%c0_2, %c0_3, %c0_4] : memref<9x128x128xf32, #tpu.memory_space<vmem>>, vector<1x128x128xf32>
    %10 = vector.shape_cast %9 : vector<1x128x128xf32> to vector<128x128xf32>
    %cst_5 = arith.constant dense<0.000000e+00> : vector<128x128xf32>
    %11 = tpu.matmul %8, %10, %cst_5 {dimension_numbers = #tpu.dot_dimension_numbers<[1], [0], [0], [1], [0, 0, 1, 1], [], []>} : vector<128x128xf32>, vector<128x128xf32>, vector<128x128xf32> -> vector<128x128xf32>
    %12 = arith.addf %5, %11 : vector<128x128xf32>
    %13 = vector.extract_strided_slice %6 {offsets = [1, 0, 0], sizes = [8, 16, 128], strides = [1, 1, 1]} : vector<10x16x128xf32> to vector<8x16x128xf32>
    %14 = vector.shape_cast %13 : vector<8x16x128xf32> to vector<128x128xf32>
    %c3 = arith.constant 3 : index
    %c0_6 = arith.constant 0 : index
    %c0_7 = arith.constant 0 : index
    %15 = vector.load %arg3[%c3, %c0_6, %c0_7] : memref<9x128x128xf32, #tpu.memory_space<vmem>>, vector<1x128x128xf32>
    %16 = vector.shape_cast %15 : vector<1x128x128xf32> to vector<128x128xf32>
    %cst_8 = arith.constant dense<0.000000e+00> : vector<128x128xf32>
    %17 = tpu.matmul %14, %16, %cst_8 {dimension_numbers = #tpu.dot_dimension_numbers<[1], [0], [0], [1], [0, 0, 1, 1], [], []>} : vector<128x128xf32>, vector<128x128xf32>, vector<128x128xf32> -> vector<128x128xf32>
    %18 = arith.addf %12, %17 : vector<128x128xf32>
    %19 = vector.extract_strided_slice %6 {offsets = [2, 0, 0], sizes = [8, 16, 128], strides = [1, 1, 1]} : vector<10x16x128xf32> to vector<8x16x128xf32>
    %20 = vector.shape_cast %19 : vector<8x16x128xf32> to vector<128x128xf32>
    %c6 = arith.constant 6 : index
    %c0_9 = arith.constant 0 : index
    %c0_10 = arith.constant 0 : index
    %21 = vector.load %arg3[%c6, %c0_9, %c0_10] : memref<9x128x128xf32, #tpu.memory_space<vmem>>, vector<1x128x128xf32>
    %22 = vector.shape_cast %21 : vector<1x128x128xf32> to vector<128x128xf32>
    %cst_11 = arith.constant dense<0.000000e+00> : vector<128x128xf32>
    %23 = tpu.matmul %20, %22, %cst_11 {dimension_numbers = #tpu.dot_dimension_numbers<[1], [0], [0], [1], [0, 0, 1, 1], [], []>} : vector<128x128xf32>, vector<128x128xf32>, vector<128x128xf32> -> vector<128x128xf32>
    %24 = arith.addf %18, %23 : vector<128x128xf32>
    %25 = vector.extract_strided_slice %4 {offsets = [0, 1, 0], sizes = [10, 16, 128], strides = [1, 1, 1]} : vector<10x18x128xf32> to vector<10x16x128xf32>
    %26 = vector.extract_strided_slice %25 {offsets = [0, 0, 0], sizes = [8, 16, 128], strides = [1, 1, 1]} : vector<10x16x128xf32> to vector<8x16x128xf32>
    %27 = vector.shape_cast %26 : vector<8x16x128xf32> to vector<128x128xf32>
    %c1 = arith.constant 1 : index
    %c0_12 = arith.constant 0 : index
    %c0_13 = arith.constant 0 : index
    %28 = vector.load %arg3[%c1, %c0_12, %c0_13] : memref<9x128x128xf32, #tpu.memory_space<vmem>>, vector<1x128x128xf32>
    %29 = vector.shape_cast %28 : vector<1x128x128xf32> to vector<128x128xf32>
    %cst_14 = arith.constant dense<0.000000e+00> : vector<128x128xf32>
    %30 = tpu.matmul %27, %29, %cst_14 {dimension_numbers = #tpu.dot_dimension_numbers<[1], [0], [0], [1], [0, 0, 1, 1], [], []>} : vector<128x128xf32>, vector<128x128xf32>, vector<128x128xf32> -> vector<128x128xf32>
    %31 = arith.addf %24, %30 : vector<128x128xf32>
    %32 = vector.extract_strided_slice %25 {offsets = [1, 0, 0], sizes = [8, 16, 128], strides = [1, 1, 1]} : vector<10x16x128xf32> to vector<8x16x128xf32>
    %33 = vector.shape_cast %32 : vector<8x16x128xf32> to vector<128x128xf32>
    %c4 = arith.constant 4 : index
    %c0_15 = arith.constant 0 : index
    %c0_16 = arith.constant 0 : index
    %34 = vector.load %arg3[%c4, %c0_15, %c0_16] : memref<9x128x128xf32, #tpu.memory_space<vmem>>, vector<1x128x128xf32>
    %35 = vector.shape_cast %34 : vector<1x128x128xf32> to vector<128x128xf32>
    %cst_17 = arith.constant dense<0.000000e+00> : vector<128x128xf32>
    %36 = tpu.matmul %33, %35, %cst_17 {dimension_numbers = #tpu.dot_dimension_numbers<[1], [0], [0], [1], [0, 0, 1, 1], [], []>} : vector<128x128xf32>, vector<128x128xf32>, vector<128x128xf32> -> vector<128x128xf32>
    %37 = arith.addf %31, %36 : vector<128x128xf32>
    %38 = vector.extract_strided_slice %25 {offsets = [2, 0, 0], sizes = [8, 16, 128], strides = [1, 1, 1]} : vector<10x16x128xf32> to vector<8x16x128xf32>
    %39 = vector.shape_cast %38 : vector<8x16x128xf32> to vector<128x128xf32>
    %c7 = arith.constant 7 : index
    %c0_18 = arith.constant 0 : index
    %c0_19 = arith.constant 0 : index
    %40 = vector.load %arg3[%c7, %c0_18, %c0_19] : memref<9x128x128xf32, #tpu.memory_space<vmem>>, vector<1x128x128xf32>
    %41 = vector.shape_cast %40 : vector<1x128x128xf32> to vector<128x128xf32>
    %cst_20 = arith.constant dense<0.000000e+00> : vector<128x128xf32>
    %42 = tpu.matmul %39, %41, %cst_20 {dimension_numbers = #tpu.dot_dimension_numbers<[1], [0], [0], [1], [0, 0, 1, 1], [], []>} : vector<128x128xf32>, vector<128x128xf32>, vector<128x128xf32> -> vector<128x128xf32>
    %43 = arith.addf %37, %42 : vector<128x128xf32>
    %44 = vector.extract_strided_slice %4 {offsets = [0, 2, 0], sizes = [10, 16, 128], strides = [1, 1, 1]} : vector<10x18x128xf32> to vector<10x16x128xf32>
    %45 = vector.extract_strided_slice %44 {offsets = [0, 0, 0], sizes = [8, 16, 128], strides = [1, 1, 1]} : vector<10x16x128xf32> to vector<8x16x128xf32>
    %46 = vector.shape_cast %45 : vector<8x16x128xf32> to vector<128x128xf32>
    %c2 = arith.constant 2 : index
    %c0_21 = arith.constant 0 : index
    %c0_22 = arith.constant 0 : index
    %47 = vector.load %arg3[%c2, %c0_21, %c0_22] : memref<9x128x128xf32, #tpu.memory_space<vmem>>, vector<1x128x128xf32>
    %48 = vector.shape_cast %47 : vector<1x128x128xf32> to vector<128x128xf32>
    %cst_23 = arith.constant dense<0.000000e+00> : vector<128x128xf32>
    %49 = tpu.matmul %46, %48, %cst_23 {dimension_numbers = #tpu.dot_dimension_numbers<[1], [0], [0], [1], [0, 0, 1, 1], [], []>} : vector<128x128xf32>, vector<128x128xf32>, vector<128x128xf32> -> vector<128x128xf32>
    %50 = arith.addf %43, %49 : vector<128x128xf32>
    %51 = vector.extract_strided_slice %44 {offsets = [1, 0, 0], sizes = [8, 16, 128], strides = [1, 1, 1]} : vector<10x16x128xf32> to vector<8x16x128xf32>
    %52 = vector.shape_cast %51 : vector<8x16x128xf32> to vector<128x128xf32>
    %c5 = arith.constant 5 : index
    %c0_24 = arith.constant 0 : index
    %c0_25 = arith.constant 0 : index
    %53 = vector.load %arg3[%c5, %c0_24, %c0_25] : memref<9x128x128xf32, #tpu.memory_space<vmem>>, vector<1x128x128xf32>
    %54 = vector.shape_cast %53 : vector<1x128x128xf32> to vector<128x128xf32>
    %cst_26 = arith.constant dense<0.000000e+00> : vector<128x128xf32>
    %55 = tpu.matmul %52, %54, %cst_26 {dimension_numbers = #tpu.dot_dimension_numbers<[1], [0], [0], [1], [0, 0, 1, 1], [], []>} : vector<128x128xf32>, vector<128x128xf32>, vector<128x128xf32> -> vector<128x128xf32>
    %56 = arith.addf %50, %55 : vector<128x128xf32>
    %57 = vector.extract_strided_slice %44 {offsets = [2, 0, 0], sizes = [8, 16, 128], strides = [1, 1, 1]} : vector<10x16x128xf32> to vector<8x16x128xf32>
    %58 = vector.shape_cast %57 : vector<8x16x128xf32> to vector<128x128xf32>
    %c8 = arith.constant 8 : index
    %c0_27 = arith.constant 0 : index
    %c0_28 = arith.constant 0 : index
    %59 = vector.load %arg3[%c8, %c0_27, %c0_28] : memref<9x128x128xf32, #tpu.memory_space<vmem>>, vector<1x128x128xf32>
    %60 = vector.shape_cast %59 : vector<1x128x128xf32> to vector<128x128xf32>
    %cst_29 = arith.constant dense<0.000000e+00> : vector<128x128xf32>
    %61 = tpu.matmul %58, %60, %cst_29 {dimension_numbers = #tpu.dot_dimension_numbers<[1], [0], [0], [1], [0, 0, 1, 1], [], []>} : vector<128x128xf32>, vector<128x128xf32>, vector<128x128xf32> -> vector<128x128xf32>
    %62 = arith.addf %56, %61 : vector<128x128xf32>
    %c0_30 = arith.constant 0 : index
    %c0_31 = arith.constant 0 : index
    %63 = vector.load %arg4[%c0_30, %c0_31] : memref<1x128xf32, #tpu.memory_space<vmem>>, vector<1x128xf32>
    %64 = vector.broadcast %63 : vector<1x128xf32> to vector<128x128xf32>
    %65 = arith.addf %62, %64 : vector<128x128xf32>
    %c0_32 = arith.constant 0 : index
    %c0_33 = arith.constant 0 : index
    %c0_34 = arith.constant 0 : index
    %66 = vector.load %arg5[%c0_32, %c0_33, %c0_34] : memref<1x128x128xf32, #tpu.memory_space<vmem>>, vector<1x128x128xf32>
    %67 = vector.shape_cast %66 : vector<1x128x128xf32> to vector<128x128xf32>
    %68 = vector.shape_cast %65 : vector<128x128xf32> to vector<1x128x128xf32>
    tpu.vector_store %arg5[%c0_32, %c0_33, %c0_34], %68 {strides = array<i32>} : memref<1x128x128xf32, #tpu.memory_space<vmem>>, vector<1x128x128xf32>,
    return
  }
  func.func @transform_0(%arg0: i32, %arg1: i32) -> (i32, i32, i32, i32) {
    %c0_i32 = arith.constant 0 : i32
    %c0_i32_0 = arith.constant 0 : i32
    %c0_i32_1 = arith.constant 0 : i32
    %c0_i32_2 = arith.constant 0 : i32
    return %arg0, %c0_i32, %c0_i32_0, %c0_i32_1 : i32, i32, i32, i32
  }
  func.func @transform_1(%arg0: i32, %arg1: i32) -> (i32, i32, i32) {
    %c0_i32 = arith.constant 0 : i32
    %c0_i32_0 = arith.constant 0 : i32
    %c0_i32_1 = arith.constant 0 : i32
    %c0_i32_2 = arith.constant 0 : i32
    return %c0_i32, %c0_i32_0, %c0_i32_1 : i32, i32, i32
  }
  func.func @transform_2(%arg0: i32, %arg1: i32) -> (i32, i32) {
    %c0_i32 = arith.constant 0 : i32
    %c0_i32_0 = arith.constant 0 : i32
    %c0_i32_1 = arith.constant 0 : i32
    return %c0_i32, %c0_i32_0 : i32, i32
  }
  func.func @transform_3(%arg0: i32, %arg1: i32) -> (i32, i32, i32) {
    %c0_i32 = arith.constant 0 : i32
    %c0_i32_0 = arith.constant 0 : i32
    return %arg0, %arg1, %c0_i32 : i32, i32, i32
  }
}

module attributes {stable_mosaic.version = 11 : i64} {
  func.func @_conv_kernel(%arg0: i32, %arg1: i32, %arg2: memref<1x18x18x128xf32, #tpu.memory_space<vmem>>, %arg3: memref<9x128x128xf32, #tpu.memory_space<vmem>>, %arg4: memref<1x128xf32, #tpu.memory_space<vmem>>, %arg5: memref<1x128x128xf32, #tpu.memory_space<vmem>>) attributes {dimension_semantics = [#tpu.dimension_semantics<parallel>, #tpu.dimension_semantics<parallel>], iteration_bounds = array<i64: 2, 2>, scalar_prefetch = 0 : i64, scratch_operands = 0 : i64, tpu.core_type = #tpu.core_type<tc>, window_params = [{transform_indices = @transform_0, window_bounds = array<i64: 1, 18, 18, 128>}, {pipeline_mode = #tpu.pipeline_mode<synchronous>, transform_indices = @transform_1, window_bounds = array<i64: 9, 128, 128>}, {pipeline_mode = #tpu.pipeline_mode<synchronous>, transform_indices = @transform_2, window_bounds = array<i64: 1, 128>}, {transform_indices = @transform_3, window_bounds = array<i64: 1, 128, 128>}]} {
    %c8_i32 = arith.constant 8 : i32
    %0 = arith.muli %arg1, %c8_i32 : i32
    %1 = tpu.assume_multiple %0, 8 : i32
    %c0 = arith.constant 0 : index
    %2 = arith.index_cast %1 : i32 to index
    %c0_0 = arith.constant 0 : index
    %c0_1 = arith.constant 0 : index
    %3 = vector.load %arg2[%c0, %2, %c0_0, %c0_1] : memref<1x18x18x128xf32, #tpu.memory_space<vmem>>, vector<1x10x18x128xf32>
    %4 = vector.shape_cast %3 : vector<1x10x18x128xf32> to vector<10x18x128xf32>
    %cst = arith.constant 0.000000e+00 : f32
    %5 = vector.broadcast %cst : f32 to vector<128x128xf32>
    %6 = vector.extract_strided_slice %4 {offsets = [0, 0, 0], sizes = [10, 16, 128], strides = [1, 1, 1]} : vector<10x18x128xf32> to vector<10x16x128xf32>
    %7 = vector.extract_strided_slice %6 {offsets = [0, 0, 0], sizes = [8, 16, 128], strides = [1, 1, 1]} : vector<10x16x128xf32> to vector<8x16x128xf32>
    %8 = vector.shape_cast %7 : vector<8x16x128xf32> to vector<128x128xf32>
    %c0_2 = arith.constant 0 : index
    %c0_3 = arith.constant 0 : index
    %c0_4 = arith.constant 0 : index
    %9 = vector.load %arg3[%c0_2, %c0_3, %c0_4] : memref<9x128x128xf32, #tpu.memory_space<vmem>>, vector<1x128x128xf32>
    %10 = vector.shape_cast %9 : vector<1x128x128xf32> to vector<128x128xf32>
    %cst_5 = arith.constant dense<0.000000e+00> : vector<128x128xf32>
    %11 = tpu.matmul %8, %10, %cst_5 {dimension_numbers = #tpu.dot_dimension_numbers<[1], [0], [0], [1], [0, 0, 1, 1], [], []>} : vector<128x128xf32>, vector<128x128xf32>, vector<128x128xf32> -> vector<128x128xf32>
    %12 = arith.addf %5, %11 : vector<128x128xf32>
    %13 = vector.extract_strided_slice %6 {offsets = [1, 0, 0], sizes = [8, 16, 128], strides = [1, 1, 1]} : vector<10x16x128xf32> to vector<8x16x128xf32>
    %14 = vector.shape_cast %13 : vector<8x16x128xf32> to vector<128x128xf32>
    %c3 = arith.constant 3 : index
    %c0_6 = arith.constant 0 : index
    %c0_7 = arith.constant 0 : index
    %15 = vector.load %arg3[%c3, %c0_6, %c0_7] : memref<9x128x128xf32, #tpu.memory_space<vmem>>, vector<1x128x128xf32>
    %16 = vector.shape_cast %15 : vector<1x128x128xf32> to vector<128x128xf32>
    %cst_8 = arith.constant dense<0.000000e+00> : vector<128x128xf32>
    %17 = tpu.matmul %14, %16, %cst_8 {dimension_numbers = #tpu.dot_dimension_numbers<[1], [0], [0], [1], [0, 0, 1, 1], [], []>} : vector<128x128xf32>, vector<128x128xf32>, vector<128x128xf32> -> vector<128x128xf32>
    %18 = arith.addf %12, %17 : vector<128x128xf32>
    %19 = vector.extract_strided_slice %6 {offsets = [2, 0, 0], sizes = [8, 16, 128], strides = [1, 1, 1]} : vector<10x16x128xf32> to vector<8x16x128xf32>
    %20 = vector.shape_cast %19 : vector<8x16x128xf32> to vector<128x128xf32>
    %c6 = arith.constant 6 : index
    %c0_9 = arith.constant 0 : index
    %c0_10 = arith.constant 0 : index
    %21 = vector.load %arg3[%c6, %c0_9, %c0_10] : memref<9x128x128xf32, #tpu.memory_space<vmem>>, vector<1x128x128xf32>
    %22 = vector.shape_cast %21 : vector<1x128x128xf32> to vector<128x128xf32>
    %cst_11 = arith.constant dense<0.000000e+00> : vector<128x128xf32>
    %23 = tpu.matmul %20, %22, %cst_11 {dimension_numbers = #tpu.dot_dimension_numbers<[1], [0], [0], [1], [0, 0, 1, 1], [], []>} : vector<128x128xf32>, vector<128x128xf32>, vector<128x128xf32> -> vector<128x128xf32>
    %24 = arith.addf %18, %23 : vector<128x128xf32>
    %25 = vector.extract_strided_slice %4 {offsets = [0, 1, 0], sizes = [10, 16, 128], strides = [1, 1, 1]} : vector<10x18x128xf32> to vector<10x16x128xf32>
    %26 = vector.extract_strided_slice %25 {offsets = [0, 0, 0], sizes = [8, 16, 128], strides = [1, 1, 1]} : vector<10x16x128xf32> to vector<8x16x128xf32>
    %27 = vector.shape_cast %26 : vector<8x16x128xf32> to vector<128x128xf32>
    %c1 = arith.constant 1 : index
    %c0_12 = arith.constant 0 : index
    %c0_13 = arith.constant 0 : index
    %28 = vector.load %arg3[%c1, %c0_12, %c0_13] : memref<9x128x128xf32, #tpu.memory_space<vmem>>, vector<1x128x128xf32>
    %29 = vector.shape_cast %28 : vector<1x128x128xf32> to vector<128x128xf32>
    %cst_14 = arith.constant dense<0.000000e+00> : vector<128x128xf32>
    %30 = tpu.matmul %27, %29, %cst_14 {dimension_numbers = #tpu.dot_dimension_numbers<[1], [0], [0], [1], [0, 0, 1, 1], [], []>} : vector<128x128xf32>, vector<128x128xf32>, vector<128x128xf32> -> vector<128x128xf32>
    %31 = arith.addf %24, %30 : vector<128x128xf32>
    %32 = vector.extract_strided_slice %25 {offsets = [1, 0, 0], sizes = [8, 16, 128], strides = [1, 1, 1]} : vector<10x16x128xf32> to vector<8x16x128xf32>
    %33 = vector.shape_cast %32 : vector<8x16x128xf32> to vector<128x128xf32>
    %c4 = arith.constant 4 : index
    %c0_15 = arith.constant 0 : index
    %c0_16 = arith.constant 0 : index
    %34 = vector.load %arg3[%c4, %c0_15, %c0_16] : memref<9x128x128xf32, #tpu.memory_space<vmem>>, vector<1x128x128xf32>
    %35 = vector.shape_cast %34 : vector<1x128x128xf32> to vector<128x128xf32>
    %cst_17 = arith.constant dense<0.000000e+00> : vector<128x128xf32>
    %36 = tpu.matmul %33, %35, %cst_17 {dimension_numbers = #tpu.dot_dimension_numbers<[1], [0], [0], [1], [0, 0, 1, 1], [], []>} : vector<128x128xf32>, vector<128x128xf32>, vector<128x128xf32> -> vector<128x128xf32>
    %37 = arith.addf %31, %36 : vector<128x128xf32>
    %38 = vector.extract_strided_slice %25 {offsets = [2, 0, 0], sizes = [8, 16, 128], strides = [1, 1, 1]} : vector<10x16x128xf32> to vector<8x16x128xf32>
    %39 = vector.shape_cast %38 : vector<8x16x128xf32> to vector<128x128xf32>
    %c7 = arith.constant 7 : index
    %c0_18 = arith.constant 0 : index
    %c0_19 = arith.constant 0 : index
    %40 = vector.load %arg3[%c7, %c0_18, %c0_19] : memref<9x128x128xf32, #tpu.memory_space<vmem>>, vector<1x128x128xf32>
    %41 = vector.shape_cast %40 : vector<1x128x128xf32> to vector<128x128xf32>
    %cst_20 = arith.constant dense<0.000000e+00> : vector<128x128xf32>
    %42 = tpu.matmul %39, %41, %cst_20 {dimension_numbers = #tpu.dot_dimension_numbers<[1], [0], [0], [1], [0, 0, 1, 1], [], []>} : vector<128x128xf32>, vector<128x128xf32>, vector<128x128xf32> -> vector<128x128xf32>
    %43 = arith.addf %37, %42 : vector<128x128xf32>
    %44 = vector.extract_strided_slice %4 {offsets = [0, 2, 0], sizes = [10, 16, 128], strides = [1, 1, 1]} : vector<10x18x128xf32> to vector<10x16x128xf32>
    %45 = vector.extract_strided_slice %44 {offsets = [0, 0, 0], sizes = [8, 16, 128], strides = [1, 1, 1]} : vector<10x16x128xf32> to vector<8x16x128xf32>
    %46 = vector.shape_cast %45 : vector<8x16x128xf32> to vector<128x128xf32>
    %c2 = arith.constant 2 : index
    %c0_21 = arith.constant 0 : index
    %c0_22 = arith.constant 0 : index
    %47 = vector.load %arg3[%c2, %c0_21, %c0_22] : memref<9x128x128xf32, #tpu.memory_space<vmem>>, vector<1x128x128xf32>
    %48 = vector.shape_cast %47 : vector<1x128x128xf32> to vector<128x128xf32>
    %cst_23 = arith.constant dense<0.000000e+00> : vector<128x128xf32>
    %49 = tpu.matmul %46, %48, %cst_23 {dimension_numbers = #tpu.dot_dimension_numbers<[1], [0], [0], [1], [0, 0, 1, 1], [], []>} : vector<128x128xf32>, vector<128x128xf32>, vector<128x128xf32> -> vector<128x128xf32>
    %50 = arith.addf %43, %49 : vector<128x128xf32>
    %51 = vector.extract_strided_slice %44 {offsets = [1, 0, 0], sizes = [8, 16, 128], strides = [1, 1, 1]} : vector<10x16x128xf32> to vector<8x16x128xf32>
    %52 = vector.shape_cast %51 : vector<8x16x128xf32> to vector<128x128xf32>
    %c5 = arith.constant 5 : index
    %c0_24 = arith.constant 0 : index
    %c0_25 = arith.constant 0 : index
    %53 = vector.load %arg3[%c5, %c0_24, %c0_25] : memref<9x128x128xf32, #tpu.memory_space<vmem>>, vector<1x128x128xf32>
    %54 = vector.shape_cast %53 : vector<1x128x128xf32> to vector<128x128xf32>
    %cst_26 = arith.constant dense<0.000000e+00> : vector<128x128xf32>
    %55 = tpu.matmul %52, %54, %cst_26 {dimension_numbers = #tpu.dot_dimension_numbers<[1], [0], [0], [1], [0, 0, 1, 1], [], []>} : vector<128x128xf32>, vector<128x128xf32>, vector<128x128xf32> -> vector<128x128xf32>
    %56 = arith.addf %50, %55 : vector<128x128xf32>
    %57 = vector.extract_strided_slice %44 {offsets = [2, 0, 0], sizes = [8, 16, 128], strides = [1, 1, 1]} : vector<10x16x128xf32> to vector<8x16x128xf32>
    %58 = vector.shape_cast %57 : vector<8x16x128xf32> to vector<128x128xf32>
    %c8 = arith.constant 8 : index
    %c0_27 = arith.constant 0 : index
    %c0_28 = arith.constant 0 : index
    %59 = vector.load %arg3[%c8, %c0_27, %c0_28] : memref<9x128x128xf32, #tpu.memory_space<vmem>>, vector<1x128x128xf32>
    %60 = vector.shape_cast %59 : vector<1x128x128xf32> to vector<128x128xf32>
    %cst_29 = arith.constant dense<0.000000e+00> : vector<128x128xf32>
    %61 = tpu.matmul %58, %60, %cst_29 {dimension_numbers = #tpu.dot_dimension_numbers<[1], [0], [0], [1], [0, 0, 1, 1], [], []>} : vector<128x128xf32>, vector<128x128xf32>, vector<128x128xf32> -> vector<128x128xf32>
    %62 = arith.addf %56, %61 : vector<128x128xf32>
    %c0_30 = arith.constant 0 : index
    %c0_31 = arith.constant 0 : index
    %63 = vector.load %arg4[%c0_30, %c0_31] : memref<1x128xf32, #tpu.memory_space<vmem>>, vector<1x128xf32>
    %64 = vector.broadcast %63 : vector<1x128xf32> to vector<128x128xf32>
    %65 = arith.addf %62, %64 : vector<128x128xf32>
    %c0_32 = arith.constant 0 : index
    %c0_33 = arith.constant 0 : index
    %c0_34 = arith.constant 0 : index
    %66 = vector.load %arg5[%c0_32, %c0_33, %c0_34] : memref<1x128x128xf32, #tpu.memory_space<vmem>>, vector<1x128x128xf32>
    %67 = vector.shape_cast %66 : vector<1x128x128xf32> to vector<128x128xf32>
    %68 = vector.shape_cast %65 : vector<128x128xf32> to vector<1x128x128xf32>
    tpu.vector_store %arg5[%c0_32, %c0_33, %c0_34], %68 {strides = array<i32>} : memref<1x128x128xf32, #tpu.memory_space<vmem>>, vector<1x128x128xf32>,
    return
  }
  func.func @transform_0(%arg0: i32, %arg1: i32) -> (i32, i32, i32, i32) {
    %c0_i32 = arith.constant 0 : i32
    %c0_i32_0 = arith.constant 0 : i32
    %c0_i32_1 = arith.constant 0 : i32
    %c0_i32_2 = arith.constant 0 : i32
    return %arg0, %c0_i32, %c0_i32_0, %c0_i32_1 : i32, i32, i32, i32
  }
  func.func @transform_1(%arg0: i32, %arg1: i32) -> (i32, i32, i32) {
    %c0_i32 = arith.constant 0 : i32
    %c0_i32_0 = arith.constant 0 : i32
    %c0_i32_1 = arith.constant 0 : i32
    %c0_i32_2 = arith.constant 0 : i32
    return %c0_i32, %c0_i32_0, %c0_i32_1 : i32, i32, i32
  }
  func.func @transform_2(%arg0: i32, %arg1: i32) -> (i32, i32) {
    %c0_i32 = arith.constant 0 : i32
    %c0_i32_0 = arith.constant 0 : i32
    %c0_i32_1 = arith.constant 0 : i32
    return %c0_i32, %c0_i32_0 : i32, i32
  }
  func.func @transform_3(%arg0: i32, %arg1: i32) -> (i32, i32, i32) {
    %c0_i32 = arith.constant 0 : i32
    %c0_i32_0 = arith.constant 0 : i32
    return %arg0, %arg1, %c0_i32 : i32, i32, i32
  }
}

</mosaic_0001>

<llo_original>
// kernel: tpu_custom_call.1
$region0: #{tpu_custom_call.1}
  #allocation0 [shape = 'u32[]', space=smem, size = 0x4, offset = 0x4, fixed_abs, tag = 'smem constant byte address 0x4 - core index']
  #allocation1 [shape = 'u32[144,128]{1,0:T(1,128)}', space=vmem, size = 0x12000, scoped, tag = 'internal scratch']
  %s0 = inlined_call_operand.vmem [shape: f32[2,18,18,128], index: 0, kind: input, shape index: {}]
  %s1 = inlined_call_operand.vmem [shape: f32[9,128,128], index: 1, kind: input, shape index: {}]
  %s2 = inlined_call_operand.vmem [shape: f32[1,128], index: 2, kind: input, shape index: {}]
  %s3 = inlined_call_operand.hbm [shape: f32[2,256,128], index: 3, kind: output, shape index: {}]
  %s4 = sld [smem:[#allocation0]]
  $region45: #{tpu_custom_call.1} parent=0
    _
  %s6 = ssub.s32 1, %s4
  %s7 = scalar_select 0, %s6, %s4
  $region1: #{tpu_custom_call.1} parent=0
    #allocation2 [shape = 'u8[131072]{0}', space=vmem, size = 0x20000, scoped, tag = 'output window, operand 0']
    #allocation3 [shape = 's32[2]{0}', space=sflag, size = 0x8, scoped, tag = 'scoped memory for tpu_custom_call.1']
    %8 = vsyncpa [#allocation3], 0
    %s9 = scalar_lea.sflag [#allocation3], 1
    %10 = vsyncpa %s9, 0
    loop: start=0, step=1, limit=6
    $region2: #{tpu_custom_call.1} parent=1 // loop_pre_header
      _
    $region3: #{tpu_custom_call.1} parent=1 // loop_header
      %s12 = sphi 0, %s16
      %p13 = scmp.ge.s32.totalorder %s12, 6
      %s19 = sphi 0, %s31
      %s20 = sphi 0, %s27
      %s21 = sphi 0, %s19
      %s22 = sphi 0, %s20
      %s23 = sphi 0, %s21
      %s24 = sphi 0, %s22
      %s34 = sphi 0, %s36
      %s37 = sphi 0, %s34
      %s38 = sphi 0, %s37
      %s54 = sphi 0, %s38
      %s58 = sphi 0, %s58
      %s60 = sphi 0, %s58
      %s61 = sphi 0, %s60
      %s75 = sphi 0, %s61
      %s79 = sphi 0, %s79
      %s81 = sphi 0, %s79
      %s82 = sphi 0, %s81
      %s96 = sphi 0, %s82
      %s104 = sphi 0, %s106
      %s107 = sphi 0, %s104
      %s108 = sphi 0, %s107
      %s124 = sphi 0, %s108
    $region4: #{tpu_custom_call.1} parent=1 // loop_header_branch
      %15 = sbr.rel (%p13) target = $region8
    $region5: #{tpu_custom_call.1} parent=1 // loop_body
      %s17 = ssub.s32 %s12, 1
      %s18 = ssub.s32 %s12, 2
      %s25 = sadd.s32 1, %s20
      %p26 = scmp.ge.s32.totalorder %s25, 2
      %s27 = scalar_select %p26, 0, %s25
      %s28 = sadd.s32 1, %s19
      %s29 = scalar_select %p26, %s28, %s19
      %p30 = scmp.ge.s32.totalorder %s29, 2
      %s31 = scalar_select %p30, 0, %s29
      %s32 = ssub.s32 %s19, %s31
      %p33 = scmp.eq.s32.totalorder %s32, 0
      %s35 = sadd.s32 %s34, 1
      %s36 = scalar_select %p33, %s34, %s35
      %p39 = pneg %p33
      %p40 = scmp.eq.s32.totalorder %s12, 3
      %p41 = por %p39, %p40
      %p42 = scmp.ne.s32.totalorder %s34, %s37
      %p43 = scmp.eq.s32.totalorder %s12, 0
      %p44 = por %p42, %p43
      %p45 = scmp.ne.s32.totalorder %s34, %s37
      %p46 = scmp.eq.s32.totalorder %s17, 3
      %p47 = por %p45, %p46
      %p48 = scmp.ne.s32.totalorder %s37, %s38
      %p49 = scmp.eq.s32.totalorder %s17, 0
      %p50 = por %p48, %p49
      %p51 = scmp.ne.s32.totalorder %s37, %s38
      %p52 = scmp.eq.s32.totalorder %s18, 3
      %p53 = por %p51, %p52
      %p55 = scmp.ne.s32.totalorder %s38, %s54
      %p56 = scmp.eq.s32.totalorder %s18, 0
      %p57 = por %p55, %p56
      %s59 = sadd.s32 %s58, 1
      %p62 = scmp.eq.s32.totalorder %s12, 3
      %p63 = scmp.ne.s32.totalorder %s58, %s60
      %p64 = scmp.eq.s32.totalorder %s12, 0
      %p65 = por %p63, %p64
      %p66 = scmp.ne.s32.totalorder %s58, %s60
      %p67 = scmp.eq.s32.totalorder %s17, 3
      %p68 = por %p66, %p67
      %p69 = scmp.ne.s32.totalorder %s60, %s61
      %p70 = scmp.eq.s32.totalorder %s17, 0
      %p71 = por %p69, %p70
      %p72 = scmp.ne.s32.totalorder %s60, %s61
      %p73 = scmp.eq.s32.totalorder %s18, 3
      %p74 = por %p72, %p73
      %p76 = scmp.ne.s32.totalorder %s61, %s75
      %p77 = scmp.eq.s32.totalorder %s18, 0
      %p78 = por %p76, %p77
      %s80 = sadd.s32 %s79, 1
      %p83 = scmp.eq.s32.totalorder %s12, 3
      %p84 = scmp.ne.s32.totalorder %s79, %s81
      %p85 = scmp.eq.s32.totalorder %s12, 0
      %p86 = por %p84, %p85
      %p87 = scmp.ne.s32.totalorder %s79, %s81
      %p88 = scmp.eq.s32.totalorder %s17, 3
      %p89 = por %p87, %p88
      %p90 = scmp.ne.s32.totalorder %s81, %s82
      %p91 = scmp.eq.s32.totalorder %s17, 0
      %p92 = por %p90, %p91
      %p93 = scmp.ne.s32.totalorder %s81, %s82
      %p94 = scmp.eq.s32.totalorder %s18, 3
      %p95 = por %p93, %p94
      %p97 = scmp.ne.s32.totalorder %s82, %s96
      %p98 = scmp.eq.s32.totalorder %s18, 0
      %p99 = por %p97, %p98
      %s100 = ssub.s32 %s19, %s31
      %s101 = ssub.s32 %s20, %s27
      %s102 = sor.u32 %s100, %s101
      %p103 = scmp.eq.s32.totalorder %s102, 0
      %s105 = sadd.s32 %s104, 1
      %s106 = scalar_select %p103, %s104, %s105
      %p109 = pneg %p103
      %p110 = scmp.eq.s32.totalorder %s12, 3
      %p111 = por %p109, %p110
      %p112 = scmp.ne.s32.totalorder %s104, %s107
      %p113 = scmp.eq.s32.totalorder %s12, 0
      %p114 = por %p112, %p113
      %p115 = scmp.ne.s32.totalorder %s104, %s107
      %p116 = scmp.eq.s32.totalorder %s17, 3
      %p117 = por %p115, %p116
      %p118 = scmp.ne.s32.totalorder %s107, %s108
      %p119 = scmp.eq.s32.totalorder %s17, 0
      %p120 = por %p118, %p119
      %p121 = scmp.ne.s32.totalorder %s107, %s108
      %p122 = scmp.eq.s32.totalorder %s18, 3
      %p123 = por %p121, %p122
      %p125 = scmp.ne.s32.totalorder %s108, %s124
      %p126 = scmp.eq.s32.totalorder %s18, 0
      %p127 = por %p125, %p126
      %p128 = scmp.le.s32.totalorder 1, %s12
      %p129 = scmp.lt.s32.totalorder %s12, 5
      %p130 = pnand %p128, %p129
      %p131 = pneg %p130
      // Predicated region
      $region9: #{tpu_custom_call.1} parent=5 // pred_check
        _
      $region10: #{tpu_custom_call.1} parent=5 // pred_check_branch
        %133 = sbr.rel (%p130) target = $region12
      $region11: #{tpu_custom_call.1} parent=5 // pred_region
        %s134 = ssub.s32 %s12, 1
        // Predicated region
        $region13: #{tpu_custom_call.1} parent=11 // pred_check
          %p135 = pneg %p71
        $region14: #{tpu_custom_call.1} parent=11 // pred_check_branch
          %137 = sbr.rel (%p135) target = $region16
        $region15: #{tpu_custom_call.1} parent=11 // pred_region
          _
        $region16: #{tpu_custom_call.1} parent=11 // pred_fallthru
          _
        // Predicated region
        $region17: #{tpu_custom_call.1} parent=11 // pred_check
          %p138 = pneg %p92
        $region18: #{tpu_custom_call.1} parent=11 // pred_check_branch
          %140 = sbr.rel (%p138) target = $region20
        $region19: #{tpu_custom_call.1} parent=11 // pred_region
          _
        $region20: #{tpu_custom_call.1} parent=11 // pred_fallthru
          _
      $region12: #{tpu_custom_call.1} parent=5 // pred_fallthru
        _
      %p141 = scmp.lt.s32.totalorder %s12, 4
      // Predicated region
      $region21: #{tpu_custom_call.1} parent=5 // pred_check
        %p142 = pneg %p141
      $region22: #{tpu_custom_call.1} parent=5 // pred_check_branch
        %144 = sbr.rel (%p142) target = $region24
      $region23: #{tpu_custom_call.1} parent=5 // pred_region
        // Predicated region
        $region25: #{tpu_custom_call.1} parent=23 // pred_check
          %p145 = pneg %p44
        $region26: #{tpu_custom_call.1} parent=23 // pred_check_branch
          %147 = sbr.rel (%p145) target = $region28
        $region27: #{tpu_custom_call.1} parent=23 // pred_region
          %p148 = scmp.lt.s32.totalorder %s19, 1
          %s149 = scalar_select %p148, %s19, 1
          %s150 = smul.addr %s149, 54
          %s151 = smul.addr %s150, 8
          %s152 = scalar_lea.vmem %s0, %s151
        $region28: #{tpu_custom_call.1} parent=23 // pred_fallthru
          _
      $region24: #{tpu_custom_call.1} parent=5 // pred_fallthru
        _
      %p153 = scmp.le.s32.totalorder 1, %s12
      %p154 = scmp.lt.s32.totalorder %s12, 5
      %p155 = pnand %p153, %p154
      %p156 = pneg %p155
      // Predicated region
      $region29: #{tpu_custom_call.1} parent=5 // pred_check
        _
      $region30: #{tpu_custom_call.1} parent=5 // pred_check_branch
        %158 = sbr.rel (%p155) target = $region32
      $region31: #{tpu_custom_call.1} parent=5 // pred_region
        %s159 = ssub.s32 %s12, 1
        %p160 = scmp.lt.s32.totalorder %s21, 1
        %s161 = scalar_select %p160, %s21, 1
        %s162 = smul.addr %s161, 54
        %s163 = smul.addr %s162, 8
        %s164 = scalar_lea.vmem %s0, %s163
        %p165 = pneg %p50
        %p166 = pneg %p47
        %p167 = pneg %p71
        %p168 = pneg %p68
        %p169 = pneg %p92
        %p170 = pneg %p89
        %p171 = pneg %p120
        %p172 = pneg %p117
        %s173 = sand.u32 %s107, 1
        %s174 = scalar_lea.sflag [#allocation3], %s173
        %s175 = sand.u32 %s107, 1
        %s176 = smul.addr %s175, 128
        %s177 = scalar_lea.vmem [#allocation2], %s176
        %p178 = scmp.lt.s32.totalorder %s21, 1
        %s179 = scalar_select %p178, %s21, 1
        %s180 = smul.addr %s179, 54
        %s181 = smul.addr %s180, 8
        %s182 = scalar_lea.vmem %s0, %s181
        %s183 = smul.u32 16, %s22
        %s184 = smul.u32 %s22, 8
        %s185 = smul.u32 %s184, 24
        %s186 = scalar_lea.vmem %s182, %s185
        %v187 = vld [vmem:[%s186] sm:$0xff]
        %v188 = vld [vmem:[%s186 + $0x8] sm:$0xff]
        %v189 = vld [vmem:[%s186 + $0x10] sm:$0x3]
        %v190 = vld [vmem:[%s186 + $0x18] sm:$0xff]
        %v191 = vld [vmem:[%s186 + $0x20] sm:$0xff]
        %v192 = vld [vmem:[%s186 + $0x28] sm:$0x3]
        %v193 = vld [vmem:[%s186 + $0x30] sm:$0xff]
        %v194 = vld [vmem:[%s186 + $0x38] sm:$0xff]
        %v195 = vld [vmem:[%s186 + $0x40] sm:$0x3]
        %v196 = vld [vmem:[%s186 + $0x48] sm:$0xff]
        %v197 = vld [vmem:[%s186 + $0x50] sm:$0xff]
        %v198 = vld [vmem:[%s186 + $0x58] sm:$0x3]
        %v199 = vld [vmem:[%s186 + $0x60] sm:$0xff]
        %v200 = vld [vmem:[%s186 + $0x68] sm:$0xff]
        %v201 = vld [vmem:[%s186 + $0x70] sm:$0x3]
        %v202 = vld [vmem:[%s186 + $0x78] sm:$0xff]
        %v203 = vld [vmem:[%s186 + $0x80] sm:$0xff]
        %v204 = vld [vmem:[%s186 + $0x88] sm:$0x3]
        %v205 = vld [vmem:[%s186 + $0x90] sm:$0xff]
        %v206 = vld [vmem:[%s186 + $0x98] sm:$0xff]
        %v207 = vld [vmem:[%s186 + $0xa0] sm:$0x3]
        %v208 = vld [vmem:[%s186 + $0xa8] sm:$0xff]
        %v209 = vld [vmem:[%s186 + $0xb0] sm:$0xff]
        %v210 = vld [vmem:[%s186 + $0xb8] sm:$0x3]
        %v211 = vld [vmem:[%s186 + $0xc0] sm:$0xff]
        %v212 = vld [vmem:[%s186 + $0xc8] sm:$0xff]
        %v213 = vld [vmem:[%s186 + $0xd0] sm:$0x3]
        %v214 = vld [vmem:[%s186 + $0xd8] sm:$0xff]
        %v215 = vld [vmem:[%s186 + $0xe0] sm:$0xff]
        %v216 = vld [vmem:[%s186 + $0xe8] sm:$0x3]
        %v217 = vld [vmem:[%s1] sm:$0xff]
        %v218 = vld [vmem:[%s1 + $0x8] sm:$0xff]
        %v219 = vld [vmem:[%s1 + $0x10] sm:$0xff]
        %v220 = vld [vmem:[%s1 + $0x18] sm:$0xff]
        %v221 = vld [vmem:[%s1 + $0x20] sm:$0xff]
        %v222 = vld [vmem:[%s1 + $0x28] sm:$0xff]
        %v223 = vld [vmem:[%s1 + $0x30] sm:$0xff]
        %v224 = vld [vmem:[%s1 + $0x38] sm:$0xff]
        %v225 = vld [vmem:[%s1 + $0x40] sm:$0xff]
        %v226 = vld [vmem:[%s1 + $0x48] sm:$0xff]
        %v227 = vld [vmem:[%s1 + $0x50] sm:$0xff]
        %v228 = vld [vmem:[%s1 + $0x58] sm:$0xff]
        %v229 = vld [vmem:[%s1 + $0x60] sm:$0xff]
        %v230 = vld [vmem:[%s1 + $0x68] sm:$0xff]
        %v231 = vld [vmem:[%s1 + $0x70] sm:$0xff]
        %v232 = vld [vmem:[%s1 + $0x78] sm:$0xff]
        %s233 = scalar_lea.vmem %s1, 384
        %v234 = vld [vmem:[%s233] sm:$0xff]
        %v235 = vld [vmem:[%s233 + $0x8] sm:$0xff]
        %v236 = vld [vmem:[%s233 + $0x10] sm:$0xff]
        %v237 = vld [vmem:[%s233 + $0x18] sm:$0xff]
        %v238 = vld [vmem:[%s233 + $0x20] sm:$0xff]
        %v239 = vld [vmem:[%s233 + $0x28] sm:$0xff]
        %v240 = vld [vmem:[%s233 + $0x30] sm:$0xff]
        %v241 = vld [vmem:[%s233 + $0x38] sm:$0xff]
        %v242 = vld [vmem:[%s233 + $0x40] sm:$0xff]
        %v243 = vld [vmem:[%s233 + $0x48] sm:$0xff]
        %v244 = vld [vmem:[%s233 + $0x50] sm:$0xff]
        %v245 = vld [vmem:[%s233 + $0x58] sm:$0xff]
        %v246 = vld [vmem:[%s233 + $0x60] sm:$0xff]
        %v247 = vld [vmem:[%s233 + $0x68] sm:$0xff]
        %v248 = vld [vmem:[%s233 + $0x70] sm:$0xff]
        %v249 = vld [vmem:[%s233 + $0x78] sm:$0xff]
        %250 = vmatprep.subr.mxu0 0.0
        %251 = vmatpush1.msra.mxu0 %v249
        %252 = vmatprep.subr.mxu0 0.0
        %253 = vmatpush1.msra.mxu0 %v248
        %254 = vmatprep.subr.mxu0 0.0
        %255 = vmatpush1.msra.mxu0 %v247
        %256 = vmatprep.subr.mxu0 0.0
        %257 = vmatpush1.msra.mxu0 %v246
        %258 = vmatprep.subr.mxu0 0.0
        %259 = vmatpush1.msra.mxu0 %v245
        %260 = vmatprep.subr.mxu0 0.0
        %261 = vmatpush1.msra.mxu0 %v244
        %262 = vmatprep.subr.mxu0 0.0
        %263 = vmatpush1.msra.mxu0 %v243
        %264 = vmatprep.subr.mxu0 0.0
        %265 = vmatpush1.msra.mxu0 %v242
        %266 = vmatprep.subr.mxu0 0.0
        %267 = vmatpush1.msra.mxu0 %v241
        %268 = vmatprep.subr.mxu0 0.0
        %269 = vmatpush1.msra.mxu0 %v240
        %270 = vmatprep.subr.mxu0 0.0
        %271 = vmatpush1.msra.mxu0 %v239
        %272 = vmatprep.subr.mxu0 0.0
        %273 = vmatpush1.msra.mxu0 %v238
        %274 = vmatprep.subr.mxu0 0.0
        %275 = vmatpush1.msra.mxu0 %v237
        %276 = vmatprep.subr.mxu0 0.0
        %277 = vmatpush1.msra.mxu0 %v236
        %278 = vmatprep.subr.mxu0 0.0
        %279 = vmatpush1.msra.mxu0 %v235
        %280 = vmatprep.subr.mxu0 0.0
        %281 = vmatpush1.msra.mxu0 %v234
        %282 = vmatprep.subr.mxu0 0.0
        %283 = vmatpush2.msra.mxu0 0.0
        %284 = vmatprep.subr.mxu0 0.0
        %285 = vmatpush2.msra.mxu0 0.0
        %286 = vmatprep.subr.mxu0 0.0
        %287 = vmatpush2.msra.mxu0 0.0
        %288 = vmatprep.subr.mxu0 0.0
        %289 = vmatpush2.msra.mxu0 0.0
        %290 = vmatprep.subr.mxu0 0.0
        %291 = vmatpush2.msra.mxu0 0.0
        %292 = vmatprep.subr.mxu0 0.0
        %293 = vmatpush2.msra.mxu0 0.0
        %294 = vmatprep.subr.mxu0 0.0
        %295 = vmatpush2.msra.mxu0 0.0
        %296 = vmatprep.subr.mxu0 0.0
        %297 = vmatpush2.msra.mxu0 0.0
        %298 = vmatprep.subr.mxu0 0.0
        %299 = vmatpush2.msra.mxu0 0.0
        %300 = vmatprep.subr.mxu0 0.0
        %301 = vmatpush2.msra.mxu0 0.0
        %302 = vmatprep.subr.mxu0 0.0
        %303 = vmatpush2.msra.mxu0 0.0
        %304 = vmatprep.subr.mxu0 0.0
        %305 = vmatpush2.msra.mxu0 0.0
        %306 = vmatprep.subr.mxu0 0.0
        %307 = vmatpush2.msra.mxu0 0.0
        %308 = vmatprep.subr.mxu0 0.0
        %309 = vmatpush2.msra.mxu0 0.0
        %310 = vmatprep.subr.mxu0 0.0
        %311 = vmatpush2.msra.mxu0 0.0
        %312 = vmatprep.subr.mxu0 0.0
        %313 = vmatpush2.msra.mxu0 0.0
        %314 = vmatprep.mubr.f32.mxu0 0.0
        %315 = vmatmul.mubr.f32.gmra.mxu0 %v190
        %v316 = vpop.f32.mrf.mxu0
        %v317 = vadd.f32 0.0, %v316
        %v318 = vpop.f32.mrf.mxu0
        %319 = vmatprep.mubr.f32.mxu0 0.0
        %320 = vmatmul.mubr.f32.gmra.mxu0 %v191
        %v321 = vpop.f32.mrf.mxu0
        %v322 = vadd.f32 0.0, %v321
        %v323 = vpop.f32.mrf.mxu0
        %324 = vmatprep.mubr.f32.mxu0 0.0
        %325 = vmatmul.mubr.f32.gmra.mxu0 %v193
        %v326 = vpop.f32.mrf.mxu0
        %v327 = vadd.f32 0.0, %v326
        %v328 = vpop.f32.mrf.mxu0
        %329 = vmatprep.mubr.f32.mxu0 0.0
        %330 = vmatmul.mubr.f32.gmra.mxu0 %v194
        %v331 = vpop.f32.mrf.mxu0
        %v332 = vadd.f32 0.0, %v331
        %v333 = vpop.f32.mrf.mxu0
        %334 = vmatprep.mubr.f32.mxu0 0.0
        %335 = vmatmul.mubr.f32.gmra.mxu0 %v196
        %v336 = vpop.f32.mrf.mxu0
        %v337 = vadd.f32 0.0, %v336
        %v338 = vpop.f32.mrf.mxu0
        %339 = vmatprep.mubr.f32.mxu0 0.0
        %340 = vmatmul.mubr.f32.gmra.mxu0 %v197
        %v341 = vpop.f32.mrf.mxu0
        %v342 = vadd.f32 0.0, %v341
        %v343 = vpop.f32.mrf.mxu0
        %344 = vmatprep.mubr.f32.mxu0 0.0
        %345 = vmatmul.mubr.f32.gmra.mxu0 %v199
        %v346 = vpop.f32.mrf.mxu0
        %v347 = vadd.f32 0.0, %v346
        %v348 = vpop.f32.mrf.mxu0
        %349 = vmatprep.mubr.f32.mxu0 0.0
        %350 = vmatmul.mubr.f32.gmra.mxu0 %v200
        %v351 = vpop.f32.mrf.mxu0
        %v352 = vadd.f32 0.0, %v351
        %v353 = vpop.f32.mrf.mxu0
        %354 = vmatprep.mubr.f32.mxu0 0.0
        %355 = vmatmul.mubr.f32.gmra.mxu0 %v202
        %v356 = vpop.f32.mrf.mxu0
        %v357 = vadd.f32 0.0, %v356
        %v358 = vpop.f32.mrf.mxu0
        %359 = vmatprep.mubr.f32.mxu0 0.0
        %360 = vmatmul.mubr.f32.gmra.mxu0 %v203
        %v361 = vpop.f32.mrf.mxu0
        %v362 = vadd.f32 0.0, %v361
        %v363 = vpop.f32.mrf.mxu0
        %364 = vmatprep.mubr.f32.mxu0 0.0
        %365 = vmatmul.mubr.f32.gmra.mxu0 %v205
        %v366 = vpop.f32.mrf.mxu0
        %v367 = vadd.f32 0.0, %v366
        %v368 = vpop.f32.mrf.mxu0
        %369 = vmatprep.mubr.f32.mxu0 0.0
        %370 = vmatmul.mubr.f32.gmra.mxu0 %v206
        %v371 = vpop.f32.mrf.mxu0
        %v372 = vadd.f32 0.0, %v371
        %v373 = vpop.f32.mrf.mxu0
        %374 = vmatprep.mubr.f32.mxu0 0.0
        %375 = vmatmul.mubr.f32.gmra.mxu0 %v208
        %v376 = vpop.f32.mrf.mxu0
        %v377 = vadd.f32 0.0, %v376
        %v378 = vpop.f32.mrf.mxu0
        %379 = vmatprep.mubr.f32.mxu0 0.0
        %380 = vmatmul.mubr.f32.gmra.mxu0 %v209
        %v381 = vpop.f32.mrf.mxu0
        %v382 = vadd.f32 0.0, %v381
        %v383 = vpop.f32.mrf.mxu0
        %384 = vmatprep.mubr.f32.mxu0 0.0
        %385 = vmatmul.mubr.f32.gmra.mxu0 %v211
        %v386 = vpop.f32.mrf.mxu0
        %v387 = vadd.f32 0.0, %v386
        %v388 = vpop.f32.mrf.mxu0
        %389 = vmatprep.mubr.f32.mxu0 0.0
        %390 = vmatmul.mubr.f32.gmra.mxu0 %v212
        %v391 = vpop.f32.mrf.mxu0
        %v392 = vadd.f32 0.0, %v391
        %v393 = vpop.f32.mrf.mxu0
        %394 = vdwg.mxu0
        %395 = vmatprep.subr.mxu0 0.0
        %396 = vmatpush1.msra.mxu0 %v232
        %397 = vmatprep.subr.mxu0 0.0
        %398 = vmatpush1.msra.mxu0 %v231
        %399 = vmatprep.subr.mxu0 0.0
        %400 = vmatpush1.msra.mxu0 %v230
        %401 = vmatprep.subr.mxu0 0.0
        %402 = vmatpush1.msra.mxu0 %v229
        %403 = vmatprep.subr.mxu0 0.0
        %404 = vmatpush1.msra.mxu0 %v228
        %405 = vmatprep.subr.mxu0 0.0
        %406 = vmatpush1.msra.mxu0 %v227
        %407 = vmatprep.subr.mxu0 0.0
        %408 = vmatpush1.msra.mxu0 %v226
        %409 = vmatprep.subr.mxu0 0.0
        %410 = vmatpush1.msra.mxu0 %v225
        %411 = vmatprep.subr.mxu0 0.0
        %412 = vmatpush1.msra.mxu0 %v224
        %413 = vmatprep.subr.mxu0 0.0
        %414 = vmatpush1.msra.mxu0 %v223
        %415 = vmatprep.subr.mxu0 0.0
        %416 = vmatpush1.msra.mxu0 %v222
        %417 = vmatprep.subr.mxu0 0.0
        %418 = vmatpush1.msra.mxu0 %v221
        %419 = vmatprep.subr.mxu0 0.0
        %420 = vmatpush1.msra.mxu0 %v220
        %421 = vmatprep.subr.mxu0 0.0
        %422 = vmatpush1.msra.mxu0 %v219
        %423 = vmatprep.subr.mxu0 0.0
        %424 = vmatpush1.msra.mxu0 %v218
        %425 = vmatprep.subr.mxu0 0.0
        %426 = vmatpush1.msra.mxu0 %v217
        %427 = vmatprep.subr.mxu0 0.0
        %428 = vmatpush2.msra.mxu0 0.0
        %429 = vmatprep.subr.mxu0 0.0
        %430 = vmatpush2.msra.mxu0 0.0
        %431 = vmatprep.subr.mxu0 0.0
        %432 = vmatpush2.msra.mxu0 0.0
        %433 = vmatprep.subr.mxu0 0.0
        %434 = vmatpush2.msra.mxu0 0.0
        %435 = vmatprep.subr.mxu0 0.0
        %436 = vmatpush2.msra.mxu0 0.0
        %437 = vmatprep.subr.mxu0 0.0
        %438 = vmatpush2.msra.mxu0 0.0
        %439 = vmatprep.subr.mxu0 0.0
        %440 = vmatpush2.msra.mxu0 0.0
        %441 = vmatprep.subr.mxu0 0.0
        %442 = vmatpush2.msra.mxu0 0.0
        %443 = vmatprep.subr.mxu0 0.0
        %444 = vmatpush2.msra.mxu0 0.0
        %445 = vmatprep.subr.mxu0 0.0
        %446 = vmatpush2.msra.mxu0 0.0
        %447 = vmatprep.subr.mxu0 0.0
        %448 = vmatpush2.msra.mxu0 0.0
        %449 = vmatprep.subr.mxu0 0.0
        %450 = vmatpush2.msra.mxu0 0.0
        %451 = vmatprep.subr.mxu0 0.0
        %452 = vmatpush2.msra.mxu0 0.0
        %453 = vmatprep.subr.mxu0 0.0
        %454 = vmatpush2.msra.mxu0 0.0
        %455 = vmatprep.subr.mxu0 0.0
        %456 = vmatpush2.msra.mxu0 0.0
        %457 = vmatprep.subr.mxu0 0.0
        %458 = vmatpush2.msra.mxu0 0.0
        %459 = vmatprep.mubr.f32.mxu0 0.0
        %460 = vmatmul.mubr.f32.gmra.mxu0 %v187
        %v461 = vpop.f32.mrf.mxu0
        %v462 = vadd.f32 %v317, %v461
        %v463 = vpop.f32.mrf.mxu0
        %464 = vmatprep.mubr.f32.mxu0 0.0
        %465 = vmatmul.mubr.f32.gmra.mxu0 %v188
        %v466 = vpop.f32.mrf.mxu0
        %v467 = vadd.f32 %v322, %v466
        %v468 = vpop.f32.mrf.mxu0
        %469 = vmatprep.mubr.f32.mxu0 0.0
        %470 = vmatmul.mubr.f32.gmra.mxu0 %v190
        %v471 = vpop.f32.mrf.mxu0
        %v472 = vadd.f32 %v327, %v471
        %v473 = vpop.f32.mrf.mxu0
        %474 = vmatprep.mubr.f32.mxu0 0.0
        %475 = vmatmul.mubr.f32.gmra.mxu0 %v191
        %v476 = vpop.f32.mrf.mxu0
        %v477 = vadd.f32 %v332, %v476
        %v478 = vpop.f32.mrf.mxu0
        %479 = vmatprep.mubr.f32.mxu0 0.0
        %480 = vmatmul.mubr.f32.gmra.mxu0 %v193
        %v481 = vpop.f32.mrf.mxu0
        %v482 = vadd.f32 %v337, %v481
        %v483 = vpop.f32.mrf.mxu0
        %484 = vmatprep.mubr.f32.mxu0 0.0
        %485 = vmatmul.mubr.f32.gmra.mxu0 %v194
        %v486 = vpop.f32.mrf.mxu0
        %v487 = vadd.f32 %v342, %v486
        %v488 = vpop.f32.mrf.mxu0
        %489 = vmatprep.mubr.f32.mxu0 0.0
        %490 = vmatmul.mubr.f32.gmra.mxu0 %v196
        %v491 = vpop.f32.mrf.mxu0
        %v492 = vadd.f32 %v347, %v491
        %v493 = vpop.f32.mrf.mxu0
        %494 = vmatprep.mubr.f32.mxu0 0.0
        %495 = vmatmul.mubr.f32.gmra.mxu0 %v197
        %v496 = vpop.f32.mrf.mxu0
        %v497 = vadd.f32 %v352, %v496
        %v498 = vpop.f32.mrf.mxu0
        %499 = vmatprep.mubr.f32.mxu0 0.0
        %500 = vmatmul.mubr.f32.gmra.mxu0 %v199
        %v501 = vpop.f32.mrf.mxu0
        %v502 = vadd.f32 %v357, %v501
        %v503 = vpop.f32.mrf.mxu0
        %504 = vmatprep.mubr.f32.mxu0 0.0
        %505 = vmatmul.mubr.f32.gmra.mxu0 %v200
        %v506 = vpop.f32.mrf.mxu0
        %v507 = vadd.f32 %v362, %v506
        %v508 = vpop.f32.mrf.mxu0
        %509 = vmatprep.mubr.f32.mxu0 0.0
        %510 = vmatmul.mubr.f32.gmra.mxu0 %v202
        %v511 = vpop.f32.mrf.mxu0
        %v512 = vadd.f32 %v367, %v511
        %v513 = vpop.f32.mrf.mxu0
        %514 = vmatprep.mubr.f32.mxu0 0.0
        %515 = vmatmul.mubr.f32.gmra.mxu0 %v203
        %v516 = vpop.f32.mrf.mxu0
        %v517 = vadd.f32 %v372, %v516
        %v518 = vpop.f32.mrf.mxu0
        %519 = vmatprep.mubr.f32.mxu0 0.0
        %520 = vmatmul.mubr.f32.gmra.mxu0 %v205
        %v521 = vpop.f32.mrf.mxu0
        %v522 = vadd.f32 %v377, %v521
        %v523 = vpop.f32.mrf.mxu0
        %524 = vmatprep.mubr.f32.mxu0 0.0
        %525 = vmatmul.mubr.f32.gmra.mxu0 %v206
        %v526 = vpop.f32.mrf.mxu0
        %v527 = vadd.f32 %v382, %v526
        %v528 = vpop.f32.mrf.mxu0
        %529 = vmatprep.mubr.f32.mxu0 0.0
        %530 = vmatmul.mubr.f32.gmra.mxu0 %v208
        %v531 = vpop.f32.mrf.mxu0
        %v532 = vadd.f32 %v387, %v531
        %v533 = vpop.f32.mrf.mxu0
        %534 = vmatprep.mubr.f32.mxu0 0.0
        %535 = vmatmul.mubr.f32.gmra.mxu0 %v209
        %v536 = vpop.f32.mrf.mxu0
        %v537 = vadd.f32 %v392, %v536
        %v538 = vpop.f32.mrf.mxu0
        %539 = vdwg.mxu0
        %s540 = scalar_lea.vmem %s1, 768
        %v541 = vld [vmem:[%s540] sm:$0xff]
        %v542 = vld [vmem:[%s540 + $0x8] sm:$0xff]
        %v543 = vld [vmem:[%s540 + $0x10] sm:$0xff]
        %v544 = vld [vmem:[%s540 + $0x18] sm:$0xff]
        %v545 = vld [vmem:[%s540 + $0x20] sm:$0xff]
        %v546 = vld [vmem:[%s540 + $0x28] sm:$0xff]
        %v547 = vld [vmem:[%s540 + $0x30] sm:$0xff]
        %v548 = vld [vmem:[%s540 + $0x38] sm:$0xff]
        %v549 = vld [vmem:[%s540 + $0x40] sm:$0xff]
        %v550 = vld [vmem:[%s540 + $0x48] sm:$0xff]
        %v551 = vld [vmem:[%s540 + $0x50] sm:$0xff]
        %v552 = vld [vmem:[%s540 + $0x58] sm:$0xff]
        %v553 = vld [vmem:[%s540 + $0x60] sm:$0xff]
        %v554 = vld [vmem:[%s540 + $0x68] sm:$0xff]
        %v555 = vld [vmem:[%s540 + $0x70] sm:$0xff]
        %v556 = vld [vmem:[%s540 + $0x78] sm:$0xff]
        %557 = vmatprep.subr.mxu0 0.0
        %558 = vmatpush1.msra.mxu0 %v556
        %559 = vmatprep.subr.mxu0 0.0
        %560 = vmatpush1.msra.mxu0 %v555
        %561 = vmatprep.subr.mxu0 0.0
        %562 = vmatpush1.msra.mxu0 %v554
        %563 = vmatprep.subr.mxu0 0.0
        %564 = vmatpush1.msra.mxu0 %v553
        %565 = vmatprep.subr.mxu0 0.0
        %566 = vmatpush1.msra.mxu0 %v552
        %567 = vmatprep.subr.mxu0 0.0
        %568 = vmatpush1.msra.mxu0 %v551
        %569 = vmatprep.subr.mxu0 0.0
        %570 = vmatpush1.msra.mxu0 %v550
        %571 = vmatprep.subr.mxu0 0.0
        %572 = vmatpush1.msra.mxu0 %v549
        %573 = vmatprep.subr.mxu0 0.0
        %574 = vmatpush1.msra.mxu0 %v548
        %575 = vmatprep.subr.mxu0 0.0
        %576 = vmatpush1.msra.mxu0 %v547
        %577 = vmatprep.subr.mxu0 0.0
        %578 = vmatpush1.msra.mxu0 %v546
        %579 = vmatprep.subr.mxu0 0.0
        %580 = vmatpush1.msra.mxu0 %v545
        %581 = vmatprep.subr.mxu0 0.0
        %582 = vmatpush1.msra.mxu0 %v544
        %583 = vmatprep.subr.mxu0 0.0
        %584 = vmatpush1.msra.mxu0 %v543
        %585 = vmatprep.subr.mxu0 0.0
        %586 = vmatpush1.msra.mxu0 %v542
        %587 = vmatprep.subr.mxu0 0.0
        %588 = vmatpush1.msra.mxu0 %v541
        %589 = vmatprep.subr.mxu0 0.0
        %590 = vmatpush2.msra.mxu0 0.0
        %591 = vmatprep.subr.mxu0 0.0
        %592 = vmatpush2.msra.mxu0 0.0
        %593 = vmatprep.subr.mxu0 0.0
        %594 = vmatpush2.msra.mxu0 0.0
        %595 = vmatprep.subr.mxu0 0.0
        %596 = vmatpush2.msra.mxu0 0.0
        %597 = vmatprep.subr.mxu0 0.0
        %598 = vmatpush2.msra.mxu0 0.0
        %599 = vmatprep.subr.mxu0 0.0
        %600 = vmatpush2.msra.mxu0 0.0
        %601 = vmatprep.subr.mxu0 0.0
        %602 = vmatpush2.msra.mxu0 0.0
        %603 = vmatprep.subr.mxu0 0.0
        %604 = vmatpush2.msra.mxu0 0.0
        %605 = vmatprep.subr.mxu0 0.0
        %606 = vmatpush2.msra.mxu0 0.0
        %607 = vmatprep.subr.mxu0 0.0
        %608 = vmatpush2.msra.mxu0 0.0
        %609 = vmatprep.subr.mxu0 0.0
        %610 = vmatpush2.msra.mxu0 0.0
        %611 = vmatprep.subr.mxu0 0.0
        %612 = vmatpush2.msra.mxu0 0.0
        %613 = vmatprep.subr.mxu0 0.0
        %614 = vmatpush2.msra.mxu0 0.0
        %615 = vmatprep.subr.mxu0 0.0
        %616 = vmatpush2.msra.mxu0 0.0
        %617 = vmatprep.subr.mxu0 0.0
        %618 = vmatpush2.msra.mxu0 0.0
        %619 = vmatprep.subr.mxu0 0.0
        %620 = vmatpush2.msra.mxu0 0.0
        %621 = vmatprep.mubr.f32.mxu0 0.0
        %622 = vmatmul.mubr.f32.gmra.mxu0 %v193
        %v623 = vpop.f32.mrf.mxu0
        %v624 = vadd.f32 0.0, %v623
        %v625 = vpop.f32.mrf.mxu0
        %626 = vmatprep.mubr.f32.mxu0 0.0
        %627 = vmatmul.mubr.f32.gmra.mxu0 %v194
        %v628 = vpop.f32.mrf.mxu0
        %v629 = vadd.f32 0.0, %v628
        %v630 = vpop.f32.mrf.mxu0
        %631 = vmatprep.mubr.f32.mxu0 0.0
        %632 = vmatmul.mubr.f32.gmra.mxu0 %v196
        %v633 = vpop.f32.mrf.mxu0
        %v634 = vadd.f32 0.0, %v633
        %v635 = vpop.f32.mrf.mxu0
        %636 = vmatprep.mubr.f32.mxu0 0.0
        %637 = vmatmul.mubr.f32.gmra.mxu0 %v197
        %v638 = vpop.f32.mrf.mxu0
        %v639 = vadd.f32 0.0, %v638
        %v640 = vpop.f32.mrf.mxu0
        %641 = vmatprep.mubr.f32.mxu0 0.0
        %642 = vmatmul.mubr.f32.gmra.mxu0 %v199
        %v643 = vpop.f32.mrf.mxu0
        %v644 = vadd.f32 0.0, %v643
        %v645 = vpop.f32.mrf.mxu0
        %646 = vmatprep.mubr.f32.mxu0 0.0
        %647 = vmatmul.mubr.f32.gmra.mxu0 %v200
        %v648 = vpop.f32.mrf.mxu0
        %v649 = vadd.f32 0.0, %v648
        %v650 = vpop.f32.mrf.mxu0
        %651 = vmatprep.mubr.f32.mxu0 0.0
        %652 = vmatmul.mubr.f32.gmra.mxu0 %v202
        %v653 = vpop.f32.mrf.mxu0
        %v654 = vadd.f32 0.0, %v653
        %v655 = vpop.f32.mrf.mxu0
        %656 = vmatprep.mubr.f32.mxu0 0.0
        %657 = vmatmul.mubr.f32.gmra.mxu0 %v203
        %v658 = vpop.f32.mrf.mxu0
        %v659 = vadd.f32 0.0, %v658
        %v660 = vpop.f32.mrf.mxu0
        %661 = vmatprep.mubr.f32.mxu0 0.0
        %662 = vmatmul.mubr.f32.gmra.mxu0 %v205
        %v663 = vpop.f32.mrf.mxu0
        %v664 = vadd.f32 0.0, %v663
        %v665 = vpop.f32.mrf.mxu0
        %666 = vmatprep.mubr.f32.mxu0 0.0
        %667 = vmatmul.mubr.f32.gmra.mxu0 %v206
        %v668 = vpop.f32.mrf.mxu0
        %v669 = vadd.f32 0.0, %v668
        %v670 = vpop.f32.mrf.mxu0
        %671 = vmatprep.mubr.f32.mxu0 0.0
        %672 = vmatmul.mubr.f32.gmra.mxu0 %v208
        %v673 = vpop.f32.mrf.mxu0
        %v674 = vadd.f32 0.0, %v673
        %v675 = vpop.f32.mrf.mxu0
        %676 = vmatprep.mubr.f32.mxu0 0.0
        %677 = vmatmul.mubr.f32.gmra.mxu0 %v209
        %v678 = vpop.f32.mrf.mxu0
        %v679 = vadd.f32 0.0, %v678
        %v680 = vpop.f32.mrf.mxu0
        %681 = vmatprep.mubr.f32.mxu0 0.0
        %682 = vmatmul.mubr.f32.gmra.mxu0 %v211
        %v683 = vpop.f32.mrf.mxu0
        %v684 = vadd.f32 0.0, %v683
        %v685 = vpop.f32.mrf.mxu0
        %686 = vmatprep.mubr.f32.mxu0 0.0
        %687 = vmatmul.mubr.f32.gmra.mxu0 %v212
        %v688 = vpop.f32.mrf.mxu0
        %v689 = vadd.f32 0.0, %v688
        %v690 = vpop.f32.mrf.mxu0
        %691 = vmatprep.mubr.f32.mxu0 0.0
        %692 = vmatmul.mubr.f32.gmra.mxu0 %v214
        %v693 = vpop.f32.mrf.mxu0
        %v694 = vadd.f32 0.0, %v693
        %v695 = vpop.f32.mrf.mxu0
        %696 = vmatprep.mubr.f32.mxu0 0.0
        %697 = vmatmul.mubr.f32.gmra.mxu0 %v215
        %v698 = vpop.f32.mrf.mxu0
        %v699 = vadd.f32 0.0, %v698
        %v700 = vpop.f32.mrf.mxu0
        %701 = vdwg.mxu0
        %v702 = vadd.f32 %v462, %v624
        %v703 = vadd.f32 %v467, %v629
        %v704 = vadd.f32 %v472, %v634
        %v705 = vadd.f32 %v477, %v639
        %v706 = vadd.f32 %v482, %v644
        %v707 = vadd.f32 %v487, %v649
        %v708 = vadd.f32 %v492, %v654
        %v709 = vadd.f32 %v497, %v659
        %v710 = vadd.f32 %v502, %v664
        %v711 = vadd.f32 %v507, %v669
        %v712 = vadd.f32 %v512, %v674
        %v713 = vadd.f32 %v517, %v679
        %v714 = vadd.f32 %v522, %v684
        %v715 = vadd.f32 %v527, %v689
        %v716 = vadd.f32 %v532, %v694
        %v717 = vadd.f32 %v537, %v699
        %vm742 = vcmask 1046528
        %v743 = vrot.slane %v187, 1
        %v744 = vrot.slane %v188, 1
        %v745 = vsel %vm742, %v743, %v744
        %v746 = vrot.slane %v189, 1
        %v747 = vsel %vm742, %v744, %v746
        %v748 = vrot.slane %v190, 1
        %v749 = vrot.slane %v191, 1
        %v750 = vsel %vm742, %v748, %v749
        %v751 = vrot.slane %v192, 1
        %v752 = vsel %vm742, %v749, %v751
        %v753 = vrot.slane %v193, 1
        %v754 = vrot.slane %v194, 1
        %v755 = vsel %vm742, %v753, %v754
        %v756 = vrot.slane %v195, 1
        %v757 = vsel %vm742, %v754, %v756
        %v758 = vrot.slane %v196, 1
        %v759 = vrot.slane %v197, 1
        %v760 = vsel %vm742, %v758, %v759
        %v761 = vrot.slane %v198, 1
        %v762 = vsel %vm742, %v759, %v761
        %v763 = vrot.slane %v199, 1
        %v764 = vrot.slane %v200, 1
        %v765 = vsel %vm742, %v763, %v764
        %v766 = vrot.slane %v201, 1
        %v767 = vsel %vm742, %v764, %v766
        %v768 = vrot.slane %v202, 1
        %v769 = vrot.slane %v203, 1
        %v770 = vsel %vm742, %v768, %v769
        %v771 = vrot.slane %v204, 1
        %v772 = vsel %vm742, %v769, %v771
        %v773 = vrot.slane %v205, 1
        %v774 = vrot.slane %v206, 1
        %v775 = vsel %vm742, %v773, %v774
        %v776 = vrot.slane %v207, 1
        %v777 = vsel %vm742, %v774, %v776
        %v778 = vrot.slane %v208, 1
        %v779 = vrot.slane %v209, 1
        %v780 = vsel %vm742, %v778, %v779
        %v781 = vrot.slane %v210, 1
        %v782 = vsel %vm742, %v779, %v781
        %s799 = scalar_lea.vmem %s1, 128
        %v800 = vld [vmem:[%s799] sm:$0xff]
        %v801 = vld [vmem:[%s799 + $0x8] sm:$0xff]
        %v802 = vld [vmem:[%s799 + $0x10] sm:$0xff]
        %v803 = vld [vmem:[%s799 + $0x18] sm:$0xff]
        %v804 = vld [vmem:[%s799 + $0x20] sm:$0xff]
        %v805 = vld [vmem:[%s799 + $0x28] sm:$0xff]
        %v806 = vld [vmem:[%s799 + $0x30] sm:$0xff]
        %v807 = vld [vmem:[%s799 + $0x38] sm:$0xff]
        %v808 = vld [vmem:[%s799 + $0x40] sm:$0xff]
        %v809 = vld [vmem:[%s799 + $0x48] sm:$0xff]
        %v810 = vld [vmem:[%s799 + $0x50] sm:$0xff]
        %v811 = vld [vmem:[%s799 + $0x58] sm:$0xff]
        %v812 = vld [vmem:[%s799 + $0x60] sm:$0xff]
        %v813 = vld [vmem:[%s799 + $0x68] sm:$0xff]
        %v814 = vld [vmem:[%s799 + $0x70] sm:$0xff]
        %v815 = vld [vmem:[%s799 + $0x78] sm:$0xff]
        %816 = vmatprep.subr.mxu0 0.0
        %817 = vmatpush1.msra.mxu0 %v815
        %818 = vmatprep.subr.mxu0 0.0
        %819 = vmatpush1.msra.mxu0 %v814
        %820 = vmatprep.subr.mxu0 0.0
        %821 = vmatpush1.msra.mxu0 %v813
        %822 = vmatprep.subr.mxu0 0.0
        %823 = vmatpush1.msra.mxu0 %v812
        %824 = vmatprep.subr.mxu0 0.0
        %825 = vmatpush1.msra.mxu0 %v811
        %826 = vmatprep.subr.mxu0 0.0
        %827 = vmatpush1.msra.mxu0 %v810
        %828 = vmatprep.subr.mxu0 0.0
        %829 = vmatpush1.msra.mxu0 %v809
        %830 = vmatprep.subr.mxu0 0.0
        %831 = vmatpush1.msra.mxu0 %v808
        %832 = vmatprep.subr.mxu0 0.0
        %833 = vmatpush1.msra.mxu0 %v807
        %834 = vmatprep.subr.mxu0 0.0
        %835 = vmatpush1.msra.mxu0 %v806
        %836 = vmatprep.subr.mxu0 0.0
        %837 = vmatpush1.msra.mxu0 %v805
        %838 = vmatprep.subr.mxu0 0.0
        %839 = vmatpush1.msra.mxu0 %v804
        %840 = vmatprep.subr.mxu0 0.0
        %841 = vmatpush1.msra.mxu0 %v803
        %842 = vmatprep.subr.mxu0 0.0
        %843 = vmatpush1.msra.mxu0 %v802
        %844 = vmatprep.subr.mxu0 0.0
        %845 = vmatpush1.msra.mxu0 %v801
        %846 = vmatprep.subr.mxu0 0.0
        %847 = vmatpush1.msra.mxu0 %v800
        %848 = vmatprep.subr.mxu0 0.0
        %849 = vmatpush2.msra.mxu0 0.0
        %850 = vmatprep.subr.mxu0 0.0
        %851 = vmatpush2.msra.mxu0 0.0
        %852 = vmatprep.subr.mxu0 0.0
        %853 = vmatpush2.msra.mxu0 0.0
        %854 = vmatprep.subr.mxu0 0.0
        %855 = vmatpush2.msra.mxu0 0.0
        %856 = vmatprep.subr.mxu0 0.0
        %857 = vmatpush2.msra.mxu0 0.0
        %858 = vmatprep.subr.mxu0 0.0
        %859 = vmatpush2.msra.mxu0 0.0
        %860 = vmatprep.subr.mxu0 0.0
        %861 = vmatpush2.msra.mxu0 0.0
        %862 = vmatprep.subr.mxu0 0.0
        %863 = vmatpush2.msra.mxu0 0.0
        %864 = vmatprep.subr.mxu0 0.0
        %865 = vmatpush2.msra.mxu0 0.0
        %866 = vmatprep.subr.mxu0 0.0
        %867 = vmatpush2.msra.mxu0 0.0
        %868 = vmatprep.subr.mxu0 0.0
        %869 = vmatpush2.msra.mxu0 0.0
        %870 = vmatprep.subr.mxu0 0.0
        %871 = vmatpush2.msra.mxu0 0.0
        %872 = vmatprep.subr.mxu0 0.0
        %873 = vmatpush2.msra.mxu0 0.0
        %874 = vmatprep.subr.mxu0 0.0
        %875 = vmatpush2.msra.mxu0 0.0
        %876 = vmatprep.subr.mxu0 0.0
        %877 = vmatpush2.msra.mxu0 0.0
        %878 = vmatprep.subr.mxu0 0.0
        %879 = vmatpush2.msra.mxu0 0.0
        %880 = vmatprep.mubr.f32.mxu0 0.0
        %881 = vmatmul.mubr.f32.gmra.mxu0 %v745
        %v882 = vpop.f32.mrf.mxu0
        %v883 = vadd.f32 0.0, %v882
        %v884 = vpop.f32.mrf.mxu0
        %885 = vmatprep.mubr.f32.mxu0 0.0
        %886 = vmatmul.mubr.f32.gmra.mxu0 %v747
        %v887 = vpop.f32.mrf.mxu0
        %v888 = vadd.f32 0.0, %v887
        %v889 = vpop.f32.mrf.mxu0
        %890 = vmatprep.mubr.f32.mxu0 0.0
        %891 = vmatmul.mubr.f32.gmra.mxu0 %v750
        %v892 = vpop.f32.mrf.mxu0
        %v893 = vadd.f32 0.0, %v892
        %v894 = vpop.f32.mrf.mxu0
        %895 = vmatprep.mubr.f32.mxu0 0.0
        %896 = vmatmul.mubr.f32.gmra.mxu0 %v752
        %v897 = vpop.f32.mrf.mxu0
        %v898 = vadd.f32 0.0, %v897
        %v899 = vpop.f32.mrf.mxu0
        %900 = vmatprep.mubr.f32.mxu0 0.0
        %901 = vmatmul.mubr.f32.gmra.mxu0 %v755
        %v902 = vpop.f32.mrf.mxu0
        %v903 = vadd.f32 0.0, %v902
        %v904 = vpop.f32.mrf.mxu0
        %905 = vmatprep.mubr.f32.mxu0 0.0
        %906 = vmatmul.mubr.f32.gmra.mxu0 %v757
        %v907 = vpop.f32.mrf.mxu0
        %v908 = vadd.f32 0.0, %v907
        %v909 = vpop.f32.mrf.mxu0
        %910 = vmatprep.mubr.f32.mxu0 0.0
        %911 = vmatmul.mubr.f32.gmra.mxu0 %v760
        %v912 = vpop.f32.mrf.mxu0
        %v913 = vadd.f32 0.0, %v912
        %v914 = vpop.f32.mrf.mxu0
        %915 = vmatprep.mubr.f32.mxu0 0.0
        %916 = vmatmul.mubr.f32.gmra.mxu0 %v762
        %v917 = vpop.f32.mrf.mxu0
        %v918 = vadd.f32 0.0, %v917
        %v919 = vpop.f32.mrf.mxu0
        %920 = vmatprep.mubr.f32.mxu0 0.0
        %921 = vmatmul.mubr.f32.gmra.mxu0 %v765
        %v922 = vpop.f32.mrf.mxu0
        %v923 = vadd.f32 0.0, %v922
        %v924 = vpop.f32.mrf.mxu0
        %925 = vmatprep.mubr.f32.mxu0 0.0
        %926 = vmatmul.mubr.f32.gmra.mxu0 %v767
        %v927 = vpop.f32.mrf.mxu0
        %v928 = vadd.f32 0.0, %v927
        %v929 = vpop.f32.mrf.mxu0
        %930 = vmatprep.mubr.f32.mxu0 0.0
        %931 = vmatmul.mubr.f32.gmra.mxu0 %v770
        %v932 = vpop.f32.mrf.mxu0
        %v933 = vadd.f32 0.0, %v932
        %v934 = vpop.f32.mrf.mxu0
        %935 = vmatprep.mubr.f32.mxu0 0.0
        %936 = vmatmul.mubr.f32.gmra.mxu0 %v772
        %v937 = vpop.f32.mrf.mxu0
        %v938 = vadd.f32 0.0, %v937
        %v939 = vpop.f32.mrf.mxu0
        %940 = vmatprep.mubr.f32.mxu0 0.0
        %941 = vmatmul.mubr.f32.gmra.mxu0 %v775
        %v942 = vpop.f32.mrf.mxu0
        %v943 = vadd.f32 0.0, %v942
        %v944 = vpop.f32.mrf.mxu0
        %945 = vmatprep.mubr.f32.mxu0 0.0
        %946 = vmatmul.mubr.f32.gmra.mxu0 %v777
        %v947 = vpop.f32.mrf.mxu0
        %v948 = vadd.f32 0.0, %v947
        %v949 = vpop.f32.mrf.mxu0
        %950 = vmatprep.mubr.f32.mxu0 0.0
        %951 = vmatmul.mubr.f32.gmra.mxu0 %v780
        %v952 = vpop.f32.mrf.mxu0
        %v953 = vadd.f32 0.0, %v952
        %v954 = vpop.f32.mrf.mxu0
        %955 = vmatprep.mubr.f32.mxu0 0.0
        %956 = vmatmul.mubr.f32.gmra.mxu0 %v782
        %v957 = vpop.f32.mrf.mxu0
        %v958 = vadd.f32 0.0, %v957
        %v959 = vpop.f32.mrf.mxu0
        %960 = vdwg.mxu0
        %v961 = vadd.f32 %v702, %v883
        %v962 = vadd.f32 %v703, %v888
        %v963 = vadd.f32 %v704, %v893
        %v964 = vadd.f32 %v705, %v898
        %v965 = vadd.f32 %v706, %v903
        %v966 = vadd.f32 %v707, %v908
        %v967 = vadd.f32 %v708, %v913
        %v968 = vadd.f32 %v709, %v918
        %v969 = vadd.f32 %v710, %v923
        %v970 = vadd.f32 %v711, %v928
        %v971 = vadd.f32 %v712, %v933
        %v972 = vadd.f32 %v713, %v938
        %v973 = vadd.f32 %v714, %v943
        %v974 = vadd.f32 %v715, %v948
        %v975 = vadd.f32 %v716, %v953
        %v976 = vadd.f32 %v717, %v958
        %v980 = vrot.slane %v211, 1
        %v981 = vrot.slane %v212, 1
        %v982 = vsel %vm742, %v980, %v981
        %v983 = vrot.slane %v213, 1
        %v984 = vsel %vm742, %v981, %v983
        %s987 = scalar_lea.vmem %s1, 512
        %v988 = vld [vmem:[%s987] sm:$0xff]
        %v989 = vld [vmem:[%s987 + $0x8] sm:$0xff]
        %v990 = vld [vmem:[%s987 + $0x10] sm:$0xff]
        %v991 = vld [vmem:[%s987 + $0x18] sm:$0xff]
        %v992 = vld [vmem:[%s987 + $0x20] sm:$0xff]
        %v993 = vld [vmem:[%s987 + $0x28] sm:$0xff]
        %v994 = vld [vmem:[%s987 + $0x30] sm:$0xff]
        %v995 = vld [vmem:[%s987 + $0x38] sm:$0xff]
        %v996 = vld [vmem:[%s987 + $0x40] sm:$0xff]
        %v997 = vld [vmem:[%s987 + $0x48] sm:$0xff]
        %v998 = vld [vmem:[%s987 + $0x50] sm:$0xff]
        %v999 = vld [vmem:[%s987 + $0x58] sm:$0xff]
        %v1000 = vld [vmem:[%s987 + $0x60] sm:$0xff]
        %v1001 = vld [vmem:[%s987 + $0x68] sm:$0xff]
        %v1002 = vld [vmem:[%s987 + $0x70] sm:$0xff]
        %v1003 = vld [vmem:[%s987 + $0x78] sm:$0xff]
        %1004 = vmatprep.subr.mxu0 0.0
        %1005 = vmatpush1.msra.mxu0 %v1003
        %1006 = vmatprep.subr.mxu0 0.0
        %1007 = vmatpush1.msra.mxu0 %v1002
        %1008 = vmatprep.subr.mxu0 0.0
        %1009 = vmatpush1.msra.mxu0 %v1001
        %1010 = vmatprep.subr.mxu0 0.0
        %1011 = vmatpush1.msra.mxu0 %v1000
        %1012 = vmatprep.subr.mxu0 0.0
        %1013 = vmatpush1.msra.mxu0 %v999
        %1014 = vmatprep.subr.mxu0 0.0
        %1015 = vmatpush1.msra.mxu0 %v998
        %1016 = vmatprep.subr.mxu0 0.0
        %1017 = vmatpush1.msra.mxu0 %v997
        %1018 = vmatprep.subr.mxu0 0.0
        %1019 = vmatpush1.msra.mxu0 %v996
        %1020 = vmatprep.subr.mxu0 0.0
        %1021 = vmatpush1.msra.mxu0 %v995
        %1022 = vmatprep.subr.mxu0 0.0
        %1023 = vmatpush1.msra.mxu0 %v994
        %1024 = vmatprep.subr.mxu0 0.0
        %1025 = vmatpush1.msra.mxu0 %v993
        %1026 = vmatprep.subr.mxu0 0.0
        %1027 = vmatpush1.msra.mxu0 %v992
        %1028 = vmatprep.subr.mxu0 0.0
        %1029 = vmatpush1.msra.mxu0 %v991
        %1030 = vmatprep.subr.mxu0 0.0
        %1031 = vmatpush1.msra.mxu0 %v990
        %1032 = vmatprep.subr.mxu0 0.0
        %1033 = vmatpush1.msra.mxu0 %v989
        %1034 = vmatprep.subr.mxu0 0.0
        %1035 = vmatpush1.msra.mxu0 %v988
        %1036 = vmatprep.subr.mxu0 0.0
        %1037 = vmatpush2.msra.mxu0 0.0
        %1038 = vmatprep.subr.mxu0 0.0
        %1039 = vmatpush2.msra.mxu0 0.0
        %1040 = vmatprep.subr.mxu0 0.0
        %1041 = vmatpush2.msra.mxu0 0.0
        %1042 = vmatprep.subr.mxu0 0.0
        %1043 = vmatpush2.msra.mxu0 0.0
        %1044 = vmatprep.subr.mxu0 0.0
        %1045 = vmatpush2.msra.mxu0 0.0
        %1046 = vmatprep.subr.mxu0 0.0
        %1047 = vmatpush2.msra.mxu0 0.0
        %1048 = vmatprep.subr.mxu0 0.0
        %1049 = vmatpush2.msra.mxu0 0.0
        %1050 = vmatprep.subr.mxu0 0.0
        %1051 = vmatpush2.msra.mxu0 0.0
        %1052 = vmatprep.subr.mxu0 0.0
        %1053 = vmatpush2.msra.mxu0 0.0
        %1054 = vmatprep.subr.mxu0 0.0
        %1055 = vmatpush2.msra.mxu0 0.0
        %1056 = vmatprep.subr.mxu0 0.0
        %1057 = vmatpush2.msra.mxu0 0.0
        %1058 = vmatprep.subr.mxu0 0.0
        %1059 = vmatpush2.msra.mxu0 0.0
        %1060 = vmatprep.subr.mxu0 0.0
        %1061 = vmatpush2.msra.mxu0 0.0
        %1062 = vmatprep.subr.mxu0 0.0
        %1063 = vmatpush2.msra.mxu0 0.0
        %1064 = vmatprep.subr.mxu0 0.0
        %1065 = vmatpush2.msra.mxu0 0.0
        %1066 = vmatprep.subr.mxu0 0.0
        %1067 = vmatpush2.msra.mxu0 0.0
        %1068 = vmatprep.mubr.f32.mxu0 0.0
        %1069 = vmatmul.mubr.f32.gmra.mxu0 %v750
        %v1070 = vpop.f32.mrf.mxu0
        %v1071 = vadd.f32 0.0, %v1070
        %v1072 = vpop.f32.mrf.mxu0
        %1073 = vmatprep.mubr.f32.mxu0 0.0
        %1074 = vmatmul.mubr.f32.gmra.mxu0 %v752
        %v1075 = vpop.f32.mrf.mxu0
        %v1076 = vadd.f32 0.0, %v1075
        %v1077 = vpop.f32.mrf.mxu0
        %1078 = vmatprep.mubr.f32.mxu0 0.0
        %1079 = vmatmul.mubr.f32.gmra.mxu0 %v755
        %v1080 = vpop.f32.mrf.mxu0
        %v1081 = vadd.f32 0.0, %v1080
        %v1082 = vpop.f32.mrf.mxu0
        %1083 = vmatprep.mubr.f32.mxu0 0.0
        %1084 = vmatmul.mubr.f32.gmra.mxu0 %v757
        %v1085 = vpop.f32.mrf.mxu0
        %v1086 = vadd.f32 0.0, %v1085
        %v1087 = vpop.f32.mrf.mxu0
        %1088 = vmatprep.mubr.f32.mxu0 0.0
        %1089 = vmatmul.mubr.f32.gmra.mxu0 %v760
        %v1090 = vpop.f32.mrf.mxu0
        %v1091 = vadd.f32 0.0, %v1090
        %v1092 = vpop.f32.mrf.mxu0
        %1093 = vmatprep.mubr.f32.mxu0 0.0
        %1094 = vmatmul.mubr.f32.gmra.mxu0 %v762
        %v1095 = vpop.f32.mrf.mxu0
        %v1096 = vadd.f32 0.0, %v1095
        %v1097 = vpop.f32.mrf.mxu0
        %1098 = vmatprep.mubr.f32.mxu0 0.0
        %1099 = vmatmul.mubr.f32.gmra.mxu0 %v765
        %v1100 = vpop.f32.mrf.mxu0
        %v1101 = vadd.f32 0.0, %v1100
        %v1102 = vpop.f32.mrf.mxu0
        %1103 = vmatprep.mubr.f32.mxu0 0.0
        %1104 = vmatmul.mubr.f32.gmra.mxu0 %v767
        %v1105 = vpop.f32.mrf.mxu0
        %v1106 = vadd.f32 0.0, %v1105
        %v1107 = vpop.f32.mrf.mxu0
        %1108 = vmatprep.mubr.f32.mxu0 0.0
        %1109 = vmatmul.mubr.f32.gmra.mxu0 %v770
        %v1110 = vpop.f32.mrf.mxu0
        %v1111 = vadd.f32 0.0, %v1110
        %v1112 = vpop.f32.mrf.mxu0
        %1113 = vmatprep.mubr.f32.mxu0 0.0
        %1114 = vmatmul.mubr.f32.gmra.mxu0 %v772
        %v1115 = vpop.f32.mrf.mxu0
        %v1116 = vadd.f32 0.0, %v1115
        %v1117 = vpop.f32.mrf.mxu0
        %1118 = vmatprep.mubr.f32.mxu0 0.0
        %1119 = vmatmul.mubr.f32.gmra.mxu0 %v775
        %v1120 = vpop.f32.mrf.mxu0
        %v1121 = vadd.f32 0.0, %v1120
        %v1122 = vpop.f32.mrf.mxu0
        %1123 = vmatprep.mubr.f32.mxu0 0.0
        %1124 = vmatmul.mubr.f32.gmra.mxu0 %v777
        %v1125 = vpop.f32.mrf.mxu0
        %v1126 = vadd.f32 0.0, %v1125
        %v1127 = vpop.f32.mrf.mxu0
        %1128 = vmatprep.mubr.f32.mxu0 0.0
        %1129 = vmatmul.mubr.f32.gmra.mxu0 %v780
        %v1130 = vpop.f32.mrf.mxu0
        %v1131 = vadd.f32 0.0, %v1130
        %v1132 = vpop.f32.mrf.mxu0
        %1133 = vmatprep.mubr.f32.mxu0 0.0
        %1134 = vmatmul.mubr.f32.gmra.mxu0 %v782
        %v1135 = vpop.f32.mrf.mxu0
        %v1136 = vadd.f32 0.0, %v1135
        %v1137 = vpop.f32.mrf.mxu0
        %1138 = vmatprep.mubr.f32.mxu0 0.0
        %1139 = vmatmul.mubr.f32.gmra.mxu0 %v982
        %v1140 = vpop.f32.mrf.mxu0
        %v1141 = vadd.f32 0.0, %v1140
        %v1142 = vpop.f32.mrf.mxu0
        %1143 = vmatprep.mubr.f32.mxu0 0.0
        %1144 = vmatmul.mubr.f32.gmra.mxu0 %v984
        %v1145 = vpop.f32.mrf.mxu0
        %v1146 = vadd.f32 0.0, %v1145
        %v1147 = vpop.f32.mrf.mxu0
        %1148 = vdwg.mxu0
        %v1149 = vadd.f32 %v961, %v1071
        %v1150 = vadd.f32 %v962, %v1076
        %v1151 = vadd.f32 %v963, %v1081
        %v1152 = vadd.f32 %v964, %v1086
        %v1153 = vadd.f32 %v965, %v1091
        %v1154 = vadd.f32 %v966, %v1096
        %v1155 = vadd.f32 %v967, %v1101
        %v1156 = vadd.f32 %v968, %v1106
        %v1157 = vadd.f32 %v969, %v1111
        %v1158 = vadd.f32 %v970, %v1116
        %v1159 = vadd.f32 %v971, %v1121
        %v1160 = vadd.f32 %v972, %v1126
        %v1161 = vadd.f32 %v973, %v1131
        %v1162 = vadd.f32 %v974, %v1136
        %v1163 = vadd.f32 %v975, %v1141
        %v1164 = vadd.f32 %v976, %v1146
        %v1168 = vrot.slane %v214, 1
        %v1169 = vrot.slane %v215, 1
        %v1170 = vsel %vm742, %v1168, %v1169
        %v1171 = vrot.slane %v216, 1
        %v1172 = vsel %vm742, %v1169, %v1171
        %s1175 = scalar_lea.vmem %s1, 896
        %v1176 = vld [vmem:[%s1175] sm:$0xff]
        %v1177 = vld [vmem:[%s1175 + $0x8] sm:$0xff]
        %v1178 = vld [vmem:[%s1175 + $0x10] sm:$0xff]
        %v1179 = vld [vmem:[%s1175 + $0x18] sm:$0xff]
        %v1180 = vld [vmem:[%s1175 + $0x20] sm:$0xff]
        %v1181 = vld [vmem:[%s1175 + $0x28] sm:$0xff]
        %v1182 = vld [vmem:[%s1175 + $0x30] sm:$0xff]
        %v1183 = vld [vmem:[%s1175 + $0x38] sm:$0xff]
        %v1184 = vld [vmem:[%s1175 + $0x40] sm:$0xff]
        %v1185 = vld [vmem:[%s1175 + $0x48] sm:$0xff]
        %v1186 = vld [vmem:[%s1175 + $0x50] sm:$0xff]
        %v1187 = vld [vmem:[%s1175 + $0x58] sm:$0xff]
        %v1188 = vld [vmem:[%s1175 + $0x60] sm:$0xff]
        %v1189 = vld [vmem:[%s1175 + $0x68] sm:$0xff]
        %v1190 = vld [vmem:[%s1175 + $0x70] sm:$0xff]
        %v1191 = vld [vmem:[%s1175 + $0x78] sm:$0xff]
        %1192 = vmatprep.subr.mxu0 0.0
        %1193 = vmatpush1.msra.mxu0 %v1191
        %1194 = vmatprep.subr.mxu0 0.0
        %1195 = vmatpush1.msra.mxu0 %v1190
        %1196 = vmatprep.subr.mxu0 0.0
        %1197 = vmatpush1.msra.mxu0 %v1189
        %1198 = vmatprep.subr.mxu0 0.0
        %1199 = vmatpush1.msra.mxu0 %v1188
        %1200 = vmatprep.subr.mxu0 0.0
        %1201 = vmatpush1.msra.mxu0 %v1187
        %1202 = vmatprep.subr.mxu0 0.0
        %1203 = vmatpush1.msra.mxu0 %v1186
        %1204 = vmatprep.subr.mxu0 0.0
        %1205 = vmatpush1.msra.mxu0 %v1185
        %1206 = vmatprep.subr.mxu0 0.0
        %1207 = vmatpush1.msra.mxu0 %v1184
        %1208 = vmatprep.subr.mxu0 0.0
        %1209 = vmatpush1.msra.mxu0 %v1183
        %1210 = vmatprep.subr.mxu0 0.0
        %1211 = vmatpush1.msra.mxu0 %v1182
        %1212 = vmatprep.subr.mxu0 0.0
        %1213 = vmatpush1.msra.mxu0 %v1181
        %1214 = vmatprep.subr.mxu0 0.0
        %1215 = vmatpush1.msra.mxu0 %v1180
        %1216 = vmatprep.subr.mxu0 0.0
        %1217 = vmatpush1.msra.mxu0 %v1179
        %1218 = vmatprep.subr.mxu0 0.0
        %1219 = vmatpush1.msra.mxu0 %v1178
        %1220 = vmatprep.subr.mxu0 0.0
        %1221 = vmatpush1.msra.mxu0 %v1177
        %1222 = vmatprep.subr.mxu0 0.0
        %1223 = vmatpush1.msra.mxu0 %v1176
        %1224 = vmatprep.subr.mxu0 0.0
        %1225 = vmatpush2.msra.mxu0 0.0
        %1226 = vmatprep.subr.mxu0 0.0
        %1227 = vmatpush2.msra.mxu0 0.0
        %1228 = vmatprep.subr.mxu0 0.0
        %1229 = vmatpush2.msra.mxu0 0.0
        %1230 = vmatprep.subr.mxu0 0.0
        %1231 = vmatpush2.msra.mxu0 0.0
        %1232 = vmatprep.subr.mxu0 0.0
        %1233 = vmatpush2.msra.mxu0 0.0
        %1234 = vmatprep.subr.mxu0 0.0
        %1235 = vmatpush2.msra.mxu0 0.0
        %1236 = vmatprep.subr.mxu0 0.0
        %1237 = vmatpush2.msra.mxu0 0.0
        %1238 = vmatprep.subr.mxu0 0.0
        %1239 = vmatpush2.msra.mxu0 0.0
        %1240 = vmatprep.subr.mxu0 0.0
        %1241 = vmatpush2.msra.mxu0 0.0
        %1242 = vmatprep.subr.mxu0 0.0
        %1243 = vmatpush2.msra.mxu0 0.0
        %1244 = vmatprep.subr.mxu0 0.0
        %1245 = vmatpush2.msra.mxu0 0.0
        %1246 = vmatprep.subr.mxu0 0.0
        %1247 = vmatpush2.msra.mxu0 0.0
        %1248 = vmatprep.subr.mxu0 0.0
        %1249 = vmatpush2.msra.mxu0 0.0
        %1250 = vmatprep.subr.mxu0 0.0
        %1251 = vmatpush2.msra.mxu0 0.0
        %1252 = vmatprep.subr.mxu0 0.0
        %1253 = vmatpush2.msra.mxu0 0.0
        %1254 = vmatprep.subr.mxu0 0.0
        %1255 = vmatpush2.msra.mxu0 0.0
        %1256 = vmatprep.mubr.f32.mxu0 0.0
        %1257 = vmatmul.mubr.f32.gmra.mxu0 %v755
        %v1258 = vpop.f32.mrf.mxu0
        %v1259 = vadd.f32 0.0, %v1258
        %v1260 = vpop.f32.mrf.mxu0
        %1261 = vmatprep.mubr.f32.mxu0 0.0
        %1262 = vmatmul.mubr.f32.gmra.mxu0 %v757
        %v1263 = vpop.f32.mrf.mxu0
        %v1264 = vadd.f32 0.0, %v1263
        %v1265 = vpop.f32.mrf.mxu0
        %1266 = vmatprep.mubr.f32.mxu0 0.0
        %1267 = vmatmul.mubr.f32.gmra.mxu0 %v760
        %v1268 = vpop.f32.mrf.mxu0
        %v1269 = vadd.f32 0.0, %v1268
        %v1270 = vpop.f32.mrf.mxu0
        %1271 = vmatprep.mubr.f32.mxu0 0.0
        %1272 = vmatmul.mubr.f32.gmra.mxu0 %v762
        %v1273 = vpop.f32.mrf.mxu0
        %v1274 = vadd.f32 0.0, %v1273
        %v1275 = vpop.f32.mrf.mxu0
        %1276 = vmatprep.mubr.f32.mxu0 0.0
        %1277 = vmatmul.mubr.f32.gmra.mxu0 %v765
        %v1278 = vpop.f32.mrf.mxu0
        %v1279 = vadd.f32 0.0, %v1278
        %v1280 = vpop.f32.mrf.mxu0
        %1281 = vmatprep.mubr.f32.mxu0 0.0
        %1282 = vmatmul.mubr.f32.gmra.mxu0 %v767
        %v1283 = vpop.f32.mrf.mxu0
        %v1284 = vadd.f32 0.0, %v1283
        %v1285 = vpop.f32.mrf.mxu0
        %1286 = vmatprep.mubr.f32.mxu0 0.0
        %1287 = vmatmul.mubr.f32.gmra.mxu0 %v770
        %v1288 = vpop.f32.mrf.mxu0
        %v1289 = vadd.f32 0.0, %v1288
        %v1290 = vpop.f32.mrf.mxu0
        %1291 = vmatprep.mubr.f32.mxu0 0.0
        %1292 = vmatmul.mubr.f32.gmra.mxu0 %v772
        %v1293 = vpop.f32.mrf.mxu0
        %v1294 = vadd.f32 0.0, %v1293
        %v1295 = vpop.f32.mrf.mxu0
        %1296 = vmatprep.mubr.f32.mxu0 0.0
        %1297 = vmatmul.mubr.f32.gmra.mxu0 %v775
        %v1298 = vpop.f32.mrf.mxu0
        %v1299 = vadd.f32 0.0, %v1298
        %v1300 = vpop.f32.mrf.mxu0
        %1301 = vmatprep.mubr.f32.mxu0 0.0
        %1302 = vmatmul.mubr.f32.gmra.mxu0 %v777
        %v1303 = vpop.f32.mrf.mxu0
        %v1304 = vadd.f32 0.0, %v1303
        %v1305 = vpop.f32.mrf.mxu0
        %1306 = vmatprep.mubr.f32.mxu0 0.0
        %1307 = vmatmul.mubr.f32.gmra.mxu0 %v780
        %v1308 = vpop.f32.mrf.mxu0
        %v1309 = vadd.f32 0.0, %v1308
        %v1310 = vpop.f32.mrf.mxu0
        %1311 = vmatprep.mubr.f32.mxu0 0.0
        %1312 = vmatmul.mubr.f32.gmra.mxu0 %v782
        %v1313 = vpop.f32.mrf.mxu0
        %v1314 = vadd.f32 0.0, %v1313
        %v1315 = vpop.f32.mrf.mxu0
        %1316 = vmatprep.mubr.f32.mxu0 0.0
        %1317 = vmatmul.mubr.f32.gmra.mxu0 %v982
        %v1318 = vpop.f32.mrf.mxu0
        %v1319 = vadd.f32 0.0, %v1318
        %v1320 = vpop.f32.mrf.mxu0
        %1321 = vmatprep.mubr.f32.mxu0 0.0
        %1322 = vmatmul.mubr.f32.gmra.mxu0 %v984
        %v1323 = vpop.f32.mrf.mxu0
        %v1324 = vadd.f32 0.0, %v1323
        %v1325 = vpop.f32.mrf.mxu0
        %1326 = vmatprep.mubr.f32.mxu0 0.0
        %1327 = vmatmul.mubr.f32.gmra.mxu0 %v1170
        %v1328 = vpop.f32.mrf.mxu0
        %v1329 = vadd.f32 0.0, %v1328
        %v1330 = vpop.f32.mrf.mxu0
        %1331 = vmatprep.mubr.f32.mxu0 0.0
        %1332 = vmatmul.mubr.f32.gmra.mxu0 %v1172
        %v1333 = vpop.f32.mrf.mxu0
        %v1334 = vadd.f32 0.0, %v1333
        %v1335 = vpop.f32.mrf.mxu0
        %1336 = vdwg.mxu0
        %v1337 = vadd.f32 %v1149, %v1259
        %v1338 = vadd.f32 %v1150, %v1264
        %v1339 = vadd.f32 %v1151, %v1269
        %v1340 = vadd.f32 %v1152, %v1274
        %v1341 = vadd.f32 %v1153, %v1279
        %v1342 = vadd.f32 %v1154, %v1284
        %v1343 = vadd.f32 %v1155, %v1289
        %v1344 = vadd.f32 %v1156, %v1294
        %v1345 = vadd.f32 %v1157, %v1299
        %v1346 = vadd.f32 %v1158, %v1304
        %v1347 = vadd.f32 %v1159, %v1309
        %v1348 = vadd.f32 %v1160, %v1314
        %v1349 = vadd.f32 %v1161, %v1319
        %v1350 = vadd.f32 %v1162, %v1324
        %v1351 = vadd.f32 %v1163, %v1329
        %v1352 = vadd.f32 %v1164, %v1334
        %vm1353 = vcmask 1045504
        %v1354 = vrot.slane %v187, 2
        %v1355 = vrot.slane %v188, 2
        %v1356 = vsel %vm1353, %v1354, %v1355
        %v1357 = vrot.slane %v189, 2
        %v1358 = vsel %vm1353, %v1355, %v1357
        %v1359 = vrot.slane %v190, 2
        %v1360 = vrot.slane %v191, 2
        %v1361 = vsel %vm1353, %v1359, %v1360
        %v1362 = vrot.slane %v192, 2
        %v1363 = vsel %vm1353, %v1360, %v1362
        %v1364 = vrot.slane %v193, 2
        %v1365 = vrot.slane %v194, 2
        %v1366 = vsel %vm1353, %v1364, %v1365
        %v1367 = vrot.slane %v195, 2
        %v1368 = vsel %vm1353, %v1365, %v1367
        %v1369 = vrot.slane %v196, 2
        %v1370 = vrot.slane %v197, 2
        %v1371 = vsel %vm1353, %v1369, %v1370
        %v1372 = vrot.slane %v198, 2
        %v1373 = vsel %vm1353, %v1370, %v1372
        %v1374 = vrot.slane %v199, 2
        %v1375 = vrot.slane %v200, 2
        %v1376 = vsel %vm1353, %v1374, %v1375
        %v1377 = vrot.slane %v201, 2
        %v1378 = vsel %vm1353, %v1375, %v1377
        %v1379 = vrot.slane %v202, 2
        %v1380 = vrot.slane %v203, 2
        %v1381 = vsel %vm1353, %v1379, %v1380
        %v1382 = vrot.slane %v204, 2
        %v1383 = vsel %vm1353, %v1380, %v1382
        %v1384 = vrot.slane %v205, 2
        %v1385 = vrot.slane %v206, 2
        %v1386 = vsel %vm1353, %v1384, %v1385
        %v1387 = vrot.slane %v207, 2
        %v1388 = vsel %vm1353, %v1385, %v1387
        %v1389 = vrot.slane %v208, 2
        %v1390 = vrot.slane %v209, 2
        %v1391 = vsel %vm1353, %v1389, %v1390
        %v1392 = vrot.slane %v210, 2
        %v1393 = vsel %vm1353, %v1390, %v1392
        %s1410 = scalar_lea.vmem %s1, 256
        %v1411 = vld [vmem:[%s1410] sm:$0xff]
        %v1412 = vld [vmem:[%s1410 + $0x8] sm:$0xff]
        %v1413 = vld [vmem:[%s1410 + $0x10] sm:$0xff]
        %v1414 = vld [vmem:[%s1410 + $0x18] sm:$0xff]
        %v1415 = vld [vmem:[%s1410 + $0x20] sm:$0xff]
        %v1416 = vld [vmem:[%s1410 + $0x28] sm:$0xff]
        %v1417 = vld [vmem:[%s1410 + $0x30] sm:$0xff]
        %v1418 = vld [vmem:[%s1410 + $0x38] sm:$0xff]
        %v1419 = vld [vmem:[%s1410 + $0x40] sm:$0xff]
        %v1420 = vld [vmem:[%s1410 + $0x48] sm:$0xff]
        %v1421 = vld [vmem:[%s1410 + $0x50] sm:$0xff]
        %v1422 = vld [vmem:[%s1410 + $0x58] sm:$0xff]
        %v1423 = vld [vmem:[%s1410 + $0x60] sm:$0xff]
        %v1424 = vld [vmem:[%s1410 + $0x68] sm:$0xff]
        %v1425 = vld [vmem:[%s1410 + $0x70] sm:$0xff]
        %v1426 = vld [vmem:[%s1410 + $0x78] sm:$0xff]
        %1427 = vmatprep.subr.mxu0 0.0
        %1428 = vmatpush1.msra.mxu0 %v1426
        %1429 = vmatprep.subr.mxu0 0.0
        %1430 = vmatpush1.msra.mxu0 %v1425
        %1431 = vmatprep.subr.mxu0 0.0
        %1432 = vmatpush1.msra.mxu0 %v1424
        %1433 = vmatprep.subr.mxu0 0.0
        %1434 = vmatpush1.msra.mxu0 %v1423
        %1435 = vmatprep.subr.mxu0 0.0
        %1436 = vmatpush1.msra.mxu0 %v1422
        %1437 = vmatprep.subr.mxu0 0.0
        %1438 = vmatpush1.msra.mxu0 %v1421
        %1439 = vmatprep.subr.mxu0 0.0
        %1440 = vmatpush1.msra.mxu0 %v1420
        %1441 = vmatprep.subr.mxu0 0.0
        %1442 = vmatpush1.msra.mxu0 %v1419
        %1443 = vmatprep.subr.mxu0 0.0
        %1444 = vmatpush1.msra.mxu0 %v1418
        %1445 = vmatprep.subr.mxu0 0.0
        %1446 = vmatpush1.msra.mxu0 %v1417
        %1447 = vmatprep.subr.mxu0 0.0
        %1448 = vmatpush1.msra.mxu0 %v1416
        %1449 = vmatprep.subr.mxu0 0.0
        %1450 = vmatpush1.msra.mxu0 %v1415
        %1451 = vmatprep.subr.mxu0 0.0
        %1452 = vmatpush1.msra.mxu0 %v1414
        %1453 = vmatprep.subr.mxu0 0.0
        %1454 = vmatpush1.msra.mxu0 %v1413
        %1455 = vmatprep.subr.mxu0 0.0
        %1456 = vmatpush1.msra.mxu0 %v1412
        %1457 = vmatprep.subr.mxu0 0.0
        %1458 = vmatpush1.msra.mxu0 %v1411
        %1459 = vmatprep.subr.mxu0 0.0
        %1460 = vmatpush2.msra.mxu0 0.0
        %1461 = vmatprep.subr.mxu0 0.0
        %1462 = vmatpush2.msra.mxu0 0.0
        %1463 = vmatprep.subr.mxu0 0.0
        %1464 = vmatpush2.msra.mxu0 0.0
        %1465 = vmatprep.subr.mxu0 0.0
        %1466 = vmatpush2.msra.mxu0 0.0
        %1467 = vmatprep.subr.mxu0 0.0
        %1468 = vmatpush2.msra.mxu0 0.0
        %1469 = vmatprep.subr.mxu0 0.0
        %1470 = vmatpush2.msra.mxu0 0.0
        %1471 = vmatprep.subr.mxu0 0.0
        %1472 = vmatpush2.msra.mxu0 0.0
        %1473 = vmatprep.subr.mxu0 0.0
        %1474 = vmatpush2.msra.mxu0 0.0
        %1475 = vmatprep.subr.mxu0 0.0
        %1476 = vmatpush2.msra.mxu0 0.0
        %1477 = vmatprep.subr.mxu0 0.0
        %1478 = vmatpush2.msra.mxu0 0.0
        %1479 = vmatprep.subr.mxu0 0.0
        %1480 = vmatpush2.msra.mxu0 0.0
        %1481 = vmatprep.subr.mxu0 0.0
        %1482 = vmatpush2.msra.mxu0 0.0
        %1483 = vmatprep.subr.mxu0 0.0
        %1484 = vmatpush2.msra.mxu0 0.0
        %1485 = vmatprep.subr.mxu0 0.0
        %1486 = vmatpush2.msra.mxu0 0.0
        %1487 = vmatprep.subr.mxu0 0.0
        %1488 = vmatpush2.msra.mxu0 0.0
        %1489 = vmatprep.subr.mxu0 0.0
        %1490 = vmatpush2.msra.mxu0 0.0
        %1491 = vmatprep.mubr.f32.mxu0 0.0
        %1492 = vmatmul.mubr.f32.gmra.mxu0 %v1356
        %v1493 = vpop.f32.mrf.mxu0
        %v1494 = vadd.f32 0.0, %v1493
        %v1495 = vpop.f32.mrf.mxu0
        %1496 = vmatprep.mubr.f32.mxu0 0.0
        %1497 = vmatmul.mubr.f32.gmra.mxu0 %v1358
        %v1498 = vpop.f32.mrf.mxu0
        %v1499 = vadd.f32 0.0, %v1498
        %v1500 = vpop.f32.mrf.mxu0
        %1501 = vmatprep.mubr.f32.mxu0 0.0
        %1502 = vmatmul.mubr.f32.gmra.mxu0 %v1361
        %v1503 = vpop.f32.mrf.mxu0
        %v1504 = vadd.f32 0.0, %v1503
        %v1505 = vpop.f32.mrf.mxu0
        %1506 = vmatprep.mubr.f32.mxu0 0.0
        %1507 = vmatmul.mubr.f32.gmra.mxu0 %v1363
        %v1508 = vpop.f32.mrf.mxu0
        %v1509 = vadd.f32 0.0, %v1508
        %v1510 = vpop.f32.mrf.mxu0
        %1511 = vmatprep.mubr.f32.mxu0 0.0
        %1512 = vmatmul.mubr.f32.gmra.mxu0 %v1366
        %v1513 = vpop.f32.mrf.mxu0
        %v1514 = vadd.f32 0.0, %v1513
        %v1515 = vpop.f32.mrf.mxu0
        %1516 = vmatprep.mubr.f32.mxu0 0.0
        %1517 = vmatmul.mubr.f32.gmra.mxu0 %v1368
        %v1518 = vpop.f32.mrf.mxu0
        %v1519 = vadd.f32 0.0, %v1518
        %v1520 = vpop.f32.mrf.mxu0
        %1521 = vmatprep.mubr.f32.mxu0 0.0
        %1522 = vmatmul.mubr.f32.gmra.mxu0 %v1371
        %v1523 = vpop.f32.mrf.mxu0
        %v1524 = vadd.f32 0.0, %v1523
        %v1525 = vpop.f32.mrf.mxu0
        %1526 = vmatprep.mubr.f32.mxu0 0.0
        %1527 = vmatmul.mubr.f32.gmra.mxu0 %v1373
        %v1528 = vpop.f32.mrf.mxu0
        %v1529 = vadd.f32 0.0, %v1528
        %v1530 = vpop.f32.mrf.mxu0
        %1531 = vmatprep.mubr.f32.mxu0 0.0
        %1532 = vmatmul.mubr.f32.gmra.mxu0 %v1376
        %v1533 = vpop.f32.mrf.mxu0
        %v1534 = vadd.f32 0.0, %v1533
        %v1535 = vpop.f32.mrf.mxu0
        %1536 = vmatprep.mubr.f32.mxu0 0.0
        %1537 = vmatmul.mubr.f32.gmra.mxu0 %v1378
        %v1538 = vpop.f32.mrf.mxu0
        %v1539 = vadd.f32 0.0, %v1538
        %v1540 = vpop.f32.mrf.mxu0
        %1541 = vmatprep.mubr.f32.mxu0 0.0
        %1542 = vmatmul.mubr.f32.gmra.mxu0 %v1381
        %v1543 = vpop.f32.mrf.mxu0
        %v1544 = vadd.f32 0.0, %v1543
        %v1545 = vpop.f32.mrf.mxu0
        %1546 = vmatprep.mubr.f32.mxu0 0.0
        %1547 = vmatmul.mubr.f32.gmra.mxu0 %v1383
        %v1548 = vpop.f32.mrf.mxu0
        %v1549 = vadd.f32 0.0, %v1548
        %v1550 = vpop.f32.mrf.mxu0
        %1551 = vmatprep.mubr.f32.mxu0 0.0
        %1552 = vmatmul.mubr.f32.gmra.mxu0 %v1386
        %v1553 = vpop.f32.mrf.mxu0
        %v1554 = vadd.f32 0.0, %v1553
        %v1555 = vpop.f32.mrf.mxu0
        %1556 = vmatprep.mubr.f32.mxu0 0.0
        %1557 = vmatmul.mubr.f32.gmra.mxu0 %v1388
        %v1558 = vpop.f32.mrf.mxu0
        %v1559 = vadd.f32 0.0, %v1558
        %v1560 = vpop.f32.mrf.mxu0
        %1561 = vmatprep.mubr.f32.mxu0 0.0
        %1562 = vmatmul.mubr.f32.gmra.mxu0 %v1391
        %v1563 = vpop.f32.mrf.mxu0
        %v1564 = vadd.f32 0.0, %v1563
        %v1565 = vpop.f32.mrf.mxu0
        %1566 = vmatprep.mubr.f32.mxu0 0.0
        %1567 = vmatmul.mubr.f32.gmra.mxu0 %v1393
        %v1568 = vpop.f32.mrf.mxu0
        %v1569 = vadd.f32 0.0, %v1568
        %v1570 = vpop.f32.mrf.mxu0
        %1571 = vdwg.mxu0
        %v1572 = vadd.f32 %v1337, %v1494
        %v1573 = vadd.f32 %v1338, %v1499
        %v1574 = vadd.f32 %v1339, %v1504
        %v1575 = vadd.f32 %v1340, %v1509
        %v1576 = vadd.f32 %v1341, %v1514
        %v1577 = vadd.f32 %v1342, %v1519
        %v1578 = vadd.f32 %v1343, %v1524
        %v1579 = vadd.f32 %v1344, %v1529
        %v1580 = vadd.f32 %v1345, %v1534
        %v1581 = vadd.f32 %v1346, %v1539
        %v1582 = vadd.f32 %v1347, %v1544
        %v1583 = vadd.f32 %v1348, %v1549
        %v1584 = vadd.f32 %v1349, %v1554
        %v1585 = vadd.f32 %v1350, %v1559
        %v1586 = vadd.f32 %v1351, %v1564
        %v1587 = vadd.f32 %v1352, %v1569
        %v1588 = vrot.slane %v211, 2
        %v1589 = vrot.slane %v212, 2
        %v1590 = vsel %vm1353, %v1588, %v1589
        %v1591 = vrot.slane %v213, 2
        %v1592 = vsel %vm1353, %v1589, %v1591
        %s1595 = scalar_lea.vmem %s1, 640
        %v1596 = vld [vmem:[%s1595] sm:$0xff]
        %v1597 = vld [vmem:[%s1595 + $0x8] sm:$0xff]
        %v1598 = vld [vmem:[%s1595 + $0x10] sm:$0xff]
        %v1599 = vld [vmem:[%s1595 + $0x18] sm:$0xff]
        %v1600 = vld [vmem:[%s1595 + $0x20] sm:$0xff]
        %v1601 = vld [vmem:[%s1595 + $0x28] sm:$0xff]
        %v1602 = vld [vmem:[%s1595 + $0x30] sm:$0xff]
        %v1603 = vld [vmem:[%s1595 + $0x38] sm:$0xff]
        %v1604 = vld [vmem:[%s1595 + $0x40] sm:$0xff]
        %v1605 = vld [vmem:[%s1595 + $0x48] sm:$0xff]
        %v1606 = vld [vmem:[%s1595 + $0x50] sm:$0xff]
        %v1607 = vld [vmem:[%s1595 + $0x58] sm:$0xff]
        %v1608 = vld [vmem:[%s1595 + $0x60] sm:$0xff]
        %v1609 = vld [vmem:[%s1595 + $0x68] sm:$0xff]
        %v1610 = vld [vmem:[%s1595 + $0x70] sm:$0xff]
        %v1611 = vld [vmem:[%s1595 + $0x78] sm:$0xff]
        %1612 = vmatprep.subr.mxu0 0.0
        %1613 = vmatpush1.msra.mxu0 %v1611
        %1614 = vmatprep.subr.mxu0 0.0
        %1615 = vmatpush1.msra.mxu0 %v1610
        %1616 = vmatprep.subr.mxu0 0.0
        %1617 = vmatpush1.msra.mxu0 %v1609
        %1618 = vmatprep.subr.mxu0 0.0
        %1619 = vmatpush1.msra.mxu0 %v1608
        %1620 = vmatprep.subr.mxu0 0.0
        %1621 = vmatpush1.msra.mxu0 %v1607
        %1622 = vmatprep.subr.mxu0 0.0
        %1623 = vmatpush1.msra.mxu0 %v1606
        %1624 = vmatprep.subr.mxu0 0.0
        %1625 = vmatpush1.msra.mxu0 %v1605
        %1626 = vmatprep.subr.mxu0 0.0
        %1627 = vmatpush1.msra.mxu0 %v1604
        %1628 = vmatprep.subr.mxu0 0.0
        %1629 = vmatpush1.msra.mxu0 %v1603
        %1630 = vmatprep.subr.mxu0 0.0
        %1631 = vmatpush1.msra.mxu0 %v1602
        %1632 = vmatprep.subr.mxu0 0.0
        %1633 = vmatpush1.msra.mxu0 %v1601
        %1634 = vmatprep.subr.mxu0 0.0
        %1635 = vmatpush1.msra.mxu0 %v1600
        %1636 = vmatprep.subr.mxu0 0.0
        %1637 = vmatpush1.msra.mxu0 %v1599
        %1638 = vmatprep.subr.mxu0 0.0
        %1639 = vmatpush1.msra.mxu0 %v1598
        %1640 = vmatprep.subr.mxu0 0.0
        %1641 = vmatpush1.msra.mxu0 %v1597
        %1642 = vmatprep.subr.mxu0 0.0
        %1643 = vmatpush1.msra.mxu0 %v1596
        %1644 = vmatprep.subr.mxu0 0.0
        %1645 = vmatpush2.msra.mxu0 0.0
        %1646 = vmatprep.subr.mxu0 0.0
        %1647 = vmatpush2.msra.mxu0 0.0
        %1648 = vmatprep.subr.mxu0 0.0
        %1649 = vmatpush2.msra.mxu0 0.0
        %1650 = vmatprep.subr.mxu0 0.0
        %1651 = vmatpush2.msra.mxu0 0.0
        %1652 = vmatprep.subr.mxu0 0.0
        %1653 = vmatpush2.msra.mxu0 0.0
        %1654 = vmatprep.subr.mxu0 0.0
        %1655 = vmatpush2.msra.mxu0 0.0
        %1656 = vmatprep.subr.mxu0 0.0
        %1657 = vmatpush2.msra.mxu0 0.0
        %1658 = vmatprep.subr.mxu0 0.0
        %1659 = vmatpush2.msra.mxu0 0.0
        %1660 = vmatprep.subr.mxu0 0.0
        %1661 = vmatpush2.msra.mxu0 0.0
        %1662 = vmatprep.subr.mxu0 0.0
        %1663 = vmatpush2.msra.mxu0 0.0
        %1664 = vmatprep.subr.mxu0 0.0
        %1665 = vmatpush2.msra.mxu0 0.0
        %1666 = vmatprep.subr.mxu0 0.0
        %1667 = vmatpush2.msra.mxu0 0.0
        %1668 = vmatprep.subr.mxu0 0.0
        %1669 = vmatpush2.msra.mxu0 0.0
        %1670 = vmatprep.subr.mxu0 0.0
        %1671 = vmatpush2.msra.mxu0 0.0
        %1672 = vmatprep.subr.mxu0 0.0
        %1673 = vmatpush2.msra.mxu0 0.0
        %1674 = vmatprep.subr.mxu0 0.0
        %1675 = vmatpush2.msra.mxu0 0.0
        %1676 = vmatprep.mubr.f32.mxu0 0.0
        %1677 = vmatmul.mubr.f32.gmra.mxu0 %v1361
        %v1678 = vpop.f32.mrf.mxu0
        %v1679 = vadd.f32 0.0, %v1678
        %v1680 = vpop.f32.mrf.mxu0
        %1681 = vmatprep.mubr.f32.mxu0 0.0
        %1682 = vmatmul.mubr.f32.gmra.mxu0 %v1363
        %v1683 = vpop.f32.mrf.mxu0
        %v1684 = vadd.f32 0.0, %v1683
        %v1685 = vpop.f32.mrf.mxu0
        %1686 = vmatprep.mubr.f32.mxu0 0.0
        %1687 = vmatmul.mubr.f32.gmra.mxu0 %v1366
        %v1688 = vpop.f32.mrf.mxu0
        %v1689 = vadd.f32 0.0, %v1688
        %v1690 = vpop.f32.mrf.mxu0
        %1691 = vmatprep.mubr.f32.mxu0 0.0
        %1692 = vmatmul.mubr.f32.gmra.mxu0 %v1368
        %v1693 = vpop.f32.mrf.mxu0
        %v1694 = vadd.f32 0.0, %v1693
        %v1695 = vpop.f32.mrf.mxu0
        %1696 = vmatprep.mubr.f32.mxu0 0.0
        %1697 = vmatmul.mubr.f32.gmra.mxu0 %v1371
        %v1698 = vpop.f32.mrf.mxu0
        %v1699 = vadd.f32 0.0, %v1698
        %v1700 = vpop.f32.mrf.mxu0
        %1701 = vmatprep.mubr.f32.mxu0 0.0
        %1702 = vmatmul.mubr.f32.gmra.mxu0 %v1373
        %v1703 = vpop.f32.mrf.mxu0
        %v1704 = vadd.f32 0.0, %v1703
        %v1705 = vpop.f32.mrf.mxu0
        %1706 = vmatprep.mubr.f32.mxu0 0.0
        %1707 = vmatmul.mubr.f32.gmra.mxu0 %v1376
        %v1708 = vpop.f32.mrf.mxu0
        %v1709 = vadd.f32 0.0, %v1708
        %v1710 = vpop.f32.mrf.mxu0
        %1711 = vmatprep.mubr.f32.mxu0 0.0
        %1712 = vmatmul.mubr.f32.gmra.mxu0 %v1378
        %v1713 = vpop.f32.mrf.mxu0
        %v1714 = vadd.f32 0.0, %v1713
        %v1715 = vpop.f32.mrf.mxu0
        %1716 = vmatprep.mubr.f32.mxu0 0.0
        %1717 = vmatmul.mubr.f32.gmra.mxu0 %v1381
        %v1718 = vpop.f32.mrf.mxu0
        %v1719 = vadd.f32 0.0, %v1718
        %v1720 = vpop.f32.mrf.mxu0
        %1721 = vmatprep.mubr.f32.mxu0 0.0
        %1722 = vmatmul.mubr.f32.gmra.mxu0 %v1383
        %v1723 = vpop.f32.mrf.mxu0
        %v1724 = vadd.f32 0.0, %v1723
        %v1725 = vpop.f32.mrf.mxu0
        %1726 = vmatprep.mubr.f32.mxu0 0.0
        %1727 = vmatmul.mubr.f32.gmra.mxu0 %v1386
        %v1728 = vpop.f32.mrf.mxu0
        %v1729 = vadd.f32 0.0, %v1728
        %v1730 = vpop.f32.mrf.mxu0
        %1731 = vmatprep.mubr.f32.mxu0 0.0
        %1732 = vmatmul.mubr.f32.gmra.mxu0 %v1388
        %v1733 = vpop.f32.mrf.mxu0
        %v1734 = vadd.f32 0.0, %v1733
        %v1735 = vpop.f32.mrf.mxu0
        %1736 = vmatprep.mubr.f32.mxu0 0.0
        %1737 = vmatmul.mubr.f32.gmra.mxu0 %v1391
        %v1738 = vpop.f32.mrf.mxu0
        %v1739 = vadd.f32 0.0, %v1738
        %v1740 = vpop.f32.mrf.mxu0
        %1741 = vmatprep.mubr.f32.mxu0 0.0
        %1742 = vmatmul.mubr.f32.gmra.mxu0 %v1393
        %v1743 = vpop.f32.mrf.mxu0
        %v1744 = vadd.f32 0.0, %v1743
        %v1745 = vpop.f32.mrf.mxu0
        %1746 = vmatprep.mubr.f32.mxu0 0.0
        %1747 = vmatmul.mubr.f32.gmra.mxu0 %v1590
        %v1748 = vpop.f32.mrf.mxu0
        %v1749 = vadd.f32 0.0, %v1748
        %v1750 = vpop.f32.mrf.mxu0
        %1751 = vmatprep.mubr.f32.mxu0 0.0
        %1752 = vmatmul.mubr.f32.gmra.mxu0 %v1592
        %v1753 = vpop.f32.mrf.mxu0
        %v1754 = vadd.f32 0.0, %v1753
        %v1755 = vpop.f32.mrf.mxu0
        %1756 = vdwg.mxu0
        %v1757 = vadd.f32 %v1572, %v1679
        %v1758 = vadd.f32 %v1573, %v1684
        %v1759 = vadd.f32 %v1574, %v1689
        %v1760 = vadd.f32 %v1575, %v1694
        %v1761 = vadd.f32 %v1576, %v1699
        %v1762 = vadd.f32 %v1577, %v1704
        %v1763 = vadd.f32 %v1578, %v1709
        %v1764 = vadd.f32 %v1579, %v1714
        %v1765 = vadd.f32 %v1580, %v1719
        %v1766 = vadd.f32 %v1581, %v1724
        %v1767 = vadd.f32 %v1582, %v1729
        %v1768 = vadd.f32 %v1583, %v1734
        %v1769 = vadd.f32 %v1584, %v1739
        %v1770 = vadd.f32 %v1585, %v1744
        %v1771 = vadd.f32 %v1586, %v1749
        %v1772 = vadd.f32 %v1587, %v1754
        %v1773 = vrot.slane %v214, 2
        %v1774 = vrot.slane %v215, 2
        %v1775 = vsel %vm1353, %v1773, %v1774
        %v1776 = vrot.slane %v216, 2
        %v1777 = vsel %vm1353, %v1774, %v1776
        %s1780 = scalar_lea.vmem %s1, 1024
        %v1781 = vld [vmem:[%s1780] sm:$0xff]
        %v1782 = vld [vmem:[%s1780 + $0x8] sm:$0xff]
        %v1783 = vld [vmem:[%s1780 + $0x10] sm:$0xff]
        %v1784 = vld [vmem:[%s1780 + $0x18] sm:$0xff]
        %v1785 = vld [vmem:[%s1780 + $0x20] sm:$0xff]
        %v1786 = vld [vmem:[%s1780 + $0x28] sm:$0xff]
        %v1787 = vld [vmem:[%s1780 + $0x30] sm:$0xff]
        %v1788 = vld [vmem:[%s1780 + $0x38] sm:$0xff]
        %v1789 = vld [vmem:[%s1780 + $0x40] sm:$0xff]
        %v1790 = vld [vmem:[%s1780 + $0x48] sm:$0xff]
        %v1791 = vld [vmem:[%s1780 + $0x50] sm:$0xff]
        %v1792 = vld [vmem:[%s1780 + $0x58] sm:$0xff]
        %v1793 = vld [vmem:[%s1780 + $0x60] sm:$0xff]
        %v1794 = vld [vmem:[%s1780 + $0x68] sm:$0xff]
        %v1795 = vld [vmem:[%s1780 + $0x70] sm:$0xff]
        %v1796 = vld [vmem:[%s1780 + $0x78] sm:$0xff]
        %1797 = vmatprep.subr.mxu0 0.0
        %1798 = vmatpush1.msra.mxu0 %v1796
        %1799 = vmatprep.subr.mxu0 0.0
        %1800 = vmatpush1.msra.mxu0 %v1795
        %1801 = vmatprep.subr.mxu0 0.0
        %1802 = vmatpush1.msra.mxu0 %v1794
        %1803 = vmatprep.subr.mxu0 0.0
        %1804 = vmatpush1.msra.mxu0 %v1793
        %1805 = vmatprep.subr.mxu0 0.0
        %1806 = vmatpush1.msra.mxu0 %v1792
        %1807 = vmatprep.subr.mxu0 0.0
        %1808 = vmatpush1.msra.mxu0 %v1791
        %1809 = vmatprep.subr.mxu0 0.0
        %1810 = vmatpush1.msra.mxu0 %v1790
        %1811 = vmatprep.subr.mxu0 0.0
        %1812 = vmatpush1.msra.mxu0 %v1789
        %1813 = vmatprep.subr.mxu0 0.0
        %1814 = vmatpush1.msra.mxu0 %v1788
        %1815 = vmatprep.subr.mxu0 0.0
        %1816 = vmatpush1.msra.mxu0 %v1787
        %1817 = vmatprep.subr.mxu0 0.0
        %1818 = vmatpush1.msra.mxu0 %v1786
        %1819 = vmatprep.subr.mxu0 0.0
        %1820 = vmatpush1.msra.mxu0 %v1785
        %1821 = vmatprep.subr.mxu0 0.0
        %1822 = vmatpush1.msra.mxu0 %v1784
        %1823 = vmatprep.subr.mxu0 0.0
        %1824 = vmatpush1.msra.mxu0 %v1783
        %1825 = vmatprep.subr.mxu0 0.0
        %1826 = vmatpush1.msra.mxu0 %v1782
        %1827 = vmatprep.subr.mxu0 0.0
        %1828 = vmatpush1.msra.mxu0 %v1781
        %1829 = vmatprep.subr.mxu0 0.0
        %1830 = vmatpush2.msra.mxu0 0.0
        %1831 = vmatprep.subr.mxu0 0.0
        %1832 = vmatpush2.msra.mxu0 0.0
        %1833 = vmatprep.subr.mxu0 0.0
        %1834 = vmatpush2.msra.mxu0 0.0
        %1835 = vmatprep.subr.mxu0 0.0
        %1836 = vmatpush2.msra.mxu0 0.0
        %1837 = vmatprep.subr.mxu0 0.0
        %1838 = vmatpush2.msra.mxu0 0.0
        %1839 = vmatprep.subr.mxu0 0.0
        %1840 = vmatpush2.msra.mxu0 0.0
        %1841 = vmatprep.subr.mxu0 0.0
        %1842 = vmatpush2.msra.mxu0 0.0
        %1843 = vmatprep.subr.mxu0 0.0
        %1844 = vmatpush2.msra.mxu0 0.0
        %1845 = vmatprep.subr.mxu0 0.0
        %1846 = vmatpush2.msra.mxu0 0.0
        %1847 = vmatprep.subr.mxu0 0.0
        %1848 = vmatpush2.msra.mxu0 0.0
        %1849 = vmatprep.subr.mxu0 0.0
        %1850 = vmatpush2.msra.mxu0 0.0
        %1851 = vmatprep.subr.mxu0 0.0
        %1852 = vmatpush2.msra.mxu0 0.0
        %1853 = vmatprep.subr.mxu0 0.0
        %1854 = vmatpush2.msra.mxu0 0.0
        %1855 = vmatprep.subr.mxu0 0.0
        %1856 = vmatpush2.msra.mxu0 0.0
        %1857 = vmatprep.subr.mxu0 0.0
        %1858 = vmatpush2.msra.mxu0 0.0
        %1859 = vmatprep.subr.mxu0 0.0
        %1860 = vmatpush2.msra.mxu0 0.0
        %1861 = vmatprep.mubr.f32.mxu0 0.0
        %1862 = vmatmul.mubr.f32.gmra.mxu0 %v1366
        %v1863 = vpop.f32.mrf.mxu0
        %v1864 = vadd.f32 0.0, %v1863
        %v1865 = vpop.f32.mrf.mxu0
        %1866 = vmatprep.mubr.f32.mxu0 0.0
        %1867 = vmatmul.mubr.f32.gmra.mxu0 %v1368
        %v1868 = vpop.f32.mrf.mxu0
        %v1869 = vadd.f32 0.0, %v1868
        %v1870 = vpop.f32.mrf.mxu0
        %1871 = vmatprep.mubr.f32.mxu0 0.0
        %1872 = vmatmul.mubr.f32.gmra.mxu0 %v1371
        %v1873 = vpop.f32.mrf.mxu0
        %v1874 = vadd.f32 0.0, %v1873
        %v1875 = vpop.f32.mrf.mxu0
        %1876 = vmatprep.mubr.f32.mxu0 0.0
        %1877 = vmatmul.mubr.f32.gmra.mxu0 %v1373
        %v1878 = vpop.f32.mrf.mxu0
        %v1879 = vadd.f32 0.0, %v1878
        %v1880 = vpop.f32.mrf.mxu0
        %1881 = vmatprep.mubr.f32.mxu0 0.0
        %1882 = vmatmul.mubr.f32.gmra.mxu0 %v1376
        %v1883 = vpop.f32.mrf.mxu0
        %v1884 = vadd.f32 0.0, %v1883
        %v1885 = vpop.f32.mrf.mxu0
        %1886 = vmatprep.mubr.f32.mxu0 0.0
        %1887 = vmatmul.mubr.f32.gmra.mxu0 %v1378
        %v1888 = vpop.f32.mrf.mxu0
        %v1889 = vadd.f32 0.0, %v1888
        %v1890 = vpop.f32.mrf.mxu0
        %1891 = vmatprep.mubr.f32.mxu0 0.0
        %1892 = vmatmul.mubr.f32.gmra.mxu0 %v1381
        %v1893 = vpop.f32.mrf.mxu0
        %v1894 = vadd.f32 0.0, %v1893
        %v1895 = vpop.f32.mrf.mxu0
        %1896 = vmatprep.mubr.f32.mxu0 0.0
        %1897 = vmatmul.mubr.f32.gmra.mxu0 %v1383
        %v1898 = vpop.f32.mrf.mxu0
        %v1899 = vadd.f32 0.0, %v1898
        %v1900 = vpop.f32.mrf.mxu0
        %1901 = vmatprep.mubr.f32.mxu0 0.0
        %1902 = vmatmul.mubr.f32.gmra.mxu0 %v1386
        %v1903 = vpop.f32.mrf.mxu0
        %v1904 = vadd.f32 0.0, %v1903
        %v1905 = vpop.f32.mrf.mxu0
        %1906 = vmatprep.mubr.f32.mxu0 0.0
        %1907 = vmatmul.mubr.f32.gmra.mxu0 %v1388
        %v1908 = vpop.f32.mrf.mxu0
        %v1909 = vadd.f32 0.0, %v1908
        %v1910 = vpop.f32.mrf.mxu0
        %1911 = vmatprep.mubr.f32.mxu0 0.0
        %1912 = vmatmul.mubr.f32.gmra.mxu0 %v1391
        %v1913 = vpop.f32.mrf.mxu0
        %v1914 = vadd.f32 0.0, %v1913
        %v1915 = vpop.f32.mrf.mxu0
        %1916 = vmatprep.mubr.f32.mxu0 0.0
        %1917 = vmatmul.mubr.f32.gmra.mxu0 %v1393
        %v1918 = vpop.f32.mrf.mxu0
        %v1919 = vadd.f32 0.0, %v1918
        %v1920 = vpop.f32.mrf.mxu0
        %1921 = vmatprep.mubr.f32.mxu0 0.0
        %1922 = vmatmul.mubr.f32.gmra.mxu0 %v1590
        %v1923 = vpop.f32.mrf.mxu0
        %v1924 = vadd.f32 0.0, %v1923
        %v1925 = vpop.f32.mrf.mxu0
        %1926 = vmatprep.mubr.f32.mxu0 0.0
        %1927 = vmatmul.mubr.f32.gmra.mxu0 %v1592
        %v1928 = vpop.f32.mrf.mxu0
        %v1929 = vadd.f32 0.0, %v1928
        %v1930 = vpop.f32.mrf.mxu0
        %1931 = vmatprep.mubr.f32.mxu0 0.0
        %1932 = vmatmul.mubr.f32.gmra.mxu0 %v1775
        %v1933 = vpop.f32.mrf.mxu0
        %v1934 = vadd.f32 0.0, %v1933
        %v1935 = vpop.f32.mrf.mxu0
        %1936 = vmatprep.mubr.f32.mxu0 0.0
        %1937 = vmatmul.mubr.f32.gmra.mxu0 %v1777
        %v1938 = vpop.f32.mrf.mxu0
        %v1939 = vadd.f32 0.0, %v1938
        %v1940 = vpop.f32.mrf.mxu0
        %1941 = vdwg.mxu0
        %v1942 = vadd.f32 %v1757, %v1864
        %v1943 = vadd.f32 %v1758, %v1869
        %v1944 = vadd.f32 %v1759, %v1874
        %v1945 = vadd.f32 %v1760, %v1879
        %v1946 = vadd.f32 %v1761, %v1884
        %v1947 = vadd.f32 %v1762, %v1889
        %v1948 = vadd.f32 %v1763, %v1894
        %v1949 = vadd.f32 %v1764, %v1899
        %v1950 = vadd.f32 %v1765, %v1904
        %v1951 = vadd.f32 %v1766, %v1909
        %v1952 = vadd.f32 %v1767, %v1914
        %v1953 = vadd.f32 %v1768, %v1919
        %v1954 = vadd.f32 %v1769, %v1924
        %v1955 = vadd.f32 %v1770, %v1929
        %v1956 = vadd.f32 %v1771, %v1934
        %v1957 = vadd.f32 %v1772, %v1939
        %v1958 = vld [vmem:[%s2] sm:$0x1]
        %v1960 = vlaneseq
        %v1961 = vshrl.u32 %v1960, 7
        %v1962 = vsub.s32 0, %v1961
        %v1963 = vrot.slane %v1958, %v1962
        %v1965 = vadd.f32 %v1942, %v1963
        %v1966 = vadd.f32 %v1943, %v1963
        %v1967 = vadd.f32 %v1944, %v1963
        %v1968 = vadd.f32 %v1945, %v1963
        %v1969 = vadd.f32 %v1946, %v1963
        %v1970 = vadd.f32 %v1947, %v1963
        %v1971 = vadd.f32 %v1948, %v1963
        %v1972 = vadd.f32 %v1949, %v1963
        %v1973 = vadd.f32 %v1950, %v1963
        %v1974 = vadd.f32 %v1951, %v1963
        %v1975 = vadd.f32 %v1952, %v1963
        %v1976 = vadd.f32 %v1953, %v1963
        %v1977 = vadd.f32 %v1954, %v1963
        %v1978 = vadd.f32 %v1955, %v1963
        %v1979 = vadd.f32 %v1956, %v1963
        %v1980 = vadd.f32 %v1957, %v1963
        %1981 = vst [vmem:[%s177] sm:$0xff] %v1965
        %1982 = vst [vmem:[%s177 + $0x8] sm:$0xff] %v1966
        %1983 = vst [vmem:[%s177 + $0x10] sm:$0xff] %v1967
        %1984 = vst [vmem:[%s177 + $0x18] sm:$0xff] %v1968
        %1985 = vst [vmem:[%s177 + $0x20] sm:$0xff] %v1969
        %1986 = vst [vmem:[%s177 + $0x28] sm:$0xff] %v1970
        %1987 = vst [vmem:[%s177 + $0x30] sm:$0xff] %v1971
        %1988 = vst [vmem:[%s177 + $0x38] sm:$0xff] %v1972
        %1989 = vst [vmem:[%s177 + $0x40] sm:$0xff] %v1973
        %1990 = vst [vmem:[%s177 + $0x48] sm:$0xff] %v1974
        %1991 = vst [vmem:[%s177 + $0x50] sm:$0xff] %v1975
        %1992 = vst [vmem:[%s177 + $0x58] sm:$0xff] %v1976
        %1993 = vst [vmem:[%s177 + $0x60] sm:$0xff] %v1977
        %1994 = vst [vmem:[%s177 + $0x68] sm:$0xff] %v1978
        %1995 = vst [vmem:[%s177 + $0x70] sm:$0xff] %v1979
        %1996 = vst [vmem:[%s177 + $0x78] sm:$0xff] %v1980
        %s1997 = sand.u32 %s107, 1
        %s1998 = scalar_lea.sflag [#allocation3], %s1997
        %s1999 = sand.u32 %s107, 1
        %s2000 = smul.addr %s1999, 128
        %s2001 = scalar_lea.vmem [#allocation2], %s2000
        // Predicated region
        $region33: #{tpu_custom_call.1} parent=31 // pred_check
          %p2002 = pneg %p117
        $region34: #{tpu_custom_call.1} parent=31 // pred_check_branch
          %2004 = sbr.rel (%p2002) target = $region36
        $region35: #{tpu_custom_call.1} parent=31 // pred_region
          %s2005 = smul.u32 16, %s22
          %s2007 = ssub.s32 2048, 2048
          %2008 = vsyncadd %s1998, %s2007
          %s2009 = smul.addr %s21, 32
          %s2010 = sadd.s32 %s2005, %s2009
          %s2011 = smul.addr %s2010, 128
          %s2012 = scalar_lea.hbm %s3, %s2011
          %s2013 = sshll.u32 %s2001, 4
          %s2014 = int_to_ptr.vmem [resolvable:$true] %s2013
          %2019 = dma.vmem_to_hbm [thread:$0]  %s2014, 2048, %s2012, %s1998, 128, 128, 8
        $region36: #{tpu_custom_call.1} parent=31 // pred_fallthru
          _
      $region32: #{tpu_custom_call.1} parent=5 // pred_fallthru
        _
      %p2020 = scmp.le.s32.totalorder 2, %s12
      // Predicated region
      $region37: #{tpu_custom_call.1} parent=5 // pred_check
        %p2021 = pneg %p2020
      $region38: #{tpu_custom_call.1} parent=5 // pred_check_branch
        %2023 = sbr.rel (%p2021) target = $region40
      $region39: #{tpu_custom_call.1} parent=5 // pred_region
        %s2024 = ssub.s32 %s12, 2
        // Predicated region
        $region41: #{tpu_custom_call.1} parent=39 // pred_check
          %p2025 = pneg %p123
        $region42: #{tpu_custom_call.1} parent=39 // pred_check_branch
          %2027 = sbr.rel (%p2025) target = $region44
        $region43: #{tpu_custom_call.1} parent=39 // pred_region
          %s2028 = sand.u32 %s108, 1
          %s2029 = scalar_lea.sflag [#allocation3], %s2028
          %s2030 = sand.u32 %s108, 1
          %s2031 = smul.addr %s2030, 128
          %s2032 = scalar_lea.vmem [#allocation2], %s2031
          %2033 = dma.done %s2029, 2048
        $region44: #{tpu_custom_call.1} parent=39 // pred_fallthru
          _
      $region40: #{tpu_custom_call.1} parent=5 // pred_fallthru
        _
    $region6: #{tpu_custom_call.1} parent=1 // loop_footer
      %s16 = sadd.s32 1, %s12
    $region7: #{tpu_custom_call.1} parent=1 // loop_footer_branch
      %11 = sbr.rel target = $region3
    $region8: #{tpu_custom_call.1} parent=1 // loop_exit
      _
    %2034 = vsyncpa [#allocation3], 1
    %s2035 = scalar_lea.sflag [#allocation3], 1
    %2036 = vsyncpa %s2035, 1

// kernel: tpu_custom_call.1
$region0: #{tpu_custom_call.1}
  #allocation0 [shape = 'u32[]', space=smem, size = 0x4, offset = 0x4, fixed_abs, tag = 'smem constant byte address 0x4 - core index']
  #allocation1 [shape = 'u32[144,128]{1,0:T(1,128)}', space=vmem, size = 0x12000, scoped, tag = 'internal scratch']
  %s0 = inlined_call_operand.vmem [shape: f32[2,18,18,128], index: 0, kind: input, shape index: {}]
  %s1 = inlined_call_operand.vmem [shape: f32[9,128,128], index: 1, kind: input, shape index: {}]
  %s2 = inlined_call_operand.vmem [shape: f32[1,128], index: 2, kind: input, shape index: {}]
  %s3 = inlined_call_operand.hbm [shape: f32[2,256,128], index: 3, kind: output, shape index: {}]
  %s4 = sld [smem:[#allocation0]]
  $region45: #{tpu_custom_call.1} parent=0
    _
  %s6 = ssub.s32 1, %s4
  %s7 = scalar_select 0, %s6, %s4
  $region1: #{tpu_custom_call.1} parent=0
    #allocation2 [shape = 'u8[131072]{0}', space=vmem, size = 0x20000, scoped, tag = 'output window, operand 0']
    #allocation3 [shape = 's32[2]{0}', space=sflag, size = 0x8, scoped, tag = 'scoped memory for tpu_custom_call.1']
    %8 = vsyncpa [#allocation3], 0
    %s9 = scalar_lea.sflag [#allocation3], 1
    %10 = vsyncpa %s9, 0
    loop: start=0, step=1, limit=6
    $region2: #{tpu_custom_call.1} parent=1 // loop_pre_header
      _
    $region3: #{tpu_custom_call.1} parent=1 // loop_header
      %s12 = sphi 0, %s16
      %p13 = scmp.ge.s32.totalorder %s12, 6
      %s19 = sphi 0, %s31
      %s20 = sphi 0, %s27
      %s21 = sphi 0, %s19
      %s22 = sphi 0, %s20
      %s23 = sphi 0, %s21
      %s24 = sphi 0, %s22
      %s34 = sphi 0, %s36
      %s37 = sphi 0, %s34
      %s38 = sphi 0, %s37
      %s54 = sphi 0, %s38
      %s58 = sphi 0, %s58
      %s60 = sphi 0, %s58
      %s61 = sphi 0, %s60
      %s75 = sphi 0, %s61
      %s79 = sphi 0, %s79
      %s81 = sphi 0, %s79
      %s82 = sphi 0, %s81
      %s96 = sphi 0, %s82
      %s104 = sphi 0, %s106
      %s107 = sphi 0, %s104
      %s108 = sphi 0, %s107
      %s124 = sphi 0, %s108
    $region4: #{tpu_custom_call.1} parent=1 // loop_header_branch
      %15 = sbr.rel (%p13) target = $region8
    $region5: #{tpu_custom_call.1} parent=1 // loop_body
      %s17 = ssub.s32 %s12, 1
      %s18 = ssub.s32 %s12, 2
      %s25 = sadd.s32 1, %s20
      %p26 = scmp.ge.s32.totalorder %s25, 2
      %s27 = scalar_select %p26, 0, %s25
      %s28 = sadd.s32 1, %s19
      %s29 = scalar_select %p26, %s28, %s19
      %p30 = scmp.ge.s32.totalorder %s29, 2
      %s31 = scalar_select %p30, 0, %s29
      %s32 = ssub.s32 %s19, %s31
      %p33 = scmp.eq.s32.totalorder %s32, 0
      %s35 = sadd.s32 %s34, 1
      %s36 = scalar_select %p33, %s34, %s35
      %p39 = pneg %p33
      %p40 = scmp.eq.s32.totalorder %s12, 3
      %p41 = por %p39, %p40
      %p42 = scmp.ne.s32.totalorder %s34, %s37
      %p43 = scmp.eq.s32.totalorder %s12, 0
      %p44 = por %p42, %p43
      %p45 = scmp.ne.s32.totalorder %s34, %s37
      %p46 = scmp.eq.s32.totalorder %s17, 3
      %p47 = por %p45, %p46
      %p48 = scmp.ne.s32.totalorder %s37, %s38
      %p49 = scmp.eq.s32.totalorder %s17, 0
      %p50 = por %p48, %p49
      %p51 = scmp.ne.s32.totalorder %s37, %s38
      %p52 = scmp.eq.s32.totalorder %s18, 3
      %p53 = por %p51, %p52
      %p55 = scmp.ne.s32.totalorder %s38, %s54
      %p56 = scmp.eq.s32.totalorder %s18, 0
      %p57 = por %p55, %p56
      %s59 = sadd.s32 %s58, 1
      %p62 = scmp.eq.s32.totalorder %s12, 3
      %p63 = scmp.ne.s32.totalorder %s58, %s60
      %p64 = scmp.eq.s32.totalorder %s12, 0
      %p65 = por %p63, %p64
      %p66 = scmp.ne.s32.totalorder %s58, %s60
      %p67 = scmp.eq.s32.totalorder %s17, 3
      %p68 = por %p66, %p67
      %p69 = scmp.ne.s32.totalorder %s60, %s61
      %p70 = scmp.eq.s32.totalorder %s17, 0
      %p71 = por %p69, %p70
      %p72 = scmp.ne.s32.totalorder %s60, %s61
      %p73 = scmp.eq.s32.totalorder %s18, 3
      %p74 = por %p72, %p73
      %p76 = scmp.ne.s32.totalorder %s61, %s75
      %p77 = scmp.eq.s32.totalorder %s18, 0
      %p78 = por %p76, %p77
      %s80 = sadd.s32 %s79, 1
      %p83 = scmp.eq.s32.totalorder %s12, 3
      %p84 = scmp.ne.s32.totalorder %s79, %s81
      %p85 = scmp.eq.s32.totalorder %s12, 0
      %p86 = por %p84, %p85
      %p87 = scmp.ne.s32.totalorder %s79, %s81
      %p88 = scmp.eq.s32.totalorder %s17, 3
      %p89 = por %p87, %p88
      %p90 = scmp.ne.s32.totalorder %s81, %s82
      %p91 = scmp.eq.s32.totalorder %s17, 0
      %p92 = por %p90, %p91
      %p93 = scmp.ne.s32.totalorder %s81, %s82
      %p94 = scmp.eq.s32.totalorder %s18, 3
      %p95 = por %p93, %p94
      %p97 = scmp.ne.s32.totalorder %s82, %s96
      %p98 = scmp.eq.s32.totalorder %s18, 0
      %p99 = por %p97, %p98
      %s100 = ssub.s32 %s19, %s31
      %s101 = ssub.s32 %s20, %s27
      %s102 = sor.u32 %s100, %s101
      %p103 = scmp.eq.s32.totalorder %s102, 0
      %s105 = sadd.s32 %s104, 1
      %s106 = scalar_select %p103, %s104, %s105
      %p109 = pneg %p103
      %p110 = scmp.eq.s32.totalorder %s12, 3
      %p111 = por %p109, %p110
      %p112 = scmp.ne.s32.totalorder %s104, %s107
      %p113 = scmp.eq.s32.totalorder %s12, 0
      %p114 = por %p112, %p113
      %p115 = scmp.ne.s32.totalorder %s104, %s107
      %p116 = scmp.eq.s32.totalorder %s17, 3
      %p117 = por %p115, %p116
      %p118 = scmp.ne.s32.totalorder %s107, %s108
      %p119 = scmp.eq.s32.totalorder %s17, 0
      %p120 = por %p118, %p119
      %p121 = scmp.ne.s32.totalorder %s107, %s108
      %p122 = scmp.eq.s32.totalorder %s18, 3
      %p123 = por %p121, %p122
      %p125 = scmp.ne.s32.totalorder %s108, %s124
      %p126 = scmp.eq.s32.totalorder %s18, 0
      %p127 = por %p125, %p126
      %p128 = scmp.le.s32.totalorder 1, %s12
      %p129 = scmp.lt.s32.totalorder %s12, 5
      %p130 = pnand %p128, %p129
      %p131 = pneg %p130
      // Predicated region
      $region9: #{tpu_custom_call.1} parent=5 // pred_check
        _
      $region10: #{tpu_custom_call.1} parent=5 // pred_check_branch
        %133 = sbr.rel (%p130) target = $region12
      $region11: #{tpu_custom_call.1} parent=5 // pred_region
        %s134 = ssub.s32 %s12, 1
        // Predicated region
        $region13: #{tpu_custom_call.1} parent=11 // pred_check
          %p135 = pneg %p71
        $region14: #{tpu_custom_call.1} parent=11 // pred_check_branch
          %137 = sbr.rel (%p135) target = $region16
        $region15: #{tpu_custom_call.1} parent=11 // pred_region
          _
        $region16: #{tpu_custom_call.1} parent=11 // pred_fallthru
          _
        // Predicated region
        $region17: #{tpu_custom_call.1} parent=11 // pred_check
          %p138 = pneg %p92
        $region18: #{tpu_custom_call.1} parent=11 // pred_check_branch
          %140 = sbr.rel (%p138) target = $region20
        $region19: #{tpu_custom_call.1} parent=11 // pred_region
          _
        $region20: #{tpu_custom_call.1} parent=11 // pred_fallthru
          _
      $region12: #{tpu_custom_call.1} parent=5 // pred_fallthru
        _
      %p141 = scmp.lt.s32.totalorder %s12, 4
      // Predicated region
      $region21: #{tpu_custom_call.1} parent=5 // pred_check
        %p142 = pneg %p141
      $region22: #{tpu_custom_call.1} parent=5 // pred_check_branch
        %144 = sbr.rel (%p142) target = $region24
      $region23: #{tpu_custom_call.1} parent=5 // pred_region
        // Predicated region
        $region25: #{tpu_custom_call.1} parent=23 // pred_check
          %p145 = pneg %p44
        $region26: #{tpu_custom_call.1} parent=23 // pred_check_branch
          %147 = sbr.rel (%p145) target = $region28
        $region27: #{tpu_custom_call.1} parent=23 // pred_region
          %p148 = scmp.lt.s32.totalorder %s19, 1
          %s149 = scalar_select %p148, %s19, 1
          %s150 = smul.addr %s149, 54
          %s151 = smul.addr %s150, 8
          %s152 = scalar_lea.vmem %s0, %s151
        $region28: #{tpu_custom_call.1} parent=23 // pred_fallthru
          _
      $region24: #{tpu_custom_call.1} parent=5 // pred_fallthru
        _
      %p153 = scmp.le.s32.totalorder 1, %s12
      %p154 = scmp.lt.s32.totalorder %s12, 5
      %p155 = pnand %p153, %p154
      %p156 = pneg %p155
      // Predicated region
      $region29: #{tpu_custom_call.1} parent=5 // pred_check
        _
      $region30: #{tpu_custom_call.1} parent=5 // pred_check_branch
        %158 = sbr.rel (%p155) target = $region32
      $region31: #{tpu_custom_call.1} parent=5 // pred_region
        %s159 = ssub.s32 %s12, 1
        %p160 = scmp.lt.s32.totalorder %s21, 1
        %s161 = scalar_select %p160, %s21, 1
        %s162 = smul.addr %s161, 54
        %s163 = smul.addr %s162, 8
        %s164 = scalar_lea.vmem %s0, %s163
        %p165 = pneg %p50
        %p166 = pneg %p47
        %p167 = pneg %p71
        %p168 = pneg %p68
        %p169 = pneg %p92
        %p170 = pneg %p89
        %p171 = pneg %p120
        %p172 = pneg %p117
        %s173 = sand.u32 %s107, 1
        %s174 = scalar_lea.sflag [#allocation3], %s173
        %s175 = sand.u32 %s107, 1
        %s176 = smul.addr %s175, 128
        %s177 = scalar_lea.vmem [#allocation2], %s176
        %p178 = scmp.lt.s32.totalorder %s21, 1
        %s179 = scalar_select %p178, %s21, 1
        %s180 = smul.addr %s179, 54
        %s181 = smul.addr %s180, 8
        %s182 = scalar_lea.vmem %s0, %s181
        %s183 = smul.u32 16, %s22
        %s184 = smul.u32 %s22, 8
        %s185 = smul.u32 %s184, 24
        %s186 = scalar_lea.vmem %s182, %s185
        %v187 = vld [vmem:[%s186] sm:$0xff]
        %v188 = vld [vmem:[%s186 + $0x8] sm:$0xff]
        %v189 = vld [vmem:[%s186 + $0x10] sm:$0x3]
        %v190 = vld [vmem:[%s186 + $0x18] sm:$0xff]
        %v191 = vld [vmem:[%s186 + $0x20] sm:$0xff]
        %v192 = vld [vmem:[%s186 + $0x28] sm:$0x3]
        %v193 = vld [vmem:[%s186 + $0x30] sm:$0xff]
        %v194 = vld [vmem:[%s186 + $0x38] sm:$0xff]
        %v195 = vld [vmem:[%s186 + $0x40] sm:$0x3]
        %v196 = vld [vmem:[%s186 + $0x48] sm:$0xff]
        %v197 = vld [vmem:[%s186 + $0x50] sm:$0xff]
        %v198 = vld [vmem:[%s186 + $0x58] sm:$0x3]
        %v199 = vld [vmem:[%s186 + $0x60] sm:$0xff]
        %v200 = vld [vmem:[%s186 + $0x68] sm:$0xff]
        %v201 = vld [vmem:[%s186 + $0x70] sm:$0x3]
        %v202 = vld [vmem:[%s186 + $0x78] sm:$0xff]
        %v203 = vld [vmem:[%s186 + $0x80] sm:$0xff]
        %v204 = vld [vmem:[%s186 + $0x88] sm:$0x3]
        %v205 = vld [vmem:[%s186 + $0x90] sm:$0xff]
        %v206 = vld [vmem:[%s186 + $0x98] sm:$0xff]
        %v207 = vld [vmem:[%s186 + $0xa0] sm:$0x3]
        %v208 = vld [vmem:[%s186 + $0xa8] sm:$0xff]
        %v209 = vld [vmem:[%s186 + $0xb0] sm:$0xff]
        %v210 = vld [vmem:[%s186 + $0xb8] sm:$0x3]
        %v211 = vld [vmem:[%s186 + $0xc0] sm:$0xff]
        %v212 = vld [vmem:[%s186 + $0xc8] sm:$0xff]
        %v213 = vld [vmem:[%s186 + $0xd0] sm:$0x3]
        %v214 = vld [vmem:[%s186 + $0xd8] sm:$0xff]
        %v215 = vld [vmem:[%s186 + $0xe0] sm:$0xff]
        %v216 = vld [vmem:[%s186 + $0xe8] sm:$0x3]
        %v217 = vld [vmem:[%s1] sm:$0xff]
        %v218 = vld [vmem:[%s1 + $0x8] sm:$0xff]
        %v219 = vld [vmem:[%s1 + $0x10] sm:$0xff]
        %v220 = vld [vmem:[%s1 + $0x18] sm:$0xff]
        %v221 = vld [vmem:[%s1 + $0x20] sm:$0xff]
        %v222 = vld [vmem:[%s1 + $0x28] sm:$0xff]
        %v223 = vld [vmem:[%s1 + $0x30] sm:$0xff]
        %v224 = vld [vmem:[%s1 + $0x38] sm:$0xff]
        %v225 = vld [vmem:[%s1 + $0x40] sm:$0xff]
        %v226 = vld [vmem:[%s1 + $0x48] sm:$0xff]
        %v227 = vld [vmem:[%s1 + $0x50] sm:$0xff]
        %v228 = vld [vmem:[%s1 + $0x58] sm:$0xff]
        %v229 = vld [vmem:[%s1 + $0x60] sm:$0xff]
        %v230 = vld [vmem:[%s1 + $0x68] sm:$0xff]
        %v231 = vld [vmem:[%s1 + $0x70] sm:$0xff]
        %v232 = vld [vmem:[%s1 + $0x78] sm:$0xff]
        %s233 = scalar_lea.vmem %s1, 384
        %v234 = vld [vmem:[%s233] sm:$0xff]
        %v235 = vld [vmem:[%s233 + $0x8] sm:$0xff]
        %v236 = vld [vmem:[%s233 + $0x10] sm:$0xff]
        %v237 = vld [vmem:[%s233 + $0x18] sm:$0xff]
        %v238 = vld [vmem:[%s233 + $0x20] sm:$0xff]
        %v239 = vld [vmem:[%s233 + $0x28] sm:$0xff]
        %v240 = vld [vmem:[%s233 + $0x30] sm:$0xff]
        %v241 = vld [vmem:[%s233 + $0x38] sm:$0xff]
        %v242 = vld [vmem:[%s233 + $0x40] sm:$0xff]
        %v243 = vld [vmem:[%s233 + $0x48] sm:$0xff]
        %v244 = vld [vmem:[%s233 + $0x50] sm:$0xff]
        %v245 = vld [vmem:[%s233 + $0x58] sm:$0xff]
        %v246 = vld [vmem:[%s233 + $0x60] sm:$0xff]
        %v247 = vld [vmem:[%s233 + $0x68] sm:$0xff]
        %v248 = vld [vmem:[%s233 + $0x70] sm:$0xff]
        %v249 = vld [vmem:[%s233 + $0x78] sm:$0xff]
        %250 = vmatprep.subr.mxu0 0.0
        %251 = vmatpush1.msra.mxu0 %v249
        %252 = vmatprep.subr.mxu0 0.0
        %253 = vmatpush1.msra.mxu0 %v248
        %254 = vmatprep.subr.mxu0 0.0
        %255 = vmatpush1.msra.mxu0 %v247
        %256 = vmatprep.subr.mxu0 0.0
        %257 = vmatpush1.msra.mxu0 %v246
        %258 = vmatprep.subr.mxu0 0.0
        %259 = vmatpush1.msra.mxu0 %v245
        %260 = vmatprep.subr.mxu0 0.0
        %261 = vmatpush1.msra.mxu0 %v244
        %262 = vmatprep.subr.mxu0 0.0
        %263 = vmatpush1.msra.mxu0 %v243
        %264 = vmatprep.subr.mxu0 0.0
        %265 = vmatpush1.msra.mxu0 %v242
        %266 = vmatprep.subr.mxu0 0.0
        %267 = vmatpush1.msra.mxu0 %v241
        %268 = vmatprep.subr.mxu0 0.0
        %269 = vmatpush1.msra.mxu0 %v240
        %270 = vmatprep.subr.mxu0 0.0
        %271 = vmatpush1.msra.mxu0 %v239
        %272 = vmatprep.subr.mxu0 0.0
        %273 = vmatpush1.msra.mxu0 %v238
        %274 = vmatprep.subr.mxu0 0.0
        %275 = vmatpush1.msra.mxu0 %v237
        %276 = vmatprep.subr.mxu0 0.0
        %277 = vmatpush1.msra.mxu0 %v236
        %278 = vmatprep.subr.mxu0 0.0
        %279 = vmatpush1.msra.mxu0 %v235
        %280 = vmatprep.subr.mxu0 0.0
        %281 = vmatpush1.msra.mxu0 %v234
        %282 = vmatprep.subr.mxu0 0.0
        %283 = vmatpush2.msra.mxu0 0.0
        %284 = vmatprep.subr.mxu0 0.0
        %285 = vmatpush2.msra.mxu0 0.0
        %286 = vmatprep.subr.mxu0 0.0
        %287 = vmatpush2.msra.mxu0 0.0
        %288 = vmatprep.subr.mxu0 0.0
        %289 = vmatpush2.msra.mxu0 0.0
        %290 = vmatprep.subr.mxu0 0.0
        %291 = vmatpush2.msra.mxu0 0.0
        %292 = vmatprep.subr.mxu0 0.0
        %293 = vmatpush2.msra.mxu0 0.0
        %294 = vmatprep.subr.mxu0 0.0
        %295 = vmatpush2.msra.mxu0 0.0
        %296 = vmatprep.subr.mxu0 0.0
        %297 = vmatpush2.msra.mxu0 0.0
        %298 = vmatprep.subr.mxu0 0.0
        %299 = vmatpush2.msra.mxu0 0.0
        %300 = vmatprep.subr.mxu0 0.0
        %301 = vmatpush2.msra.mxu0 0.0
        %302 = vmatprep.subr.mxu0 0.0
        %303 = vmatpush2.msra.mxu0 0.0
        %304 = vmatprep.subr.mxu0 0.0
        %305 = vmatpush2.msra.mxu0 0.0
        %306 = vmatprep.subr.mxu0 0.0
        %307 = vmatpush2.msra.mxu0 0.0
        %308 = vmatprep.subr.mxu0 0.0
        %309 = vmatpush2.msra.mxu0 0.0
        %310 = vmatprep.subr.mxu0 0.0
        %311 = vmatpush2.msra.mxu0 0.0
        %312 = vmatprep.subr.mxu0 0.0
        %313 = vmatpush2.msra.mxu0 0.0
        %314 = vmatprep.mubr.f32.mxu0 0.0
        %315 = vmatmul.mubr.f32.gmra.mxu0 %v190
        %v316 = vpop.f32.mrf.mxu0
        %v317 = vadd.f32 0.0, %v316
        %v318 = vpop.f32.mrf.mxu0
        %319 = vmatprep.mubr.f32.mxu0 0.0
        %320 = vmatmul.mubr.f32.gmra.mxu0 %v191
        %v321 = vpop.f32.mrf.mxu0
        %v322 = vadd.f32 0.0, %v321
        %v323 = vpop.f32.mrf.mxu0
        %324 = vmatprep.mubr.f32.mxu0 0.0
        %325 = vmatmul.mubr.f32.gmra.mxu0 %v193
        %v326 = vpop.f32.mrf.mxu0
        %v327 = vadd.f32 0.0, %v326
        %v328 = vpop.f32.mrf.mxu0
        %329 = vmatprep.mubr.f32.mxu0 0.0
        %330 = vmatmul.mubr.f32.gmra.mxu0 %v194
        %v331 = vpop.f32.mrf.mxu0
        %v332 = vadd.f32 0.0, %v331
        %v333 = vpop.f32.mrf.mxu0
        %334 = vmatprep.mubr.f32.mxu0 0.0
        %335 = vmatmul.mubr.f32.gmra.mxu0 %v196
        %v336 = vpop.f32.mrf.mxu0
        %v337 = vadd.f32 0.0, %v336
        %v338 = vpop.f32.mrf.mxu0
        %339 = vmatprep.mubr.f32.mxu0 0.0
        %340 = vmatmul.mubr.f32.gmra.mxu0 %v197
        %v341 = vpop.f32.mrf.mxu0
        %v342 = vadd.f32 0.0, %v341
        %v343 = vpop.f32.mrf.mxu0
        %344 = vmatprep.mubr.f32.mxu0 0.0
        %345 = vmatmul.mubr.f32.gmra.mxu0 %v199
        %v346 = vpop.f32.mrf.mxu0
        %v347 = vadd.f32 0.0, %v346
        %v348 = vpop.f32.mrf.mxu0
        %349 = vmatprep.mubr.f32.mxu0 0.0
        %350 = vmatmul.mubr.f32.gmra.mxu0 %v200
        %v351 = vpop.f32.mrf.mxu0
        %v352 = vadd.f32 0.0, %v351
        %v353 = vpop.f32.mrf.mxu0
        %354 = vmatprep.mubr.f32.mxu0 0.0
        %355 = vmatmul.mubr.f32.gmra.mxu0 %v202
        %v356 = vpop.f32.mrf.mxu0
        %v357 = vadd.f32 0.0, %v356
        %v358 = vpop.f32.mrf.mxu0
        %359 = vmatprep.mubr.f32.mxu0 0.0
        %360 = vmatmul.mubr.f32.gmra.mxu0 %v203
        %v361 = vpop.f32.mrf.mxu0
        %v362 = vadd.f32 0.0, %v361
        %v363 = vpop.f32.mrf.mxu0
        %364 = vmatprep.mubr.f32.mxu0 0.0
        %365 = vmatmul.mubr.f32.gmra.mxu0 %v205
        %v366 = vpop.f32.mrf.mxu0
        %v367 = vadd.f32 0.0, %v366
        %v368 = vpop.f32.mrf.mxu0
        %369 = vmatprep.mubr.f32.mxu0 0.0
        %370 = vmatmul.mubr.f32.gmra.mxu0 %v206
        %v371 = vpop.f32.mrf.mxu0
        %v372 = vadd.f32 0.0, %v371
        %v373 = vpop.f32.mrf.mxu0
        %374 = vmatprep.mubr.f32.mxu0 0.0
        %375 = vmatmul.mubr.f32.gmra.mxu0 %v208
        %v376 = vpop.f32.mrf.mxu0
        %v377 = vadd.f32 0.0, %v376
        %v378 = vpop.f32.mrf.mxu0
        %379 = vmatprep.mubr.f32.mxu0 0.0
        %380 = vmatmul.mubr.f32.gmra.mxu0 %v209
        %v381 = vpop.f32.mrf.mxu0
        %v382 = vadd.f32 0.0, %v381
        %v383 = vpop.f32.mrf.mxu0
        %384 = vmatprep.mubr.f32.mxu0 0.0
        %385 = vmatmul.mubr.f32.gmra.mxu0 %v211
        %v386 = vpop.f32.mrf.mxu0
        %v387 = vadd.f32 0.0, %v386
        %v388 = vpop.f32.mrf.mxu0
        %389 = vmatprep.mubr.f32.mxu0 0.0
        %390 = vmatmul.mubr.f32.gmra.mxu0 %v212
        %v391 = vpop.f32.mrf.mxu0
        %v392 = vadd.f32 0.0, %v391
        %v393 = vpop.f32.mrf.mxu0
        %394 = vdwg.mxu0
        %395 = vmatprep.subr.mxu0 0.0
        %396 = vmatpush1.msra.mxu0 %v232
        %397 = vmatprep.subr.mxu0 0.0
        %398 = vmatpush1.msra.mxu0 %v231
        %399 = vmatprep.subr.mxu0 0.0
        %400 = vmatpush1.msra.mxu0 %v230
        %401 = vmatprep.subr.mxu0 0.0
        %402 = vmatpush1.msra.mxu0 %v229
        %403 = vmatprep.subr.mxu0 0.0
        %404 = vmatpush1.msra.mxu0 %v228
        %405 = vmatprep.subr.mxu0 0.0
        %406 = vmatpush1.msra.mxu0 %v227
        %407 = vmatprep.subr.mxu0 0.0
        %408 = vmatpush1.msra.mxu0 %v226
        %409 = vmatprep.subr.mxu0 0.0
        %410 = vmatpush1.msra.mxu0 %v225
        %411 = vmatprep.subr.mxu0 0.0
        %412 = vmatpush1.msra.mxu0 %v224
        %413 = vmatprep.subr.mxu0 0.0
        %414 = vmatpush1.msra.mxu0 %v223
        %415 = vmatprep.subr.mxu0 0.0
        %416 = vmatpush1.msra.mxu0 %v222
        %417 = vmatprep.subr.mxu0 0.0
        %418 = vmatpush1.msra.mxu0 %v221
        %419 = vmatprep.subr.mxu0 0.0
        %420 = vmatpush1.msra.mxu0 %v220
        %421 = vmatprep.subr.mxu0 0.0
        %422 = vmatpush1.msra.mxu0 %v219
        %423 = vmatprep.subr.mxu0 0.0
        %424 = vmatpush1.msra.mxu0 %v218
        %425 = vmatprep.subr.mxu0 0.0
        %426 = vmatpush1.msra.mxu0 %v217
        %427 = vmatprep.subr.mxu0 0.0
        %428 = vmatpush2.msra.mxu0 0.0
        %429 = vmatprep.subr.mxu0 0.0
        %430 = vmatpush2.msra.mxu0 0.0
        %431 = vmatprep.subr.mxu0 0.0
        %432 = vmatpush2.msra.mxu0 0.0
        %433 = vmatprep.subr.mxu0 0.0
        %434 = vmatpush2.msra.mxu0 0.0
        %435 = vmatprep.subr.mxu0 0.0
        %436 = vmatpush2.msra.mxu0 0.0
        %437 = vmatprep.subr.mxu0 0.0
        %438 = vmatpush2.msra.mxu0 0.0
        %439 = vmatprep.subr.mxu0 0.0
        %440 = vmatpush2.msra.mxu0 0.0
        %441 = vmatprep.subr.mxu0 0.0
        %442 = vmatpush2.msra.mxu0 0.0
        %443 = vmatprep.subr.mxu0 0.0
        %444 = vmatpush2.msra.mxu0 0.0
        %445 = vmatprep.subr.mxu0 0.0
        %446 = vmatpush2.msra.mxu0 0.0
        %447 = vmatprep.subr.mxu0 0.0
        %448 = vmatpush2.msra.mxu0 0.0
        %449 = vmatprep.subr.mxu0 0.0
        %450 = vmatpush2.msra.mxu0 0.0
        %451 = vmatprep.subr.mxu0 0.0
        %452 = vmatpush2.msra.mxu0 0.0
        %453 = vmatprep.subr.mxu0 0.0
        %454 = vmatpush2.msra.mxu0 0.0
        %455 = vmatprep.subr.mxu0 0.0
        %456 = vmatpush2.msra.mxu0 0.0
        %457 = vmatprep.subr.mxu0 0.0
        %458 = vmatpush2.msra.mxu0 0.0
        %459 = vmatprep.mubr.f32.mxu0 0.0
        %460 = vmatmul.mubr.f32.gmra.mxu0 %v187
        %v461 = vpop.f32.mrf.mxu0
        %v462 = vadd.f32 %v317, %v461
        %v463 = vpop.f32.mrf.mxu0
        %464 = vmatprep.mubr.f32.mxu0 0.0
        %465 = vmatmul.mubr.f32.gmra.mxu0 %v188
        %v466 = vpop.f32.mrf.mxu0
        %v467 = vadd.f32 %v322, %v466
        %v468 = vpop.f32.mrf.mxu0
        %469 = vmatprep.mubr.f32.mxu0 0.0
        %470 = vmatmul.mubr.f32.gmra.mxu0 %v190
        %v471 = vpop.f32.mrf.mxu0
        %v472 = vadd.f32 %v327, %v471
        %v473 = vpop.f32.mrf.mxu0
        %474 = vmatprep.mubr.f32.mxu0 0.0
        %475 = vmatmul.mubr.f32.gmra.mxu0 %v191
        %v476 = vpop.f32.mrf.mxu0
        %v477 = vadd.f32 %v332, %v476
        %v478 = vpop.f32.mrf.mxu0
        %479 = vmatprep.mubr.f32.mxu0 0.0
        %480 = vmatmul.mubr.f32.gmra.mxu0 %v193
        %v481 = vpop.f32.mrf.mxu0
        %v482 = vadd.f32 %v337, %v481
        %v483 = vpop.f32.mrf.mxu0
        %484 = vmatprep.mubr.f32.mxu0 0.0
        %485 = vmatmul.mubr.f32.gmra.mxu0 %v194
        %v486 = vpop.f32.mrf.mxu0
        %v487 = vadd.f32 %v342, %v486
        %v488 = vpop.f32.mrf.mxu0
        %489 = vmatprep.mubr.f32.mxu0 0.0
        %490 = vmatmul.mubr.f32.gmra.mxu0 %v196
        %v491 = vpop.f32.mrf.mxu0
        %v492 = vadd.f32 %v347, %v491
        %v493 = vpop.f32.mrf.mxu0
        %494 = vmatprep.mubr.f32.mxu0 0.0
        %495 = vmatmul.mubr.f32.gmra.mxu0 %v197
        %v496 = vpop.f32.mrf.mxu0
        %v497 = vadd.f32 %v352, %v496
        %v498 = vpop.f32.mrf.mxu0
        %499 = vmatprep.mubr.f32.mxu0 0.0
        %500 = vmatmul.mubr.f32.gmra.mxu0 %v199
        %v501 = vpop.f32.mrf.mxu0
        %v502 = vadd.f32 %v357, %v501
        %v503 = vpop.f32.mrf.mxu0
        %504 = vmatprep.mubr.f32.mxu0 0.0
        %505 = vmatmul.mubr.f32.gmra.mxu0 %v200
        %v506 = vpop.f32.mrf.mxu0
        %v507 = vadd.f32 %v362, %v506
        %v508 = vpop.f32.mrf.mxu0
        %509 = vmatprep.mubr.f32.mxu0 0.0
        %510 = vmatmul.mubr.f32.gmra.mxu0 %v202
        %v511 = vpop.f32.mrf.mxu0
        %v512 = vadd.f32 %v367, %v511
        %v513 = vpop.f32.mrf.mxu0
        %514 = vmatprep.mubr.f32.mxu0 0.0
        %515 = vmatmul.mubr.f32.gmra.mxu0 %v203
        %v516 = vpop.f32.mrf.mxu0
        %v517 = vadd.f32 %v372, %v516
        %v518 = vpop.f32.mrf.mxu0
        %519 = vmatprep.mubr.f32.mxu0 0.0
        %520 = vmatmul.mubr.f32.gmra.mxu0 %v205
        %v521 = vpop.f32.mrf.mxu0
        %v522 = vadd.f32 %v377, %v521
        %v523 = vpop.f32.mrf.mxu0
        %524 = vmatprep.mubr.f32.mxu0 0.0
        %525 = vmatmul.mubr.f32.gmra.mxu0 %v206
        %v526 = vpop.f32.mrf.mxu0
        %v527 = vadd.f32 %v382, %v526
        %v528 = vpop.f32.mrf.mxu0
        %529 = vmatprep.mubr.f32.mxu0 0.0
        %530 = vmatmul.mubr.f32.gmra.mxu0 %v208
        %v531 = vpop.f32.mrf.mxu0
        %v532 = vadd.f32 %v387, %v531
        %v533 = vpop.f32.mrf.mxu0
        %534 = vmatprep.mubr.f32.mxu0 0.0
        %535 = vmatmul.mubr.f32.gmra.mxu0 %v209
        %v536 = vpop.f32.mrf.mxu0
        %v537 = vadd.f32 %v392, %v536
        %v538 = vpop.f32.mrf.mxu0
        %539 = vdwg.mxu0
        %s540 = scalar_lea.vmem %s1, 768
        %v541 = vld [vmem:[%s540] sm:$0xff]
        %v542 = vld [vmem:[%s540 + $0x8] sm:$0xff]
        %v543 = vld [vmem:[%s540 + $0x10] sm:$0xff]
        %v544 = vld [vmem:[%s540 + $0x18] sm:$0xff]
        %v545 = vld [vmem:[%s540 + $0x20] sm:$0xff]
        %v546 = vld [vmem:[%s540 + $0x28] sm:$0xff]
        %v547 = vld [vmem:[%s540 + $0x30] sm:$0xff]
        %v548 = vld [vmem:[%s540 + $0x38] sm:$0xff]
        %v549 = vld [vmem:[%s540 + $0x40] sm:$0xff]
        %v550 = vld [vmem:[%s540 + $0x48] sm:$0xff]
        %v551 = vld [vmem:[%s540 + $0x50] sm:$0xff]
        %v552 = vld [vmem:[%s540 + $0x58] sm:$0xff]
        %v553 = vld [vmem:[%s540 + $0x60] sm:$0xff]
        %v554 = vld [vmem:[%s540 + $0x68] sm:$0xff]
        %v555 = vld [vmem:[%s540 + $0x70] sm:$0xff]
        %v556 = vld [vmem:[%s540 + $0x78] sm:$0xff]
        %557 = vmatprep.subr.mxu0 0.0
        %558 = vmatpush1.msra.mxu0 %v556
        %559 = vmatprep.subr.mxu0 0.0
        %560 = vmatpush1.msra.mxu0 %v555
        %561 = vmatprep.subr.mxu0 0.0
        %562 = vmatpush1.msra.mxu0 %v554
        %563 = vmatprep.subr.mxu0 0.0
        %564 = vmatpush1.msra.mxu0 %v553
        %565 = vmatprep.subr.mxu0 0.0
        %566 = vmatpush1.msra.mxu0 %v552
        %567 = vmatprep.subr.mxu0 0.0
        %568 = vmatpush1.msra.mxu0 %v551
        %569 = vmatprep.subr.mxu0 0.0
        %570 = vmatpush1.msra.mxu0 %v550
        %571 = vmatprep.subr.mxu0 0.0
        %572 = vmatpush1.msra.mxu0 %v549
        %573 = vmatprep.subr.mxu0 0.0
        %574 = vmatpush1.msra.mxu0 %v548
        %575 = vmatprep.subr.mxu0 0.0
        %576 = vmatpush1.msra.mxu0 %v547
        %577 = vmatprep.subr.mxu0 0.0
        %578 = vmatpush1.msra.mxu0 %v546
        %579 = vmatprep.subr.mxu0 0.0
        %580 = vmatpush1.msra.mxu0 %v545
        %581 = vmatprep.subr.mxu0 0.0
        %582 = vmatpush1.msra.mxu0 %v544
        %583 = vmatprep.subr.mxu0 0.0
        %584 = vmatpush1.msra.mxu0 %v543
        %585 = vmatprep.subr.mxu0 0.0
        %586 = vmatpush1.msra.mxu0 %v542
        %587 = vmatprep.subr.mxu0 0.0
        %588 = vmatpush1.msra.mxu0 %v541
        %589 = vmatprep.subr.mxu0 0.0
        %590 = vmatpush2.msra.mxu0 0.0
        %591 = vmatprep.subr.mxu0 0.0
        %592 = vmatpush2.msra.mxu0 0.0
        %593 = vmatprep.subr.mxu0 0.0
        %594 = vmatpush2.msra.mxu0 0.0
        %595 = vmatprep.subr.mxu0 0.0
        %596 = vmatpush2.msra.mxu0 0.0
        %597 = vmatprep.subr.mxu0 0.0
        %598 = vmatpush2.msra.mxu0 0.0
        %599 = vmatprep.subr.mxu0 0.0
        %600 = vmatpush2.msra.mxu0 0.0
        %601 = vmatprep.subr.mxu0 0.0
        %602 = vmatpush2.msra.mxu0 0.0
        %603 = vmatprep.subr.mxu0 0.0
        %604 = vmatpush2.msra.mxu0 0.0
        %605 = vmatprep.subr.mxu0 0.0
        %606 = vmatpush2.msra.mxu0 0.0
        %607 = vmatprep.subr.mxu0 0.0
        %608 = vmatpush2.msra.mxu0 0.0
        %609 = vmatprep.subr.mxu0 0.0
        %610 = vmatpush2.msra.mxu0 0.0
        %611 = vmatprep.subr.mxu0 0.0
        %612 = vmatpush2.msra.mxu0 0.0
        %613 = vmatprep.subr.mxu0 0.0
        %614 = vmatpush2.msra.mxu0 0.0
        %615 = vmatprep.subr.mxu0 0.0
        %616 = vmatpush2.msra.mxu0 0.0
        %617 = vmatprep.subr.mxu0 0.0
        %618 = vmatpush2.msra.mxu0 0.0
        %619 = vmatprep.subr.mxu0 0.0
        %620 = vmatpush2.msra.mxu0 0.0
        %621 = vmatprep.mubr.f32.mxu0 0.0
        %622 = vmatmul.mubr.f32.gmra.mxu0 %v193
        %v623 = vpop.f32.mrf.mxu0
        %v624 = vadd.f32 0.0, %v623
        %v625 = vpop.f32.mrf.mxu0
        %626 = vmatprep.mubr.f32.mxu0 0.0
        %627 = vmatmul.mubr.f32.gmra.mxu0 %v194
        %v628 = vpop.f32.mrf.mxu0
        %v629 = vadd.f32 0.0, %v628
        %v630 = vpop.f32.mrf.mxu0
        %631 = vmatprep.mubr.f32.mxu0 0.0
        %632 = vmatmul.mubr.f32.gmra.mxu0 %v196
        %v633 = vpop.f32.mrf.mxu0
        %v634 = vadd.f32 0.0, %v633
        %v635 = vpop.f32.mrf.mxu0
        %636 = vmatprep.mubr.f32.mxu0 0.0
        %637 = vmatmul.mubr.f32.gmra.mxu0 %v197
        %v638 = vpop.f32.mrf.mxu0
        %v639 = vadd.f32 0.0, %v638
        %v640 = vpop.f32.mrf.mxu0
        %641 = vmatprep.mubr.f32.mxu0 0.0
        %642 = vmatmul.mubr.f32.gmra.mxu0 %v199
        %v643 = vpop.f32.mrf.mxu0
        %v644 = vadd.f32 0.0, %v643
        %v645 = vpop.f32.mrf.mxu0
        %646 = vmatprep.mubr.f32.mxu0 0.0
        %647 = vmatmul.mubr.f32.gmra.mxu0 %v200
        %v648 = vpop.f32.mrf.mxu0
        %v649 = vadd.f32 0.0, %v648
        %v650 = vpop.f32.mrf.mxu0
        %651 = vmatprep.mubr.f32.mxu0 0.0
        %652 = vmatmul.mubr.f32.gmra.mxu0 %v202
        %v653 = vpop.f32.mrf.mxu0
        %v654 = vadd.f32 0.0, %v653
        %v655 = vpop.f32.mrf.mxu0
        %656 = vmatprep.mubr.f32.mxu0 0.0
        %657 = vmatmul.mubr.f32.gmra.mxu0 %v203
        %v658 = vpop.f32.mrf.mxu0
        %v659 = vadd.f32 0.0, %v658
        %v660 = vpop.f32.mrf.mxu0
        %661 = vmatprep.mubr.f32.mxu0 0.0
        %662 = vmatmul.mubr.f32.gmra.mxu0 %v205
        %v663 = vpop.f32.mrf.mxu0
        %v664 = vadd.f32 0.0, %v663
        %v665 = vpop.f32.mrf.mxu0
        %666 = vmatprep.mubr.f32.mxu0 0.0
        %667 = vmatmul.mubr.f32.gmra.mxu0 %v206
        %v668 = vpop.f32.mrf.mxu0
        %v669 = vadd.f32 0.0, %v668
        %v670 = vpop.f32.mrf.mxu0
        %671 = vmatprep.mubr.f32.mxu0 0.0
        %672 = vmatmul.mubr.f32.gmra.mxu0 %v208
        %v673 = vpop.f32.mrf.mxu0
        %v674 = vadd.f32 0.0, %v673
        %v675 = vpop.f32.mrf.mxu0
        %676 = vmatprep.mubr.f32.mxu0 0.0
        %677 = vmatmul.mubr.f32.gmra.mxu0 %v209
        %v678 = vpop.f32.mrf.mxu0
        %v679 = vadd.f32 0.0, %v678
        %v680 = vpop.f32.mrf.mxu0
        %681 = vmatprep.mubr.f32.mxu0 0.0
        %682 = vmatmul.mubr.f32.gmra.mxu0 %v211
        %v683 = vpop.f32.mrf.mxu0
        %v684 = vadd.f32 0.0, %v683
        %v685 = vpop.f32.mrf.mxu0
        %686 = vmatprep.mubr.f32.mxu0 0.0
        %687 = vmatmul.mubr.f32.gmra.mxu0 %v212
        %v688 = vpop.f32.mrf.mxu0
        %v689 = vadd.f32 0.0, %v688
        %v690 = vpop.f32.mrf.mxu0
        %691 = vmatprep.mubr.f32.mxu0 0.0
        %692 = vmatmul.mubr.f32.gmra.mxu0 %v214
        %v693 = vpop.f32.mrf.mxu0
        %v694 = vadd.f32 0.0, %v693
        %v695 = vpop.f32.mrf.mxu0
        %696 = vmatprep.mubr.f32.mxu0 0.0
        %697 = vmatmul.mubr.f32.gmra.mxu0 %v215
        %v698 = vpop.f32.mrf.mxu0
        %v699 = vadd.f32 0.0, %v698
        %v700 = vpop.f32.mrf.mxu0
        %701 = vdwg.mxu0
        %v702 = vadd.f32 %v462, %v624
        %v703 = vadd.f32 %v467, %v629
        %v704 = vadd.f32 %v472, %v634
        %v705 = vadd.f32 %v477, %v639
        %v706 = vadd.f32 %v482, %v644
        %v707 = vadd.f32 %v487, %v649
        %v708 = vadd.f32 %v492, %v654
        %v709 = vadd.f32 %v497, %v659
        %v710 = vadd.f32 %v502, %v664
        %v711 = vadd.f32 %v507, %v669
        %v712 = vadd.f32 %v512, %v674
        %v713 = vadd.f32 %v517, %v679
        %v714 = vadd.f32 %v522, %v684
        %v715 = vadd.f32 %v527, %v689
        %v716 = vadd.f32 %v532, %v694
        %v717 = vadd.f32 %v537, %v699
        %vm742 = vcmask 1046528
        %v743 = vrot.slane %v187, 1
        %v744 = vrot.slane %v188, 1
        %v745 = vsel %vm742, %v743, %v744
        %v746 = vrot.slane %v189, 1
        %v747 = vsel %vm742, %v744, %v746
        %v748 = vrot.slane %v190, 1
        %v749 = vrot.slane %v191, 1
        %v750 = vsel %vm742, %v748, %v749
        %v751 = vrot.slane %v192, 1
        %v752 = vsel %vm742, %v749, %v751
        %v753 = vrot.slane %v193, 1
        %v754 = vrot.slane %v194, 1
        %v755 = vsel %vm742, %v753, %v754
        %v756 = vrot.slane %v195, 1
        %v757 = vsel %vm742, %v754, %v756
        %v758 = vrot.slane %v196, 1
        %v759 = vrot.slane %v197, 1
        %v760 = vsel %vm742, %v758, %v759
        %v761 = vrot.slane %v198, 1
        %v762 = vsel %vm742, %v759, %v761
        %v763 = vrot.slane %v199, 1
        %v764 = vrot.slane %v200, 1
        %v765 = vsel %vm742, %v763, %v764
        %v766 = vrot.slane %v201, 1
        %v767 = vsel %vm742, %v764, %v766
        %v768 = vrot.slane %v202, 1
        %v769 = vrot.slane %v203, 1
        %v770 = vsel %vm742, %v768, %v769
        %v771 = vrot.slane %v204, 1
        %v772 = vsel %vm742, %v769, %v771
        %v773 = vrot.slane %v205, 1
        %v774 = vrot.slane %v206, 1
        %v775 = vsel %vm742, %v773, %v774
        %v776 = vrot.slane %v207, 1
        %v777 = vsel %vm742, %v774, %v776
        %v778 = vrot.slane %v208, 1
        %v779 = vrot.slane %v209, 1
        %v780 = vsel %vm742, %v778, %v779
        %v781 = vrot.slane %v210, 1
        %v782 = vsel %vm742, %v779, %v781
        %s799 = scalar_lea.vmem %s1, 128
        %v800 = vld [vmem:[%s799] sm:$0xff]
        %v801 = vld [vmem:[%s799 + $0x8] sm:$0xff]
        %v802 = vld [vmem:[%s799 + $0x10] sm:$0xff]
        %v803 = vld [vmem:[%s799 + $0x18] sm:$0xff]
        %v804 = vld [vmem:[%s799 + $0x20] sm:$0xff]
        %v805 = vld [vmem:[%s799 + $0x28] sm:$0xff]
        %v806 = vld [vmem:[%s799 + $0x30] sm:$0xff]
        %v807 = vld [vmem:[%s799 + $0x38] sm:$0xff]
        %v808 = vld [vmem:[%s799 + $0x40] sm:$0xff]
        %v809 = vld [vmem:[%s799 + $0x48] sm:$0xff]
        %v810 = vld [vmem:[%s799 + $0x50] sm:$0xff]
        %v811 = vld [vmem:[%s799 + $0x58] sm:$0xff]
        %v812 = vld [vmem:[%s799 + $0x60] sm:$0xff]
        %v813 = vld [vmem:[%s799 + $0x68] sm:$0xff]
        %v814 = vld [vmem:[%s799 + $0x70] sm:$0xff]
        %v815 = vld [vmem:[%s799 + $0x78] sm:$0xff]
        %816 = vmatprep.subr.mxu0 0.0
        %817 = vmatpush1.msra.mxu0 %v815
        %818 = vmatprep.subr.mxu0 0.0
        %819 = vmatpush1.msra.mxu0 %v814
        %820 = vmatprep.subr.mxu0 0.0
        %821 = vmatpush1.msra.mxu0 %v813
        %822 = vmatprep.subr.mxu0 0.0
        %823 = vmatpush1.msra.mxu0 %v812
        %824 = vmatprep.subr.mxu0 0.0
        %825 = vmatpush1.msra.mxu0 %v811
        %826 = vmatprep.subr.mxu0 0.0
        %827 = vmatpush1.msra.mxu0 %v810
        %828 = vmatprep.subr.mxu0 0.0
        %829 = vmatpush1.msra.mxu0 %v809
        %830 = vmatprep.subr.mxu0 0.0
        %831 = vmatpush1.msra.mxu0 %v808
        %832 = vmatprep.subr.mxu0 0.0
        %833 = vmatpush1.msra.mxu0 %v807
        %834 = vmatprep.subr.mxu0 0.0
        %835 = vmatpush1.msra.mxu0 %v806
        %836 = vmatprep.subr.mxu0 0.0
        %837 = vmatpush1.msra.mxu0 %v805
        %838 = vmatprep.subr.mxu0 0.0
        %839 = vmatpush1.msra.mxu0 %v804
        %840 = vmatprep.subr.mxu0 0.0
        %841 = vmatpush1.msra.mxu0 %v803
        %842 = vmatprep.subr.mxu0 0.0
        %843 = vmatpush1.msra.mxu0 %v802
        %844 = vmatprep.subr.mxu0 0.0
        %845 = vmatpush1.msra.mxu0 %v801
        %846 = vmatprep.subr.mxu0 0.0
        %847 = vmatpush1.msra.mxu0 %v800
        %848 = vmatprep.subr.mxu0 0.0
        %849 = vmatpush2.msra.mxu0 0.0
        %850 = vmatprep.subr.mxu0 0.0
        %851 = vmatpush2.msra.mxu0 0.0
        %852 = vmatprep.subr.mxu0 0.0
        %853 = vmatpush2.msra.mxu0 0.0
        %854 = vmatprep.subr.mxu0 0.0
        %855 = vmatpush2.msra.mxu0 0.0
        %856 = vmatprep.subr.mxu0 0.0
        %857 = vmatpush2.msra.mxu0 0.0
        %858 = vmatprep.subr.mxu0 0.0
        %859 = vmatpush2.msra.mxu0 0.0
        %860 = vmatprep.subr.mxu0 0.0
        %861 = vmatpush2.msra.mxu0 0.0
        %862 = vmatprep.subr.mxu0 0.0
        %863 = vmatpush2.msra.mxu0 0.0
        %864 = vmatprep.subr.mxu0 0.0
        %865 = vmatpush2.msra.mxu0 0.0
        %866 = vmatprep.subr.mxu0 0.0
        %867 = vmatpush2.msra.mxu0 0.0
        %868 = vmatprep.subr.mxu0 0.0
        %869 = vmatpush2.msra.mxu0 0.0
        %870 = vmatprep.subr.mxu0 0.0
        %871 = vmatpush2.msra.mxu0 0.0
        %872 = vmatprep.subr.mxu0 0.0
        %873 = vmatpush2.msra.mxu0 0.0
        %874 = vmatprep.subr.mxu0 0.0
        %875 = vmatpush2.msra.mxu0 0.0
        %876 = vmatprep.subr.mxu0 0.0
        %877 = vmatpush2.msra.mxu0 0.0
        %878 = vmatprep.subr.mxu0 0.0
        %879 = vmatpush2.msra.mxu0 0.0
        %880 = vmatprep.mubr.f32.mxu0 0.0
        %881 = vmatmul.mubr.f32.gmra.mxu0 %v745
        %v882 = vpop.f32.mrf.mxu0
        %v883 = vadd.f32 0.0, %v882
        %v884 = vpop.f32.mrf.mxu0
        %885 = vmatprep.mubr.f32.mxu0 0.0
        %886 = vmatmul.mubr.f32.gmra.mxu0 %v747
        %v887 = vpop.f32.mrf.mxu0
        %v888 = vadd.f32 0.0, %v887
        %v889 = vpop.f32.mrf.mxu0
        %890 = vmatprep.mubr.f32.mxu0 0.0
        %891 = vmatmul.mubr.f32.gmra.mxu0 %v750
        %v892 = vpop.f32.mrf.mxu0
        %v893 = vadd.f32 0.0, %v892
        %v894 = vpop.f32.mrf.mxu0
        %895 = vmatprep.mubr.f32.mxu0 0.0
        %896 = vmatmul.mubr.f32.gmra.mxu0 %v752
        %v897 = vpop.f32.mrf.mxu0
        %v898 = vadd.f32 0.0, %v897
        %v899 = vpop.f32.mrf.mxu0
        %900 = vmatprep.mubr.f32.mxu0 0.0
        %901 = vmatmul.mubr.f32.gmra.mxu0 %v755
        %v902 = vpop.f32.mrf.mxu0
        %v903 = vadd.f32 0.0, %v902
        %v904 = vpop.f32.mrf.mxu0
        %905 = vmatprep.mubr.f32.mxu0 0.0
        %906 = vmatmul.mubr.f32.gmra.mxu0 %v757
        %v907 = vpop.f32.mrf.mxu0
        %v908 = vadd.f32 0.0, %v907
        %v909 = vpop.f32.mrf.mxu0
        %910 = vmatprep.mubr.f32.mxu0 0.0
        %911 = vmatmul.mubr.f32.gmra.mxu0 %v760
        %v912 = vpop.f32.mrf.mxu0
        %v913 = vadd.f32 0.0, %v912
        %v914 = vpop.f32.mrf.mxu0
        %915 = vmatprep.mubr.f32.mxu0 0.0
        %916 = vmatmul.mubr.f32.gmra.mxu0 %v762
        %v917 = vpop.f32.mrf.mxu0
        %v918 = vadd.f32 0.0, %v917
        %v919 = vpop.f32.mrf.mxu0
        %920 = vmatprep.mubr.f32.mxu0 0.0
        %921 = vmatmul.mubr.f32.gmra.mxu0 %v765
        %v922 = vpop.f32.mrf.mxu0
        %v923 = vadd.f32 0.0, %v922
        %v924 = vpop.f32.mrf.mxu0
        %925 = vmatprep.mubr.f32.mxu0 0.0
        %926 = vmatmul.mubr.f32.gmra.mxu0 %v767
        %v927 = vpop.f32.mrf.mxu0
        %v928 = vadd.f32 0.0, %v927
        %v929 = vpop.f32.mrf.mxu0
        %930 = vmatprep.mubr.f32.mxu0 0.0
        %931 = vmatmul.mubr.f32.gmra.mxu0 %v770
        %v932 = vpop.f32.mrf.mxu0
        %v933 = vadd.f32 0.0, %v932
        %v934 = vpop.f32.mrf.mxu0
        %935 = vmatprep.mubr.f32.mxu0 0.0
        %936 = vmatmul.mubr.f32.gmra.mxu0 %v772
        %v937 = vpop.f32.mrf.mxu0
        %v938 = vadd.f32 0.0, %v937
        %v939 = vpop.f32.mrf.mxu0
        %940 = vmatprep.mubr.f32.mxu0 0.0
        %941 = vmatmul.mubr.f32.gmra.mxu0 %v775
        %v942 = vpop.f32.mrf.mxu0
        %v943 = vadd.f32 0.0, %v942
        %v944 = vpop.f32.mrf.mxu0
        %945 = vmatprep.mubr.f32.mxu0 0.0
        %946 = vmatmul.mubr.f32.gmra.mxu0 %v777
        %v947 = vpop.f32.mrf.mxu0
        %v948 = vadd.f32 0.0, %v947
        %v949 = vpop.f32.mrf.mxu0
        %950 = vmatprep.mubr.f32.mxu0 0.0
        %951 = vmatmul.mubr.f32.gmra.mxu0 %v780
        %v952 = vpop.f32.mrf.mxu0
        %v953 = vadd.f32 0.0, %v952
        %v954 = vpop.f32.mrf.mxu0
        %955 = vmatprep.mubr.f32.mxu0 0.0
        %956 = vmatmul.mubr.f32.gmra.mxu0 %v782
        %v957 = vpop.f32.mrf.mxu0
        %v958 = vadd.f32 0.0, %v957
        %v959 = vpop.f32.mrf.mxu0
        %960 = vdwg.mxu0
        %v961 = vadd.f32 %v702, %v883
        %v962 = vadd.f32 %v703, %v888
        %v963 = vadd.f32 %v704, %v893
        %v964 = vadd.f32 %v705, %v898
        %v965 = vadd.f32 %v706, %v903
        %v966 = vadd.f32 %v707, %v908
        %v967 = vadd.f32 %v708, %v913
        %v968 = vadd.f32 %v709, %v918
        %v969 = vadd.f32 %v710, %v923
        %v970 = vadd.f32 %v711, %v928
        %v971 = vadd.f32 %v712, %v933
        %v972 = vadd.f32 %v713, %v938
        %v973 = vadd.f32 %v714, %v943
        %v974 = vadd.f32 %v715, %v948
        %v975 = vadd.f32 %v716, %v953
        %v976 = vadd.f32 %v717, %v958
        %v980 = vrot.slane %v211, 1
        %v981 = vrot.slane %v212, 1
        %v982 = vsel %vm742, %v980, %v981
        %v983 = vrot.slane %v213, 1
        %v984 = vsel %vm742, %v981, %v983
        %s987 = scalar_lea.vmem %s1, 512
        %v988 = vld [vmem:[%s987] sm:$0xff]
        %v989 = vld [vmem:[%s987 + $0x8] sm:$0xff]
        %v990 = vld [vmem:[%s987 + $0x10] sm:$0xff]
        %v991 = vld [vmem:[%s987 + $0x18] sm:$0xff]
        %v992 = vld [vmem:[%s987 + $0x20] sm:$0xff]
        %v993 = vld [vmem:[%s987 + $0x28] sm:$0xff]
        %v994 = vld [vmem:[%s987 + $0x30] sm:$0xff]
        %v995 = vld [vmem:[%s987 + $0x38] sm:$0xff]
        %v996 = vld [vmem:[%s987 + $0x40] sm:$0xff]
        %v997 = vld [vmem:[%s987 + $0x48] sm:$0xff]
        %v998 = vld [vmem:[%s987 + $0x50] sm:$0xff]
        %v999 = vld [vmem:[%s987 + $0x58] sm:$0xff]
        %v1000 = vld [vmem:[%s987 + $0x60] sm:$0xff]
        %v1001 = vld [vmem:[%s987 + $0x68] sm:$0xff]
        %v1002 = vld [vmem:[%s987 + $0x70] sm:$0xff]
        %v1003 = vld [vmem:[%s987 + $0x78] sm:$0xff]
        %1004 = vmatprep.subr.mxu0 0.0
        %1005 = vmatpush1.msra.mxu0 %v1003
        %1006 = vmatprep.subr.mxu0 0.0
        %1007 = vmatpush1.msra.mxu0 %v1002
        %1008 = vmatprep.subr.mxu0 0.0
        %1009 = vmatpush1.msra.mxu0 %v1001
        %1010 = vmatprep.subr.mxu0 0.0
        %1011 = vmatpush1.msra.mxu0 %v1000
        %1012 = vmatprep.subr.mxu0 0.0
        %1013 = vmatpush1.msra.mxu0 %v999
        %1014 = vmatprep.subr.mxu0 0.0
        %1015 = vmatpush1.msra.mxu0 %v998
        %1016 = vmatprep.subr.mxu0 0.0
        %1017 = vmatpush1.msra.mxu0 %v997
        %1018 = vmatprep.subr.mxu0 0.0
        %1019 = vmatpush1.msra.mxu0 %v996
        %1020 = vmatprep.subr.mxu0 0.0
        %1021 = vmatpush1.msra.mxu0 %v995
        %1022 = vmatprep.subr.mxu0 0.0
        %1023 = vmatpush1.msra.mxu0 %v994
        %1024 = vmatprep.subr.mxu0 0.0
        %1025 = vmatpush1.msra.mxu0 %v993
        %1026 = vmatprep.subr.mxu0 0.0
        %1027 = vmatpush1.msra.mxu0 %v992
        %1028 = vmatprep.subr.mxu0 0.0
        %1029 = vmatpush1.msra.mxu0 %v991
        %1030 = vmatprep.subr.mxu0 0.0
        %1031 = vmatpush1.msra.mxu0 %v990
        %1032 = vmatprep.subr.mxu0 0.0
        %1033 = vmatpush1.msra.mxu0 %v989
        %1034 = vmatprep.subr.mxu0 0.0
        %1035 = vmatpush1.msra.mxu0 %v988
        %1036 = vmatprep.subr.mxu0 0.0
        %1037 = vmatpush2.msra.mxu0 0.0
        %1038 = vmatprep.subr.mxu0 0.0
        %1039 = vmatpush2.msra.mxu0 0.0
        %1040 = vmatprep.subr.mxu0 0.0
        %1041 = vmatpush2.msra.mxu0 0.0
        %1042 = vmatprep.subr.mxu0 0.0
        %1043 = vmatpush2.msra.mxu0 0.0
        %1044 = vmatprep.subr.mxu0 0.0
        %1045 = vmatpush2.msra.mxu0 0.0
        %1046 = vmatprep.subr.mxu0 0.0
        %1047 = vmatpush2.msra.mxu0 0.0
        %1048 = vmatprep.subr.mxu0 0.0
        %1049 = vmatpush2.msra.mxu0 0.0
        %1050 = vmatprep.subr.mxu0 0.0
        %1051 = vmatpush2.msra.mxu0 0.0
        %1052 = vmatprep.subr.mxu0 0.0
        %1053 = vmatpush2.msra.mxu0 0.0
        %1054 = vmatprep.subr.mxu0 0.0
        %1055 = vmatpush2.msra.mxu0 0.0
        %1056 = vmatprep.subr.mxu0 0.0
        %1057 = vmatpush2.msra.mxu0 0.0
        %1058 = vmatprep.subr.mxu0 0.0
        %1059 = vmatpush2.msra.mxu0 0.0
        %1060 = vmatprep.subr.mxu0 0.0
        %1061 = vmatpush2.msra.mxu0 0.0
        %1062 = vmatprep.subr.mxu0 0.0
        %1063 = vmatpush2.msra.mxu0 0.0
        %1064 = vmatprep.subr.mxu0 0.0
        %1065 = vmatpush2.msra.mxu0 0.0
        %1066 = vmatprep.subr.mxu0 0.0
        %1067 = vmatpush2.msra.mxu0 0.0
        %1068 = vmatprep.mubr.f32.mxu0 0.0
        %1069 = vmatmul.mubr.f32.gmra.mxu0 %v750
        %v1070 = vpop.f32.mrf.mxu0
        %v1071 = vadd.f32 0.0, %v1070
        %v1072 = vpop.f32.mrf.mxu0
        %1073 = vmatprep.mubr.f32.mxu0 0.0
        %1074 = vmatmul.mubr.f32.gmra.mxu0 %v752
        %v1075 = vpop.f32.mrf.mxu0
        %v1076 = vadd.f32 0.0, %v1075
        %v1077 = vpop.f32.mrf.mxu0
        %1078 = vmatprep.mubr.f32.mxu0 0.0
        %1079 = vmatmul.mubr.f32.gmra.mxu0 %v755
        %v1080 = vpop.f32.mrf.mxu0
        %v1081 = vadd.f32 0.0, %v1080
        %v1082 = vpop.f32.mrf.mxu0
        %1083 = vmatprep.mubr.f32.mxu0 0.0
        %1084 = vmatmul.mubr.f32.gmra.mxu0 %v757
        %v1085 = vpop.f32.mrf.mxu0
        %v1086 = vadd.f32 0.0, %v1085
        %v1087 = vpop.f32.mrf.mxu0
        %1088 = vmatprep.mubr.f32.mxu0 0.0
        %1089 = vmatmul.mubr.f32.gmra.mxu0 %v760
        %v1090 = vpop.f32.mrf.mxu0
        %v1091 = vadd.f32 0.0, %v1090
        %v1092 = vpop.f32.mrf.mxu0
        %1093 = vmatprep.mubr.f32.mxu0 0.0
        %1094 = vmatmul.mubr.f32.gmra.mxu0 %v762
        %v1095 = vpop.f32.mrf.mxu0
        %v1096 = vadd.f32 0.0, %v1095
        %v1097 = vpop.f32.mrf.mxu0
        %1098 = vmatprep.mubr.f32.mxu0 0.0
        %1099 = vmatmul.mubr.f32.gmra.mxu0 %v765
        %v1100 = vpop.f32.mrf.mxu0
        %v1101 = vadd.f32 0.0, %v1100
        %v1102 = vpop.f32.mrf.mxu0
        %1103 = vmatprep.mubr.f32.mxu0 0.0
        %1104 = vmatmul.mubr.f32.gmra.mxu0 %v767
        %v1105 = vpop.f32.mrf.mxu0
        %v1106 = vadd.f32 0.0, %v1105
        %v1107 = vpop.f32.mrf.mxu0
        %1108 = vmatprep.mubr.f32.mxu0 0.0
        %1109 = vmatmul.mubr.f32.gmra.mxu0 %v770
        %v1110 = vpop.f32.mrf.mxu0
        %v1111 = vadd.f32 0.0, %v1110
        %v1112 = vpop.f32.mrf.mxu0
        %1113 = vmatprep.mubr.f32.mxu0 0.0
        %1114 = vmatmul.mubr.f32.gmra.mxu0 %v772
        %v1115 = vpop.f32.mrf.mxu0
        %v1116 = vadd.f32 0.0, %v1115
        %v1117 = vpop.f32.mrf.mxu0
        %1118 = vmatprep.mubr.f32.mxu0 0.0
        %1119 = vmatmul.mubr.f32.gmra.mxu0 %v775
        %v1120 = vpop.f32.mrf.mxu0
        %v1121 = vadd.f32 0.0, %v1120
        %v1122 = vpop.f32.mrf.mxu0
        %1123 = vmatprep.mubr.f32.mxu0 0.0
        %1124 = vmatmul.mubr.f32.gmra.mxu0 %v777
        %v1125 = vpop.f32.mrf.mxu0
        %v1126 = vadd.f32 0.0, %v1125
        %v1127 = vpop.f32.mrf.mxu0
        %1128 = vmatprep.mubr.f32.mxu0 0.0
        %1129 = vmatmul.mubr.f32.gmra.mxu0 %v780
        %v1130 = vpop.f32.mrf.mxu0
        %v1131 = vadd.f32 0.0, %v1130
        %v1132 = vpop.f32.mrf.mxu0
        %1133 = vmatprep.mubr.f32.mxu0 0.0
        %1134 = vmatmul.mubr.f32.gmra.mxu0 %v782
        %v1135 = vpop.f32.mrf.mxu0
        %v1136 = vadd.f32 0.0, %v1135
        %v1137 = vpop.f32.mrf.mxu0
        %1138 = vmatprep.mubr.f32.mxu0 0.0
        %1139 = vmatmul.mubr.f32.gmra.mxu0 %v982
        %v1140 = vpop.f32.mrf.mxu0
        %v1141 = vadd.f32 0.0, %v1140
        %v1142 = vpop.f32.mrf.mxu0
        %1143 = vmatprep.mubr.f32.mxu0 0.0
        %1144 = vmatmul.mubr.f32.gmra.mxu0 %v984
        %v1145 = vpop.f32.mrf.mxu0
        %v1146 = vadd.f32 0.0, %v1145
        %v1147 = vpop.f32.mrf.mxu0
        %1148 = vdwg.mxu0
        %v1149 = vadd.f32 %v961, %v1071
        %v1150 = vadd.f32 %v962, %v1076
        %v1151 = vadd.f32 %v963, %v1081
        %v1152 = vadd.f32 %v964, %v1086
        %v1153 = vadd.f32 %v965, %v1091
        %v1154 = vadd.f32 %v966, %v1096
        %v1155 = vadd.f32 %v967, %v1101
        %v1156 = vadd.f32 %v968, %v1106
        %v1157 = vadd.f32 %v969, %v1111
        %v1158 = vadd.f32 %v970, %v1116
        %v1159 = vadd.f32 %v971, %v1121
        %v1160 = vadd.f32 %v972, %v1126
        %v1161 = vadd.f32 %v973, %v1131
        %v1162 = vadd.f32 %v974, %v1136
        %v1163 = vadd.f32 %v975, %v1141
        %v1164 = vadd.f32 %v976, %v1146
        %v1168 = vrot.slane %v214, 1
        %v1169 = vrot.slane %v215, 1
        %v1170 = vsel %vm742, %v1168, %v1169
        %v1171 = vrot.slane %v216, 1
        %v1172 = vsel %vm742, %v1169, %v1171
        %s1175 = scalar_lea.vmem %s1, 896
        %v1176 = vld [vmem:[%s1175] sm:$0xff]
        %v1177 = vld [vmem:[%s1175 + $0x8] sm:$0xff]
        %v1178 = vld [vmem:[%s1175 + $0x10] sm:$0xff]
        %v1179 = vld [vmem:[%s1175 + $0x18] sm:$0xff]
        %v1180 = vld [vmem:[%s1175 + $0x20] sm:$0xff]
        %v1181 = vld [vmem:[%s1175 + $0x28] sm:$0xff]
        %v1182 = vld [vmem:[%s1175 + $0x30] sm:$0xff]
        %v1183 = vld [vmem:[%s1175 + $0x38] sm:$0xff]
        %v1184 = vld [vmem:[%s1175 + $0x40] sm:$0xff]
        %v1185 = vld [vmem:[%s1175 + $0x48] sm:$0xff]
        %v1186 = vld [vmem:[%s1175 + $0x50] sm:$0xff]
        %v1187 = vld [vmem:[%s1175 + $0x58] sm:$0xff]
        %v1188 = vld [vmem:[%s1175 + $0x60] sm:$0xff]
        %v1189 = vld [vmem:[%s1175 + $0x68] sm:$0xff]
        %v1190 = vld [vmem:[%s1175 + $0x70] sm:$0xff]
        %v1191 = vld [vmem:[%s1175 + $0x78] sm:$0xff]
        %1192 = vmatprep.subr.mxu0 0.0
        %1193 = vmatpush1.msra.mxu0 %v1191
        %1194 = vmatprep.subr.mxu0 0.0
        %1195 = vmatpush1.msra.mxu0 %v1190
        %1196 = vmatprep.subr.mxu0 0.0
        %1197 = vmatpush1.msra.mxu0 %v1189
        %1198 = vmatprep.subr.mxu0 0.0
        %1199 = vmatpush1.msra.mxu0 %v1188
        %1200 = vmatprep.subr.mxu0 0.0
        %1201 = vmatpush1.msra.mxu0 %v1187
        %1202 = vmatprep.subr.mxu0 0.0
        %1203 = vmatpush1.msra.mxu0 %v1186
        %1204 = vmatprep.subr.mxu0 0.0
        %1205 = vmatpush1.msra.mxu0 %v1185
        %1206 = vmatprep.subr.mxu0 0.0
        %1207 = vmatpush1.msra.mxu0 %v1184
        %1208 = vmatprep.subr.mxu0 0.0
        %1209 = vmatpush1.msra.mxu0 %v1183
        %1210 = vmatprep.subr.mxu0 0.0
        %1211 = vmatpush1.msra.mxu0 %v1182
        %1212 = vmatprep.subr.mxu0 0.0
        %1213 = vmatpush1.msra.mxu0 %v1181
        %1214 = vmatprep.subr.mxu0 0.0
        %1215 = vmatpush1.msra.mxu0 %v1180
        %1216 = vmatprep.subr.mxu0 0.0
        %1217 = vmatpush1.msra.mxu0 %v1179
        %1218 = vmatprep.subr.mxu0 0.0
        %1219 = vmatpush1.msra.mxu0 %v1178
        %1220 = vmatprep.subr.mxu0 0.0
        %1221 = vmatpush1.msra.mxu0 %v1177
        %1222 = vmatprep.subr.mxu0 0.0
        %1223 = vmatpush1.msra.mxu0 %v1176
        %1224 = vmatprep.subr.mxu0 0.0
        %1225 = vmatpush2.msra.mxu0 0.0
        %1226 = vmatprep.subr.mxu0 0.0
        %1227 = vmatpush2.msra.mxu0 0.0
        %1228 = vmatprep.subr.mxu0 0.0
        %1229 = vmatpush2.msra.mxu0 0.0
        %1230 = vmatprep.subr.mxu0 0.0
        %1231 = vmatpush2.msra.mxu0 0.0
        %1232 = vmatprep.subr.mxu0 0.0
        %1233 = vmatpush2.msra.mxu0 0.0
        %1234 = vmatprep.subr.mxu0 0.0
        %1235 = vmatpush2.msra.mxu0 0.0
        %1236 = vmatprep.subr.mxu0 0.0
        %1237 = vmatpush2.msra.mxu0 0.0
        %1238 = vmatprep.subr.mxu0 0.0
        %1239 = vmatpush2.msra.mxu0 0.0
        %1240 = vmatprep.subr.mxu0 0.0
        %1241 = vmatpush2.msra.mxu0 0.0
        %1242 = vmatprep.subr.mxu0 0.0
        %1243 = vmatpush2.msra.mxu0 0.0
        %1244 = vmatprep.subr.mxu0 0.0
        %1245 = vmatpush2.msra.mxu0 0.0
        %1246 = vmatprep.subr.mxu0 0.0
        %1247 = vmatpush2.msra.mxu0 0.0
        %1248 = vmatprep.subr.mxu0 0.0
        %1249 = vmatpush2.msra.mxu0 0.0
        %1250 = vmatprep.subr.mxu0 0.0
        %1251 = vmatpush2.msra.mxu0 0.0
        %1252 = vmatprep.subr.mxu0 0.0
        %1253 = vmatpush2.msra.mxu0 0.0
        %1254 = vmatprep.subr.mxu0 0.0
        %1255 = vmatpush2.msra.mxu0 0.0
        %1256 = vmatprep.mubr.f32.mxu0 0.0
        %1257 = vmatmul.mubr.f32.gmra.mxu0 %v755
        %v1258 = vpop.f32.mrf.mxu0
        %v1259 = vadd.f32 0.0, %v1258
        %v1260 = vpop.f32.mrf.mxu0
        %1261 = vmatprep.mubr.f32.mxu0 0.0
        %1262 = vmatmul.mubr.f32.gmra.mxu0 %v757
        %v1263 = vpop.f32.mrf.mxu0
        %v1264 = vadd.f32 0.0, %v1263
        %v1265 = vpop.f32.mrf.mxu0
        %1266 = vmatprep.mubr.f32.mxu0 0.0
        %1267 = vmatmul.mubr.f32.gmra.mxu0 %v760
        %v1268 = vpop.f32.mrf.mxu0
        %v1269 = vadd.f32 0.0, %v1268
        %v1270 = vpop.f32.mrf.mxu0
        %1271 = vmatprep.mubr.f32.mxu0 0.0
        %1272 = vmatmul.mubr.f32.gmra.mxu0 %v762
        %v1273 = vpop.f32.mrf.mxu0
        %v1274 = vadd.f32 0.0, %v1273
        %v1275 = vpop.f32.mrf.mxu0
        %1276 = vmatprep.mubr.f32.mxu0 0.0
        %1277 = vmatmul.mubr.f32.gmra.mxu0 %v765
        %v1278 = vpop.f32.mrf.mxu0
        %v1279 = vadd.f32 0.0, %v1278
        %v1280 = vpop.f32.mrf.mxu0
        %1281 = vmatprep.mubr.f32.mxu0 0.0
        %1282 = vmatmul.mubr.f32.gmra.mxu0 %v767
        %v1283 = vpop.f32.mrf.mxu0
        %v1284 = vadd.f32 0.0, %v1283
        %v1285 = vpop.f32.mrf.mxu0
        %1286 = vmatprep.mubr.f32.mxu0 0.0
        %1287 = vmatmul.mubr.f32.gmra.mxu0 %v770
        %v1288 = vpop.f32.mrf.mxu0
        %v1289 = vadd.f32 0.0, %v1288
        %v1290 = vpop.f32.mrf.mxu0
        %1291 = vmatprep.mubr.f32.mxu0 0.0
        %1292 = vmatmul.mubr.f32.gmra.mxu0 %v772
        %v1293 = vpop.f32.mrf.mxu0
        %v1294 = vadd.f32 0.0, %v1293
        %v1295 = vpop.f32.mrf.mxu0
        %1296 = vmatprep.mubr.f32.mxu0 0.0
        %1297 = vmatmul.mubr.f32.gmra.mxu0 %v775
        %v1298 = vpop.f32.mrf.mxu0
        %v1299 = vadd.f32 0.0, %v1298
        %v1300 = vpop.f32.mrf.mxu0
        %1301 = vmatprep.mubr.f32.mxu0 0.0
        %1302 = vmatmul.mubr.f32.gmra.mxu0 %v777
        %v1303 = vpop.f32.mrf.mxu0
        %v1304 = vadd.f32 0.0, %v1303
        %v1305 = vpop.f32.mrf.mxu0
        %1306 = vmatprep.mubr.f32.mxu0 0.0
        %1307 = vmatmul.mubr.f32.gmra.mxu0 %v780
        %v1308 = vpop.f32.mrf.mxu0
        %v1309 = vadd.f32 0.0, %v1308
        %v1310 = vpop.f32.mrf.mxu0
        %1311 = vmatprep.mubr.f32.mxu0 0.0
        %1312 = vmatmul.mubr.f32.gmra.mxu0 %v782
        %v1313 = vpop.f32.mrf.mxu0
        %v1314 = vadd.f32 0.0, %v1313
        %v1315 = vpop.f32.mrf.mxu0
        %1316 = vmatprep.mubr.f32.mxu0 0.0
        %1317 = vmatmul.mubr.f32.gmra.mxu0 %v982
        %v1318 = vpop.f32.mrf.mxu0
        %v1319 = vadd.f32 0.0, %v1318
        %v1320 = vpop.f32.mrf.mxu0
        %1321 = vmatprep.mubr.f32.mxu0 0.0
        %1322 = vmatmul.mubr.f32.gmra.mxu0 %v984
        %v1323 = vpop.f32.mrf.mxu0
        %v1324 = vadd.f32 0.0, %v1323
        %v1325 = vpop.f32.mrf.mxu0
        %1326 = vmatprep.mubr.f32.mxu0 0.0
        %1327 = vmatmul.mubr.f32.gmra.mxu0 %v1170
        %v1328 = vpop.f32.mrf.mxu0
        %v1329 = vadd.f32 0.0, %v1328
        %v1330 = vpop.f32.mrf.mxu0
        %1331 = vmatprep.mubr.f32.mxu0 0.0
        %1332 = vmatmul.mubr.f32.gmra.mxu0 %v1172
        %v1333 = vpop.f32.mrf.mxu0
        %v1334 = vadd.f32 0.0, %v1333
        %v1335 = vpop.f32.mrf.mxu0
        %1336 = vdwg.mxu0
        %v1337 = vadd.f32 %v1149, %v1259
        %v1338 = vadd.f32 %v1150, %v1264
        %v1339 = vadd.f32 %v1151, %v1269
        %v1340 = vadd.f32 %v1152, %v1274
        %v1341 = vadd.f32 %v1153, %v1279
        %v1342 = vadd.f32 %v1154, %v1284
        %v1343 = vadd.f32 %v1155, %v1289
        %v1344 = vadd.f32 %v1156, %v1294
        %v1345 = vadd.f32 %v1157, %v1299
        %v1346 = vadd.f32 %v1158, %v1304
        %v1347 = vadd.f32 %v1159, %v1309
        %v1348 = vadd.f32 %v1160, %v1314
        %v1349 = vadd.f32 %v1161, %v1319
        %v1350 = vadd.f32 %v1162, %v1324
        %v1351 = vadd.f32 %v1163, %v1329
        %v1352 = vadd.f32 %v1164, %v1334
        %vm1353 = vcmask 1045504
        %v1354 = vrot.slane %v187, 2
        %v1355 = vrot.slane %v188, 2
        %v1356 = vsel %vm1353, %v1354, %v1355
        %v1357 = vrot.slane %v189, 2
        %v1358 = vsel %vm1353, %v1355, %v1357
        %v1359 = vrot.slane %v190, 2
        %v1360 = vrot.slane %v191, 2
        %v1361 = vsel %vm1353, %v1359, %v1360
        %v1362 = vrot.slane %v192, 2
        %v1363 = vsel %vm1353, %v1360, %v1362
        %v1364 = vrot.slane %v193, 2
        %v1365 = vrot.slane %v194, 2
        %v1366 = vsel %vm1353, %v1364, %v1365
        %v1367 = vrot.slane %v195, 2
        %v1368 = vsel %vm1353, %v1365, %v1367
        %v1369 = vrot.slane %v196, 2
        %v1370 = vrot.slane %v197, 2
        %v1371 = vsel %vm1353, %v1369, %v1370
        %v1372 = vrot.slane %v198, 2
        %v1373 = vsel %vm1353, %v1370, %v1372
        %v1374 = vrot.slane %v199, 2
        %v1375 = vrot.slane %v200, 2
        %v1376 = vsel %vm1353, %v1374, %v1375
        %v1377 = vrot.slane %v201, 2
        %v1378 = vsel %vm1353, %v1375, %v1377
        %v1379 = vrot.slane %v202, 2
        %v1380 = vrot.slane %v203, 2
        %v1381 = vsel %vm1353, %v1379, %v1380
        %v1382 = vrot.slane %v204, 2
        %v1383 = vsel %vm1353, %v1380, %v1382
        %v1384 = vrot.slane %v205, 2
        %v1385 = vrot.slane %v206, 2
        %v1386 = vsel %vm1353, %v1384, %v1385
        %v1387 = vrot.slane %v207, 2
        %v1388 = vsel %vm1353, %v1385, %v1387
        %v1389 = vrot.slane %v208, 2
        %v1390 = vrot.slane %v209, 2
        %v1391 = vsel %vm1353, %v1389, %v1390
        %v1392 = vrot.slane %v210, 2
        %v1393 = vsel %vm1353, %v1390, %v1392
        %s1410 = scalar_lea.vmem %s1, 256
        %v1411 = vld [vmem:[%s1410] sm:$0xff]
        %v1412 = vld [vmem:[%s1410 + $0x8] sm:$0xff]
        %v1413 = vld [vmem:[%s1410 + $0x10] sm:$0xff]
        %v1414 = vld [vmem:[%s1410 + $0x18] sm:$0xff]
        %v1415 = vld [vmem:[%s1410 + $0x20] sm:$0xff]
        %v1416 = vld [vmem:[%s1410 + $0x28] sm:$0xff]
        %v1417 = vld [vmem:[%s1410 + $0x30] sm:$0xff]
        %v1418 = vld [vmem:[%s1410 + $0x38] sm:$0xff]
        %v1419 = vld [vmem:[%s1410 + $0x40] sm:$0xff]
        %v1420 = vld [vmem:[%s1410 + $0x48] sm:$0xff]
        %v1421 = vld [vmem:[%s1410 + $0x50] sm:$0xff]
        %v1422 = vld [vmem:[%s1410 + $0x58] sm:$0xff]
        %v1423 = vld [vmem:[%s1410 + $0x60] sm:$0xff]
        %v1424 = vld [vmem:[%s1410 + $0x68] sm:$0xff]
        %v1425 = vld [vmem:[%s1410 + $0x70] sm:$0xff]
        %v1426 = vld [vmem:[%s1410 + $0x78] sm:$0xff]
        %1427 = vmatprep.subr.mxu0 0.0
        %1428 = vmatpush1.msra.mxu0 %v1426
        %1429 = vmatprep.subr.mxu0 0.0
        %1430 = vmatpush1.msra.mxu0 %v1425
        %1431 = vmatprep.subr.mxu0 0.0
        %1432 = vmatpush1.msra.mxu0 %v1424
        %1433 = vmatprep.subr.mxu0 0.0
        %1434 = vmatpush1.msra.mxu0 %v1423
        %1435 = vmatprep.subr.mxu0 0.0
        %1436 = vmatpush1.msra.mxu0 %v1422
        %1437 = vmatprep.subr.mxu0 0.0
        %1438 = vmatpush1.msra.mxu0 %v1421
        %1439 = vmatprep.subr.mxu0 0.0
        %1440 = vmatpush1.msra.mxu0 %v1420
        %1441 = vmatprep.subr.mxu0 0.0
        %1442 = vmatpush1.msra.mxu0 %v1419
        %1443 = vmatprep.subr.mxu0 0.0
        %1444 = vmatpush1.msra.mxu0 %v1418
        %1445 = vmatprep.subr.mxu0 0.0
        %1446 = vmatpush1.msra.mxu0 %v1417
        %1447 = vmatprep.subr.mxu0 0.0
        %1448 = vmatpush1.msra.mxu0 %v1416
        %1449 = vmatprep.subr.mxu0 0.0
        %1450 = vmatpush1.msra.mxu0 %v1415
        %1451 = vmatprep.subr.mxu0 0.0
        %1452 = vmatpush1.msra.mxu0 %v1414
        %1453 = vmatprep.subr.mxu0 0.0
        %1454 = vmatpush1.msra.mxu0 %v1413
        %1455 = vmatprep.subr.mxu0 0.0
        %1456 = vmatpush1.msra.mxu0 %v1412
        %1457 = vmatprep.subr.mxu0 0.0
        %1458 = vmatpush1.msra.mxu0 %v1411
        %1459 = vmatprep.subr.mxu0 0.0
        %1460 = vmatpush2.msra.mxu0 0.0
        %1461 = vmatprep.subr.mxu0 0.0
        %1462 = vmatpush2.msra.mxu0 0.0
        %1463 = vmatprep.subr.mxu0 0.0
        %1464 = vmatpush2.msra.mxu0 0.0
        %1465 = vmatprep.subr.mxu0 0.0
        %1466 = vmatpush2.msra.mxu0 0.0
        %1467 = vmatprep.subr.mxu0 0.0
        %1468 = vmatpush2.msra.mxu0 0.0
        %1469 = vmatprep.subr.mxu0 0.0
        %1470 = vmatpush2.msra.mxu0 0.0
        %1471 = vmatprep.subr.mxu0 0.0
        %1472 = vmatpush2.msra.mxu0 0.0
        %1473 = vmatprep.subr.mxu0 0.0
        %1474 = vmatpush2.msra.mxu0 0.0
        %1475 = vmatprep.subr.mxu0 0.0
        %1476 = vmatpush2.msra.mxu0 0.0
        %1477 = vmatprep.subr.mxu0 0.0
        %1478 = vmatpush2.msra.mxu0 0.0
        %1479 = vmatprep.subr.mxu0 0.0
        %1480 = vmatpush2.msra.mxu0 0.0
        %1481 = vmatprep.subr.mxu0 0.0
        %1482 = vmatpush2.msra.mxu0 0.0
        %1483 = vmatprep.subr.mxu0 0.0
        %1484 = vmatpush2.msra.mxu0 0.0
        %1485 = vmatprep.subr.mxu0 0.0
        %1486 = vmatpush2.msra.mxu0 0.0
        %1487 = vmatprep.subr.mxu0 0.0
        %1488 = vmatpush2.msra.mxu0 0.0
        %1489 = vmatprep.subr.mxu0 0.0
        %1490 = vmatpush2.msra.mxu0 0.0
        %1491 = vmatprep.mubr.f32.mxu0 0.0
        %1492 = vmatmul.mubr.f32.gmra.mxu0 %v1356
        %v1493 = vpop.f32.mrf.mxu0
        %v1494 = vadd.f32 0.0, %v1493
        %v1495 = vpop.f32.mrf.mxu0
        %1496 = vmatprep.mubr.f32.mxu0 0.0
        %1497 = vmatmul.mubr.f32.gmra.mxu0 %v1358
        %v1498 = vpop.f32.mrf.mxu0
        %v1499 = vadd.f32 0.0, %v1498
        %v1500 = vpop.f32.mrf.mxu0
        %1501 = vmatprep.mubr.f32.mxu0 0.0
        %1502 = vmatmul.mubr.f32.gmra.mxu0 %v1361
        %v1503 = vpop.f32.mrf.mxu0
        %v1504 = vadd.f32 0.0, %v1503
        %v1505 = vpop.f32.mrf.mxu0
        %1506 = vmatprep.mubr.f32.mxu0 0.0
        %1507 = vmatmul.mubr.f32.gmra.mxu0 %v1363
        %v1508 = vpop.f32.mrf.mxu0
        %v1509 = vadd.f32 0.0, %v1508
        %v1510 = vpop.f32.mrf.mxu0
        %1511 = vmatprep.mubr.f32.mxu0 0.0
        %1512 = vmatmul.mubr.f32.gmra.mxu0 %v1366
        %v1513 = vpop.f32.mrf.mxu0
        %v1514 = vadd.f32 0.0, %v1513
        %v1515 = vpop.f32.mrf.mxu0
        %1516 = vmatprep.mubr.f32.mxu0 0.0
        %1517 = vmatmul.mubr.f32.gmra.mxu0 %v1368
        %v1518 = vpop.f32.mrf.mxu0
        %v1519 = vadd.f32 0.0, %v1518
        %v1520 = vpop.f32.mrf.mxu0
        %1521 = vmatprep.mubr.f32.mxu0 0.0
        %1522 = vmatmul.mubr.f32.gmra.mxu0 %v1371
        %v1523 = vpop.f32.mrf.mxu0
        %v1524 = vadd.f32 0.0, %v1523
        %v1525 = vpop.f32.mrf.mxu0
        %1526 = vmatprep.mubr.f32.mxu0 0.0
        %1527 = vmatmul.mubr.f32.gmra.mxu0 %v1373
        %v1528 = vpop.f32.mrf.mxu0
        %v1529 = vadd.f32 0.0, %v1528
        %v1530 = vpop.f32.mrf.mxu0
        %1531 = vmatprep.mubr.f32.mxu0 0.0
        %1532 = vmatmul.mubr.f32.gmra.mxu0 %v1376
        %v1533 = vpop.f32.mrf.mxu0
        %v1534 = vadd.f32 0.0, %v1533
        %v1535 = vpop.f32.mrf.mxu0
        %1536 = vmatprep.mubr.f32.mxu0 0.0
        %1537 = vmatmul.mubr.f32.gmra.mxu0 %v1378
        %v1538 = vpop.f32.mrf.mxu0
        %v1539 = vadd.f32 0.0, %v1538
        %v1540 = vpop.f32.mrf.mxu0
        %1541 = vmatprep.mubr.f32.mxu0 0.0
        %1542 = vmatmul.mubr.f32.gmra.mxu0 %v1381
        %v1543 = vpop.f32.mrf.mxu0
        %v1544 = vadd.f32 0.0, %v1543
        %v1545 = vpop.f32.mrf.mxu0
        %1546 = vmatprep.mubr.f32.mxu0 0.0
        %1547 = vmatmul.mubr.f32.gmra.mxu0 %v1383
        %v1548 = vpop.f32.mrf.mxu0
        %v1549 = vadd.f32 0.0, %v1548
        %v1550 = vpop.f32.mrf.mxu0
        %1551 = vmatprep.mubr.f32.mxu0 0.0
        %1552 = vmatmul.mubr.f32.gmra.mxu0 %v1386
        %v1553 = vpop.f32.mrf.mxu0
        %v1554 = vadd.f32 0.0, %v1553
        %v1555 = vpop.f32.mrf.mxu0
        %1556 = vmatprep.mubr.f32.mxu0 0.0
        %1557 = vmatmul.mubr.f32.gmra.mxu0 %v1388
        %v1558 = vpop.f32.mrf.mxu0
        %v1559 = vadd.f32 0.0, %v1558
        %v1560 = vpop.f32.mrf.mxu0
        %1561 = vmatprep.mubr.f32.mxu0 0.0
        %1562 = vmatmul.mubr.f32.gmra.mxu0 %v1391
        %v1563 = vpop.f32.mrf.mxu0
        %v1564 = vadd.f32 0.0, %v1563
        %v1565 = vpop.f32.mrf.mxu0
        %1566 = vmatprep.mubr.f32.mxu0 0.0
        %1567 = vmatmul.mubr.f32.gmra.mxu0 %v1393
        %v1568 = vpop.f32.mrf.mxu0
        %v1569 = vadd.f32 0.0, %v1568
        %v1570 = vpop.f32.mrf.mxu0
        %1571 = vdwg.mxu0
        %v1572 = vadd.f32 %v1337, %v1494
        %v1573 = vadd.f32 %v1338, %v1499
        %v1574 = vadd.f32 %v1339, %v1504
        %v1575 = vadd.f32 %v1340, %v1509
        %v1576 = vadd.f32 %v1341, %v1514
        %v1577 = vadd.f32 %v1342, %v1519
        %v1578 = vadd.f32 %v1343, %v1524
        %v1579 = vadd.f32 %v1344, %v1529
        %v1580 = vadd.f32 %v1345, %v1534
        %v1581 = vadd.f32 %v1346, %v1539
        %v1582 = vadd.f32 %v1347, %v1544
        %v1583 = vadd.f32 %v1348, %v1549
        %v1584 = vadd.f32 %v1349, %v1554
        %v1585 = vadd.f32 %v1350, %v1559
        %v1586 = vadd.f32 %v1351, %v1564
        %v1587 = vadd.f32 %v1352, %v1569
        %v1588 = vrot.slane %v211, 2
        %v1589 = vrot.slane %v212, 2
        %v1590 = vsel %vm1353, %v1588, %v1589
        %v1591 = vrot.slane %v213, 2
        %v1592 = vsel %vm1353, %v1589, %v1591
        %s1595 = scalar_lea.vmem %s1, 640
        %v1596 = vld [vmem:[%s1595] sm:$0xff]
        %v1597 = vld [vmem:[%s1595 + $0x8] sm:$0xff]
        %v1598 = vld [vmem:[%s1595 + $0x10] sm:$0xff]
        %v1599 = vld [vmem:[%s1595 + $0x18] sm:$0xff]
        %v1600 = vld [vmem:[%s1595 + $0x20] sm:$0xff]
        %v1601 = vld [vmem:[%s1595 + $0x28] sm:$0xff]
        %v1602 = vld [vmem:[%s1595 + $0x30] sm:$0xff]
        %v1603 = vld [vmem:[%s1595 + $0x38] sm:$0xff]
        %v1604 = vld [vmem:[%s1595 + $0x40] sm:$0xff]
        %v1605 = vld [vmem:[%s1595 + $0x48] sm:$0xff]
        %v1606 = vld [vmem:[%s1595 + $0x50] sm:$0xff]
        %v1607 = vld [vmem:[%s1595 + $0x58] sm:$0xff]
        %v1608 = vld [vmem:[%s1595 + $0x60] sm:$0xff]
        %v1609 = vld [vmem:[%s1595 + $0x68] sm:$0xff]
        %v1610 = vld [vmem:[%s1595 + $0x70] sm:$0xff]
        %v1611 = vld [vmem:[%s1595 + $0x78] sm:$0xff]
        %1612 = vmatprep.subr.mxu0 0.0
        %1613 = vmatpush1.msra.mxu0 %v1611
        %1614 = vmatprep.subr.mxu0 0.0
        %1615 = vmatpush1.msra.mxu0 %v1610
        %1616 = vmatprep.subr.mxu0 0.0
        %1617 = vmatpush1.msra.mxu0 %v1609
        %1618 = vmatprep.subr.mxu0 0.0
        %1619 = vmatpush1.msra.mxu0 %v1608
        %1620 = vmatprep.subr.mxu0 0.0
        %1621 = vmatpush1.msra.mxu0 %v1607
        %1622 = vmatprep.subr.mxu0 0.0
        %1623 = vmatpush1.msra.mxu0 %v1606
        %1624 = vmatprep.subr.mxu0 0.0
        %1625 = vmatpush1.msra.mxu0 %v1605
        %1626 = vmatprep.subr.mxu0 0.0
        %1627 = vmatpush1.msra.mxu0 %v1604
        %1628 = vmatprep.subr.mxu0 0.0
        %1629 = vmatpush1.msra.mxu0 %v1603
        %1630 = vmatprep.subr.mxu0 0.0
        %1631 = vmatpush1.msra.mxu0 %v1602
        %1632 = vmatprep.subr.mxu0 0.0
        %1633 = vmatpush1.msra.mxu0 %v1601
        %1634 = vmatprep.subr.mxu0 0.0
        %1635 = vmatpush1.msra.mxu0 %v1600
        %1636 = vmatprep.subr.mxu0 0.0
        %1637 = vmatpush1.msra.mxu0 %v1599
        %1638 = vmatprep.subr.mxu0 0.0
        %1639 = vmatpush1.msra.mxu0 %v1598
        %1640 = vmatprep.subr.mxu0 0.0
        %1641 = vmatpush1.msra.mxu0 %v1597
        %1642 = vmatprep.subr.mxu0 0.0
        %1643 = vmatpush1.msra.mxu0 %v1596
        %1644 = vmatprep.subr.mxu0 0.0
        %1645 = vmatpush2.msra.mxu0 0.0
        %1646 = vmatprep.subr.mxu0 0.0
        %1647 = vmatpush2.msra.mxu0 0.0
        %1648 = vmatprep.subr.mxu0 0.0
        %1649 = vmatpush2.msra.mxu0 0.0
        %1650 = vmatprep.subr.mxu0 0.0
        %1651 = vmatpush2.msra.mxu0 0.0
        %1652 = vmatprep.subr.mxu0 0.0
        %1653 = vmatpush2.msra.mxu0 0.0
        %1654 = vmatprep.subr.mxu0 0.0
        %1655 = vmatpush2.msra.mxu0 0.0
        %1656 = vmatprep.subr.mxu0 0.0
        %1657 = vmatpush2.msra.mxu0 0.0
        %1658 = vmatprep.subr.mxu0 0.0
        %1659 = vmatpush2.msra.mxu0 0.0
        %1660 = vmatprep.subr.mxu0 0.0
        %1661 = vmatpush2.msra.mxu0 0.0
        %1662 = vmatprep.subr.mxu0 0.0
        %1663 = vmatpush2.msra.mxu0 0.0
        %1664 = vmatprep.subr.mxu0 0.0
        %1665 = vmatpush2.msra.mxu0 0.0
        %1666 = vmatprep.subr.mxu0 0.0
        %1667 = vmatpush2.msra.mxu0 0.0
        %1668 = vmatprep.subr.mxu0 0.0
        %1669 = vmatpush2.msra.mxu0 0.0
        %1670 = vmatprep.subr.mxu0 0.0
        %1671 = vmatpush2.msra.mxu0 0.0
        %1672 = vmatprep.subr.mxu0 0.0
        %1673 = vmatpush2.msra.mxu0 0.0
        %1674 = vmatprep.subr.mxu0 0.0
        %1675 = vmatpush2.msra.mxu0 0.0
        %1676 = vmatprep.mubr.f32.mxu0 0.0
        %1677 = vmatmul.mubr.f32.gmra.mxu0 %v1361
        %v1678 = vpop.f32.mrf.mxu0
        %v1679 = vadd.f32 0.0, %v1678
        %v1680 = vpop.f32.mrf.mxu0
        %1681 = vmatprep.mubr.f32.mxu0 0.0
        %1682 = vmatmul.mubr.f32.gmra.mxu0 %v1363
        %v1683 = vpop.f32.mrf.mxu0
        %v1684 = vadd.f32 0.0, %v1683
        %v1685 = vpop.f32.mrf.mxu0
        %1686 = vmatprep.mubr.f32.mxu0 0.0
        %1687 = vmatmul.mubr.f32.gmra.mxu0 %v1366
        %v1688 = vpop.f32.mrf.mxu0
        %v1689 = vadd.f32 0.0, %v1688
        %v1690 = vpop.f32.mrf.mxu0
        %1691 = vmatprep.mubr.f32.mxu0 0.0
        %1692 = vmatmul.mubr.f32.gmra.mxu0 %v1368
        %v1693 = vpop.f32.mrf.mxu0
        %v1694 = vadd.f32 0.0, %v1693
        %v1695 = vpop.f32.mrf.mxu0
        %1696 = vmatprep.mubr.f32.mxu0 0.0
        %1697 = vmatmul.mubr.f32.gmra.mxu0 %v1371
        %v1698 = vpop.f32.mrf.mxu0
        %v1699 = vadd.f32 0.0, %v1698
        %v1700 = vpop.f32.mrf.mxu0
        %1701 = vmatprep.mubr.f32.mxu0 0.0
        %1702 = vmatmul.mubr.f32.gmra.mxu0 %v1373
        %v1703 = vpop.f32.mrf.mxu0
        %v1704 = vadd.f32 0.0, %v1703
        %v1705 = vpop.f32.mrf.mxu0
        %1706 = vmatprep.mubr.f32.mxu0 0.0
        %1707 = vmatmul.mubr.f32.gmra.mxu0 %v1376
        %v1708 = vpop.f32.mrf.mxu0
        %v1709 = vadd.f32 0.0, %v1708
        %v1710 = vpop.f32.mrf.mxu0
        %1711 = vmatprep.mubr.f32.mxu0 0.0
        %1712 = vmatmul.mubr.f32.gmra.mxu0 %v1378
        %v1713 = vpop.f32.mrf.mxu0
        %v1714 = vadd.f32 0.0, %v1713
        %v1715 = vpop.f32.mrf.mxu0
        %1716 = vmatprep.mubr.f32.mxu0 0.0
        %1717 = vmatmul.mubr.f32.gmra.mxu0 %v1381
        %v1718 = vpop.f32.mrf.mxu0
        %v1719 = vadd.f32 0.0, %v1718
        %v1720 = vpop.f32.mrf.mxu0
        %1721 = vmatprep.mubr.f32.mxu0 0.0
        %1722 = vmatmul.mubr.f32.gmra.mxu0 %v1383
        %v1723 = vpop.f32.mrf.mxu0
        %v1724 = vadd.f32 0.0, %v1723
        %v1725 = vpop.f32.mrf.mxu0
        %1726 = vmatprep.mubr.f32.mxu0 0.0
        %1727 = vmatmul.mubr.f32.gmra.mxu0 %v1386
        %v1728 = vpop.f32.mrf.mxu0
        %v1729 = vadd.f32 0.0, %v1728
        %v1730 = vpop.f32.mrf.mxu0
        %1731 = vmatprep.mubr.f32.mxu0 0.0
        %1732 = vmatmul.mubr.f32.gmra.mxu0 %v1388
        %v1733 = vpop.f32.mrf.mxu0
        %v1734 = vadd.f32 0.0, %v1733
        %v1735 = vpop.f32.mrf.mxu0
        %1736 = vmatprep.mubr.f32.mxu0 0.0
        %1737 = vmatmul.mubr.f32.gmra.mxu0 %v1391
        %v1738 = vpop.f32.mrf.mxu0
        %v1739 = vadd.f32 0.0, %v1738
        %v1740 = vpop.f32.mrf.mxu0
        %1741 = vmatprep.mubr.f32.mxu0 0.0
        %1742 = vmatmul.mubr.f32.gmra.mxu0 %v1393
        %v1743 = vpop.f32.mrf.mxu0
        %v1744 = vadd.f32 0.0, %v1743
        %v1745 = vpop.f32.mrf.mxu0
        %1746 = vmatprep.mubr.f32.mxu0 0.0
        %1747 = vmatmul.mubr.f32.gmra.mxu0 %v1590
        %v1748 = vpop.f32.mrf.mxu0
        %v1749 = vadd.f32 0.0, %v1748
        %v1750 = vpop.f32.mrf.mxu0
        %1751 = vmatprep.mubr.f32.mxu0 0.0
        %1752 = vmatmul.mubr.f32.gmra.mxu0 %v1592
        %v1753 = vpop.f32.mrf.mxu0
        %v1754 = vadd.f32 0.0, %v1753
        %v1755 = vpop.f32.mrf.mxu0
        %1756 = vdwg.mxu0
        %v1757 = vadd.f32 %v1572, %v1679
        %v1758 = vadd.f32 %v1573, %v1684
        %v1759 = vadd.f32 %v1574, %v1689
        %v1760 = vadd.f32 %v1575, %v1694
        %v1761 = vadd.f32 %v1576, %v1699
        %v1762 = vadd.f32 %v1577, %v1704
        %v1763 = vadd.f32 %v1578, %v1709
        %v1764 = vadd.f32 %v1579, %v1714
        %v1765 = vadd.f32 %v1580, %v1719
        %v1766 = vadd.f32 %v1581, %v1724
        %v1767 = vadd.f32 %v1582, %v1729
        %v1768 = vadd.f32 %v1583, %v1734
        %v1769 = vadd.f32 %v1584, %v1739
        %v1770 = vadd.f32 %v1585, %v1744
        %v1771 = vadd.f32 %v1586, %v1749
        %v1772 = vadd.f32 %v1587, %v1754
        %v1773 = vrot.slane %v214, 2
        %v1774 = vrot.slane %v215, 2
        %v1775 = vsel %vm1353, %v1773, %v1774
        %v1776 = vrot.slane %v216, 2
        %v1777 = vsel %vm1353, %v1774, %v1776
        %s1780 = scalar_lea.vmem %s1, 1024
        %v1781 = vld [vmem:[%s1780] sm:$0xff]
        %v1782 = vld [vmem:[%s1780 + $0x8] sm:$0xff]
        %v1783 = vld [vmem:[%s1780 + $0x10] sm:$0xff]
        %v1784 = vld [vmem:[%s1780 + $0x18] sm:$0xff]
        %v1785 = vld [vmem:[%s1780 + $0x20] sm:$0xff]
        %v1786 = vld [vmem:[%s1780 + $0x28] sm:$0xff]
        %v1787 = vld [vmem:[%s1780 + $0x30] sm:$0xff]
        %v1788 = vld [vmem:[%s1780 + $0x38] sm:$0xff]
        %v1789 = vld [vmem:[%s1780 + $0x40] sm:$0xff]
        %v1790 = vld [vmem:[%s1780 + $0x48] sm:$0xff]
        %v1791 = vld [vmem:[%s1780 + $0x50] sm:$0xff]
        %v1792 = vld [vmem:[%s1780 + $0x58] sm:$0xff]
        %v1793 = vld [vmem:[%s1780 + $0x60] sm:$0xff]
        %v1794 = vld [vmem:[%s1780 + $0x68] sm:$0xff]
        %v1795 = vld [vmem:[%s1780 + $0x70] sm:$0xff]
        %v1796 = vld [vmem:[%s1780 + $0x78] sm:$0xff]
        %1797 = vmatprep.subr.mxu0 0.0
        %1798 = vmatpush1.msra.mxu0 %v1796
        %1799 = vmatprep.subr.mxu0 0.0
        %1800 = vmatpush1.msra.mxu0 %v1795
        %1801 = vmatprep.subr.mxu0 0.0
        %1802 = vmatpush1.msra.mxu0 %v1794
        %1803 = vmatprep.subr.mxu0 0.0
        %1804 = vmatpush1.msra.mxu0 %v1793
        %1805 = vmatprep.subr.mxu0 0.0
        %1806 = vmatpush1.msra.mxu0 %v1792
        %1807 = vmatprep.subr.mxu0 0.0
        %1808 = vmatpush1.msra.mxu0 %v1791
        %1809 = vmatprep.subr.mxu0 0.0
        %1810 = vmatpush1.msra.mxu0 %v1790
        %1811 = vmatprep.subr.mxu0 0.0
        %1812 = vmatpush1.msra.mxu0 %v1789
        %1813 = vmatprep.subr.mxu0 0.0
        %1814 = vmatpush1.msra.mxu0 %v1788
        %1815 = vmatprep.subr.mxu0 0.0
        %1816 = vmatpush1.msra.mxu0 %v1787
        %1817 = vmatprep.subr.mxu0 0.0
        %1818 = vmatpush1.msra.mxu0 %v1786
        %1819 = vmatprep.subr.mxu0 0.0
        %1820 = vmatpush1.msra.mxu0 %v1785
        %1821 = vmatprep.subr.mxu0 0.0
        %1822 = vmatpush1.msra.mxu0 %v1784
        %1823 = vmatprep.subr.mxu0 0.0
        %1824 = vmatpush1.msra.mxu0 %v1783
        %1825 = vmatprep.subr.mxu0 0.0
        %1826 = vmatpush1.msra.mxu0 %v1782
        %1827 = vmatprep.subr.mxu0 0.0
        %1828 = vmatpush1.msra.mxu0 %v1781
        %1829 = vmatprep.subr.mxu0 0.0
        %1830 = vmatpush2.msra.mxu0 0.0
        %1831 = vmatprep.subr.mxu0 0.0
        %1832 = vmatpush2.msra.mxu0 0.0
        %1833 = vmatprep.subr.mxu0 0.0
        %1834 = vmatpush2.msra.mxu0 0.0
        %1835 = vmatprep.subr.mxu0 0.0
        %1836 = vmatpush2.msra.mxu0 0.0
        %1837 = vmatprep.subr.mxu0 0.0
        %1838 = vmatpush2.msra.mxu0 0.0
        %1839 = vmatprep.subr.mxu0 0.0
        %1840 = vmatpush2.msra.mxu0 0.0
        %1841 = vmatprep.subr.mxu0 0.0
        %1842 = vmatpush2.msra.mxu0 0.0
        %1843 = vmatprep.subr.mxu0 0.0
        %1844 = vmatpush2.msra.mxu0 0.0
        %1845 = vmatprep.subr.mxu0 0.0
        %1846 = vmatpush2.msra.mxu0 0.0
        %1847 = vmatprep.subr.mxu0 0.0
        %1848 = vmatpush2.msra.mxu0 0.0
        %1849 = vmatprep.subr.mxu0 0.0
        %1850 = vmatpush2.msra.mxu0 0.0
        %1851 = vmatprep.subr.mxu0 0.0
        %1852 = vmatpush2.msra.mxu0 0.0
        %1853 = vmatprep.subr.mxu0 0.0
        %1854 = vmatpush2.msra.mxu0 0.0
        %1855 = vmatprep.subr.mxu0 0.0
        %1856 = vmatpush2.msra.mxu0 0.0
        %1857 = vmatprep.subr.mxu0 0.0
        %1858 = vmatpush2.msra.mxu0 0.0
        %1859 = vmatprep.subr.mxu0 0.0
        %1860 = vmatpush2.msra.mxu0 0.0
        %1861 = vmatprep.mubr.f32.mxu0 0.0
        %1862 = vmatmul.mubr.f32.gmra.mxu0 %v1366
        %v1863 = vpop.f32.mrf.mxu0
        %v1864 = vadd.f32 0.0, %v1863
        %v1865 = vpop.f32.mrf.mxu0
        %1866 = vmatprep.mubr.f32.mxu0 0.0
        %1867 = vmatmul.mubr.f32.gmra.mxu0 %v1368
        %v1868 = vpop.f32.mrf.mxu0
        %v1869 = vadd.f32 0.0, %v1868
        %v1870 = vpop.f32.mrf.mxu0
        %1871 = vmatprep.mubr.f32.mxu0 0.0
        %1872 = vmatmul.mubr.f32.gmra.mxu0 %v1371
        %v1873 = vpop.f32.mrf.mxu0
        %v1874 = vadd.f32 0.0, %v1873
        %v1875 = vpop.f32.mrf.mxu0
        %1876 = vmatprep.mubr.f32.mxu0 0.0
        %1877 = vmatmul.mubr.f32.gmra.mxu0 %v1373
        %v1878 = vpop.f32.mrf.mxu0
        %v1879 = vadd.f32 0.0, %v1878
        %v1880 = vpop.f32.mrf.mxu0
        %1881 = vmatprep.mubr.f32.mxu0 0.0
        %1882 = vmatmul.mubr.f32.gmra.mxu0 %v1376
        %v1883 = vpop.f32.mrf.mxu0
        %v1884 = vadd.f32 0.0, %v1883
        %v1885 = vpop.f32.mrf.mxu0
        %1886 = vmatprep.mubr.f32.mxu0 0.0
        %1887 = vmatmul.mubr.f32.gmra.mxu0 %v1378
        %v1888 = vpop.f32.mrf.mxu0
        %v1889 = vadd.f32 0.0, %v1888
        %v1890 = vpop.f32.mrf.mxu0
        %1891 = vmatprep.mubr.f32.mxu0 0.0
        %1892 = vmatmul.mubr.f32.gmra.mxu0 %v1381
        %v1893 = vpop.f32.mrf.mxu0
        %v1894 = vadd.f32 0.0, %v1893
        %v1895 = vpop.f32.mrf.mxu0
        %1896 = vmatprep.mubr.f32.mxu0 0.0
        %1897 = vmatmul.mubr.f32.gmra.mxu0 %v1383
        %v1898 = vpop.f32.mrf.mxu0
        %v1899 = vadd.f32 0.0, %v1898
        %v1900 = vpop.f32.mrf.mxu0
        %1901 = vmatprep.mubr.f32.mxu0 0.0
        %1902 = vmatmul.mubr.f32.gmra.mxu0 %v1386
        %v1903 = vpop.f32.mrf.mxu0
        %v1904 = vadd.f32 0.0, %v1903
        %v1905 = vpop.f32.mrf.mxu0
        %1906 = vmatprep.mubr.f32.mxu0 0.0
        %1907 = vmatmul.mubr.f32.gmra.mxu0 %v1388
        %v1908 = vpop.f32.mrf.mxu0
        %v1909 = vadd.f32 0.0, %v1908
        %v1910 = vpop.f32.mrf.mxu0
        %1911 = vmatprep.mubr.f32.mxu0 0.0
        %1912 = vmatmul.mubr.f32.gmra.mxu0 %v1391
        %v1913 = vpop.f32.mrf.mxu0
        %v1914 = vadd.f32 0.0, %v1913
        %v1915 = vpop.f32.mrf.mxu0
        %1916 = vmatprep.mubr.f32.mxu0 0.0
        %1917 = vmatmul.mubr.f32.gmra.mxu0 %v1393
        %v1918 = vpop.f32.mrf.mxu0
        %v1919 = vadd.f32 0.0, %v1918
        %v1920 = vpop.f32.mrf.mxu0
        %1921 = vmatprep.mubr.f32.mxu0 0.0
        %1922 = vmatmul.mubr.f32.gmra.mxu0 %v1590
        %v1923 = vpop.f32.mrf.mxu0
        %v1924 = vadd.f32 0.0, %v1923
        %v1925 = vpop.f32.mrf.mxu0
        %1926 = vmatprep.mubr.f32.mxu0 0.0
        %1927 = vmatmul.mubr.f32.gmra.mxu0 %v1592
        %v1928 = vpop.f32.mrf.mxu0
        %v1929 = vadd.f32 0.0, %v1928
        %v1930 = vpop.f32.mrf.mxu0
        %1931 = vmatprep.mubr.f32.mxu0 0.0
        %1932 = vmatmul.mubr.f32.gmra.mxu0 %v1775
        %v1933 = vpop.f32.mrf.mxu0
        %v1934 = vadd.f32 0.0, %v1933
        %v1935 = vpop.f32.mrf.mxu0
        %1936 = vmatprep.mubr.f32.mxu0 0.0
        %1937 = vmatmul.mubr.f32.gmra.mxu0 %v1777
        %v1938 = vpop.f32.mrf.mxu0
        %v1939 = vadd.f32 0.0, %v1938
        %v1940 = vpop.f32.mrf.mxu0
        %1941 = vdwg.mxu0
        %v1942 = vadd.f32 %v1757, %v1864
        %v1943 = vadd.f32 %v1758, %v1869
        %v1944 = vadd.f32 %v1759, %v1874
        %v1945 = vadd.f32 %v1760, %v1879
        %v1946 = vadd.f32 %v1761, %v1884
        %v1947 = vadd.f32 %v1762, %v1889
        %v1948 = vadd.f32 %v1763, %v1894
        %v1949 = vadd.f32 %v1764, %v1899
        %v1950 = vadd.f32 %v1765, %v1904
        %v1951 = vadd.f32 %v1766, %v1909
        %v1952 = vadd.f32 %v1767, %v1914
        %v1953 = vadd.f32 %v1768, %v1919
        %v1954 = vadd.f32 %v1769, %v1924
        %v1955 = vadd.f32 %v1770, %v1929
        %v1956 = vadd.f32 %v1771, %v1934
        %v1957 = vadd.f32 %v1772, %v1939
        %v1958 = vld [vmem:[%s2] sm:$0x1]
        %v1960 = vlaneseq
        %v1961 = vshrl.u32 %v1960, 7
        %v1962 = vsub.s32 0, %v1961
        %v1963 = vrot.slane %v1958, %v1962
        %v1965 = vadd.f32 %v1942, %v1963
        %v1966 = vadd.f32 %v1943, %v1963
        %v1967 = vadd.f32 %v1944, %v1963
        %v1968 = vadd.f32 %v1945, %v1963
        %v1969 = vadd.f32 %v1946, %v1963
        %v1970 = vadd.f32 %v1947, %v1963
        %v1971 = vadd.f32 %v1948, %v1963
        %v1972 = vadd.f32 %v1949, %v1963
        %v1973 = vadd.f32 %v1950, %v1963
        %v1974 = vadd.f32 %v1951, %v1963
        %v1975 = vadd.f32 %v1952, %v1963
        %v1976 = vadd.f32 %v1953, %v1963
        %v1977 = vadd.f32 %v1954, %v1963
        %v1978 = vadd.f32 %v1955, %v1963
        %v1979 = vadd.f32 %v1956, %v1963
        %v1980 = vadd.f32 %v1957, %v1963
        %1981 = vst [vmem:[%s177] sm:$0xff] %v1965
        %1982 = vst [vmem:[%s177 + $0x8] sm:$0xff] %v1966
        %1983 = vst [vmem:[%s177 + $0x10] sm:$0xff] %v1967
        %1984 = vst [vmem:[%s177 + $0x18] sm:$0xff] %v1968
        %1985 = vst [vmem:[%s177 + $0x20] sm:$0xff] %v1969
        %1986 = vst [vmem:[%s177 + $0x28] sm:$0xff] %v1970
        %1987 = vst [vmem:[%s177 + $0x30] sm:$0xff] %v1971
        %1988 = vst [vmem:[%s177 + $0x38] sm:$0xff] %v1972
        %1989 = vst [vmem:[%s177 + $0x40] sm:$0xff] %v1973
        %1990 = vst [vmem:[%s177 + $0x48] sm:$0xff] %v1974
        %1991 = vst [vmem:[%s177 + $0x50] sm:$0xff] %v1975
        %1992 = vst [vmem:[%s177 + $0x58] sm:$0xff] %v1976
        %1993 = vst [vmem:[%s177 + $0x60] sm:$0xff] %v1977
        %1994 = vst [vmem:[%s177 + $0x68] sm:$0xff] %v1978
        %1995 = vst [vmem:[%s177 + $0x70] sm:$0xff] %v1979
        %1996 = vst [vmem:[%s177 + $0x78] sm:$0xff] %v1980
        %s1997 = sand.u32 %s107, 1
        %s1998 = scalar_lea.sflag [#allocation3], %s1997
        %s1999 = sand.u32 %s107, 1
        %s2000 = smul.addr %s1999, 128
        %s2001 = scalar_lea.vmem [#allocation2], %s2000
        // Predicated region
        $region33: #{tpu_custom_call.1} parent=31 // pred_check
          %p2002 = pneg %p117
        $region34: #{tpu_custom_call.1} parent=31 // pred_check_branch
          %2004 = sbr.rel (%p2002) target = $region36
        $region35: #{tpu_custom_call.1} parent=31 // pred_region
          %s2005 = smul.u32 16, %s22
          %s2007 = ssub.s32 2048, 2048
          %2008 = vsyncadd %s1998, %s2007
          %s2009 = smul.addr %s21, 32
          %s2010 = sadd.s32 %s2005, %s2009
          %s2011 = smul.addr %s2010, 128
          %s2012 = scalar_lea.hbm %s3, %s2011
          %s2013 = sshll.u32 %s2001, 4
          %s2014 = int_to_ptr.vmem [resolvable:$true] %s2013
          %2019 = dma.vmem_to_hbm [thread:$0]  %s2014, 2048, %s2012, %s1998, 128, 128, 8
        $region36: #{tpu_custom_call.1} parent=31 // pred_fallthru
          _
      $region32: #{tpu_custom_call.1} parent=5 // pred_fallthru
        _
      %p2020 = scmp.le.s32.totalorder 2, %s12
      // Predicated region
      $region37: #{tpu_custom_call.1} parent=5 // pred_check
        %p2021 = pneg %p2020
      $region38: #{tpu_custom_call.1} parent=5 // pred_check_branch
        %2023 = sbr.rel (%p2021) target = $region40
      $region39: #{tpu_custom_call.1} parent=5 // pred_region
        %s2024 = ssub.s32 %s12, 2
        // Predicated region
        $region41: #{tpu_custom_call.1} parent=39 // pred_check
          %p2025 = pneg %p123
        $region42: #{tpu_custom_call.1} parent=39 // pred_check_branch
          %2027 = sbr.rel (%p2025) target = $region44
        $region43: #{tpu_custom_call.1} parent=39 // pred_region
          %s2028 = sand.u32 %s108, 1
          %s2029 = scalar_lea.sflag [#allocation3], %s2028
          %s2030 = sand.u32 %s108, 1
          %s2031 = smul.addr %s2030, 128
          %s2032 = scalar_lea.vmem [#allocation2], %s2031
          %2033 = dma.done %s2029, 2048
        $region44: #{tpu_custom_call.1} parent=39 // pred_fallthru
          _
      $region40: #{tpu_custom_call.1} parent=5 // pred_fallthru
        _
    $region6: #{tpu_custom_call.1} parent=1 // loop_footer
      %s16 = sadd.s32 1, %s12
    $region7: #{tpu_custom_call.1} parent=1 // loop_footer_branch
      %11 = sbr.rel target = $region3
    $region8: #{tpu_custom_call.1} parent=1 // loop_exit
      _
    %2034 = vsyncpa [#allocation3], 1
    %s2035 = scalar_lea.sflag [#allocation3], 1
    %2036 = vsyncpa %s2035, 1

</llo_original>
